<compile_context>
chip_gen: v6e
topology: v6e:2x2x1
jax: 0.10.0
libtpu: 0.0.40
codegen_flags: <defaults>
</compile_context>

<pallas_src>
import jax
import jax.numpy as jnp
from jax.experimental import pallas as pl
from jax.experimental.pallas import tpu as pltpu

# ----------------------------- hyper-parameters (small synthetic Whisper) -----
B = 2               # batch
N_MELS = 8          # mel bins        (whisper-medium: 80)
T_IN = 16           # input frames    (whisper: 3000)
D_MODEL = 32        # d_model         (whisper-medium: 1024)
NUM_HEADS = 4
HEAD_DIM = D_MODEL // NUM_HEADS
FFN_DIM = 4 * D_MODEL
NUM_LAYERS = 2
CLS_HIDDEN = 256
NUM_CLASSES = 2
SEQ = T_IN // 2     # sequence length after conv2 (stride 2)
LN_EPS = 1e-5
ATTN_SCALE = HEAD_DIM ** -0.5

BT = B * T_IN       # batch-merged conv rows
BS = B * SEQ        # batch-merged encoder rows

OUT_ROWS = 8        # sublane-padded logits rows  (full (8,128) tile store)
OUT_LANES = 128     # lane-dense logits store
MASK_BIAS = -1e30   # finite additive cross-batch mask (no -inf underflow)

f32 = jnp.float32
bf16 = jnp.bfloat16


# ----------------------------- in-kernel helpers ------------------------------
def _layer_norm(x, w, b):
    mu = jnp.mean(x, axis=-1, keepdims=True)
    var = jnp.mean((x - mu) ** 2, axis=-1, keepdims=True)
    return (x - mu) * jax.lax.rsqrt(var + LN_EPS) * w + b


def _gelu(x):
    # TODO(synk): HF Whisper uses the exact erf GELU; tanh approximation is used
    # because erf lowering on Mosaic is not guaranteed.
    return jax.nn.gelu(x, approximate=True)


def _softmax_rows(s):
    # max-subtract + exp + EUP reciprocal instead of a VPU divide.
    m = jnp.max(s, axis=-1, keepdims=True)
    e = jnp.exp(s - m)
    return e * pl.reciprocal(jnp.sum(e, axis=-1, keepdims=True), approx=True)


# ----------------------------- fused Pallas kernel ----------------------------
def whisper_fused_kernel(
    xs_ref,                         # (3, B*T, N_MELS) bf16  pre-shifted conv1 taps
    c1w_ref, c1b_ref,               # (3, N_MELS, D) bf16, (1, D) f32
    s2_ref,                         # (3, B*S, B*T) bf16  conv2 tap shift+stride-2 select
    c2w_ref, c2b_ref,               # (3, D, D) bf16, (1, D) f32
    pos_ref,                        # (B*S, D) f32  positional embedding, pre-tiled
    bias_ref,                       # (B*S, B*S) f32  additive cross-batch attention bias
    ln1w_ref, ln1b_ref,             # (L, 1, D) f32
    wqkv_ref, bqkv_ref,             # (L, D, 3D) bf16, (L, 1, 3D) f32  (q-scale folded in)
    wo_ref, bo_ref,                 # (L, D, D) bf16, (L, 1, D) f32
    ln2w_ref, ln2b_ref,             # (L, 1, D) f32
    fc1w_ref, fc1b_ref,             # (L, D, FFN) bf16, (L, 1, FFN) f32
    fc2w_ref, fc2b_ref,             # (L, FFN, D) bf16, (L, 1, D) f32
    lnfw_ref, lnfb_ref,             # (1, D) f32
    pool_ref,                       # (8, B*S) bf16  per-batch mean-pool matrix (padded rows)
    cls1w_ref, cls1b_ref,           # (D, 256) bf16, (1, 256) f32
    cls2w_ref, cls2b_ref,           # (256, 128) bf16 (zero-padded cols), (1, 128) f32
    o_ref,                          # (8, 128) f32  lane-dense padded logits
):
    def mm(a, w):
        # every MXU call: bf16 operands, f32 accumulation
        return jnp.dot(a.astype(bf16), w, preferred_element_type=f32)

    # ---- conv stem -----------------------------------------------------------
    # Conv1d(k3, s1, p1) + GELU: taps pre-shifted/zero-padded in the wrapper ->
    # three purely position-wise matmuls, no in-kernel alignment work.
    h = _gelu(mm(xs_ref[0], c1w_ref[0]) + mm(xs_ref[1], c1w_ref[1])
              + mm(xs_ref[2], c1w_ref[2]) + c1b_ref[...])              # (B*T, D)

    # Conv1d(k3, s2, p1) + GELU + pos: per-tap hoisted 0/1 row-selection matmul
    # (combines the +/-1 shift, zero padding and stride-2 down-selection).
    acc = c2b_ref[...]
    for k in range(3):                                                 # static unroll
        acc = acc + mm(jnp.dot(s2_ref[k], h.astype(bf16),
                               preferred_element_type=f32), c2w_ref[k])
    x = _gelu(acc) + pos_ref[...]                                      # (B*S, D) f32
    # (Whisper applies dropout here; identity at inference.)

    attn_bias = bias_ref[...]                                          # (B*S, B*S)

    # ---- transformer encoder layers (static unroll) --------------------------
    for l in range(NUM_LAYERS):
        # --- self-attention block (pre-norm) ---
        hn = _layer_norm(x, ln1w_ref[l], ln1b_ref[l])
        # single lane-dense QKV projection: (B*S, D) @ (D, 3D)
        qkv = mm(hn, wqkv_ref[l]) + bqkv_ref[l]                        # (B*S, 3D) f32
        ctx_heads = []
        for hd in range(NUM_HEADS):                                    # static unroll; same MXU
            lo = hd * HEAD_DIM                                         # work as a head-batched
            q = qkv[:, lo:lo + HEAD_DIM]                               # einsum but no head-major
            k = qkv[:, D_MODEL + lo:D_MODEL + lo + HEAD_DIM]           # relayout/transpose.
            v = qkv[:, 2 * D_MODEL + lo:2 * D_MODEL + lo + HEAD_DIM]
            # q @ k^T without transposing k: contract last dim of both operands.
            s = jax.lax.dot_general(q.astype(bf16), k.astype(bf16),
                                    (((1,), (1,)), ((), ())),
                                    preferred_element_type=f32)        # (B*S, B*S)
            p = _softmax_rows(s + attn_bias)
            ctx_heads.append(jnp.dot(p.astype(bf16), v.astype(bf16),
                                     preferred_element_type=f32))      # (B*S, Dh)
        ctx = jnp.concatenate(ctx_heads, axis=-1)                      # (B*S, D)
        # single output projection over all heads
        x = x + mm(ctx, wo_ref[l]) + bo_ref[l]

        # --- feed-forward block (pre-norm) ---
        hn = _layer_norm(x, ln2w_ref[l], ln2b_ref[l])
        hn = _gelu(mm(hn, fc1w_ref[l]) + fc1b_ref[l])
        x = x + mm(hn, fc2w_ref[l]) + fc2b_ref[l]

    # ---- final LayerNorm -> per-batch mean pool -> classifier head -----------
    hn = _layer_norm(x, lnfw_ref[...], lnfb_ref[...])                  # (B*S, D)
    pooled = jnp.dot(pool_ref[...], hn.astype(bf16),
                     preferred_element_type=f32)                       # (8, D), rows >= B zero
    z = jnp.maximum(mm(pooled, cls1w_ref[...]) + cls1b_ref[...], 0.0)  # Linear -> ReLU
    # Dropout(p=0.3) is identity at inference time.
    o_ref[...] = mm(z, cls2w_ref[...]) + cls2b_ref[...]                # (8, 128) lane-dense store


# ----------------------------- wrapper-side constant / weight prep -------------
def _prep_conv1_taps(input_features):
    # (B, n_mels, T) NCW -> channels-last, then three pre-shifted, zero-padded taps.
    xt = jnp.transpose(input_features, (0, 2, 1))                      # (B, T, C)
    zero = jnp.zeros((B, 1, N_MELS), f32)
    x_prev = jnp.concatenate([zero, xt[:, :-1, :]], axis=1)            # x[t-1]
    x_next = jnp.concatenate([xt[:, 1:, :], zero], axis=1)             # x[t+1]
    taps = jnp.stack([x_prev, xt, x_next], axis=0)                     # (3, B, T, C)
    return taps.reshape(3, BT, N_MELS).astype(bf16)


def _conv2_tap_selects():
    # S_k[r, c] = 1 iff output row r (batch-merged over SEQ) and input row c
    # (batch-merged over T_IN) are in the same batch element and
    # c == 2*(r % SEQ) + k - 1 (out-of-range taps give all-zero rows == zero pad).
    r = jnp.arange(BS)[:, None]
    c = jnp.arange(BT)[None, :]
    same_batch = (r // SEQ) == (c // T_IN)
    mats = []
    for k in range(3):
        tgt = 2 * (r % SEQ) + (k - 1)
        hit = same_batch & ((c % T_IN) == tgt) & (tgt >= 0) & (tgt < T_IN)
        mats.append(hit.astype(bf16))
    return jnp.stack(mats, axis=0)                                     # (3, B*S, B*T)


def _attn_bias():
    # additive bias: 0 within the same batch element, -1e30 across batch elements.
    r = jnp.arange(BS)[:, None]
    c = jnp.arange(BS)[None, :]
    return jnp.where((r // SEQ) == (c // SEQ), 0.0, MASK_BIAS).astype(f32)


def _pool_matrix():
    # (8, B*S) mean-pool matrix; rows >= B are zero (sublane padding of the output).
    r = jnp.arange(OUT_ROWS)[:, None]
    c = jnp.arange(BS)[None, :]
    return jnp.where((c // SEQ) == r, 1.0 / SEQ, 0.0).astype(bf16)


def _prep_layer(lp):
    # Fold the q scaling into Wq/bq; pack Q/K/V into a single (D, 3D) weight.
    wqkv = jnp.concatenate([lp['wq'] * ATTN_SCALE, lp['wk'], lp['wv']],
                           axis=1).astype(bf16)                        # (D, 3D)
    bqkv = jnp.concatenate([lp['bq'] * ATTN_SCALE,
                            jnp.zeros_like(lp['bq']),                  # k_proj has no bias
                            lp['bv']], axis=1)                         # (1, 3D) f32
    return dict(
        ln1_w=lp['ln1_w'], ln1_b=lp['ln1_b'],
        wqkv=wqkv, bqkv=bqkv,
        wo=lp['wo'].astype(bf16), bo=lp['bo'],
        ln2_w=lp['ln2_w'], ln2_b=lp['ln2_b'],
        fc1_w=lp['fc1_w'].astype(bf16), fc1_b=lp['fc1_b'],
        fc2_w=lp['fc2_w'].astype(bf16), fc2_b=lp['fc2_b'],
    )


@jax.jit
def whisper_deepfake_classifier(params, input_features):
    xs = _prep_conv1_taps(input_features)
    layers = [_prep_layer(lp) for lp in params['layers']]

    def stack(name):
        return jnp.stack([lay[name] for lay in layers], axis=0)

    cls2w_pad = jnp.zeros((CLS_HIDDEN, OUT_LANES), f32)
    cls2w_pad = cls2w_pad.at[:, :NUM_CLASSES].set(params['cls2_w']).astype(bf16)
    cls2b_pad = jnp.zeros((1, OUT_LANES), f32).at[:, :NUM_CLASSES].set(params['cls2_b'])

    args = [
        xs,
        params['conv1_w'].astype(bf16), params['conv1_b'],
        _conv2_tap_selects(), params['conv2_w'].astype(bf16), params['conv2_b'],
        jnp.tile(params['pos'], (B, 1)),                               # (B*S, D) pos-emb
        _attn_bias(),
        stack('ln1_w'), stack('ln1_b'),
        stack('wqkv'), stack('bqkv'),
        stack('wo'), stack('bo'),
        stack('ln2_w'), stack('ln2_b'),
        stack('fc1_w'), stack('fc1_b'),
        stack('fc2_w'), stack('fc2_b'),
        params['lnf_w'], params['lnf_b'],
        _pool_matrix(),
        params['cls1_w'].astype(bf16), params['cls1_b'],
        cls2w_pad, cls2b_pad,
    ]
    # Single fused, grid-less kernel: every operand is a whole-array VMEM block
    # (<1 MiB total).  See TODO at top of file for the v7x layer-streaming grid.
    out = pl.pallas_call(
        whisper_fused_kernel,
        out_shape=jax.ShapeDtypeStruct((OUT_ROWS, OUT_LANES), f32),
        compiler_params=pltpu.CompilerParams(vmem_limit_bytes=32 * 1024 * 1024),
    )(*args)
    return out[:B, :NUM_CLASSES]


# ----------------------------- deterministic synthetic parameters --------------
def init_params(key):
    # TODO(synk): the real module loads pretrained 'openai/whisper-medium' weights;
    # here parameters are initialized deterministically in-script.  Synthetic
    # weights use (in, out) / (k, in, out) orientation; real PyTorch checkpoints
    # ((out, in) / (out_ch, in_ch, k)) would need wrapper-side transposes.
    keys = iter(jax.random.split(key, 64))

    def nrm(shape, scale=0.02):
        return scale * jax.random.normal(next(keys), shape, dtype=f32)

    p = {
        'conv1_w': nrm((3, N_MELS, D_MODEL)), 'conv1_b': nrm((1, D_MODEL)),
        'conv2_w': nrm((3, D_MODEL, D_MODEL)), 'conv2_b': nrm((1, D_MODEL)),
        'pos': nrm((SEQ, D_MODEL)),
        'lnf_w': jnp.ones((1, D_MODEL), f32), 'lnf_b': jnp.zeros((1, D_MODEL), f32),
        'cls1_w': nrm((D_MODEL, CLS_HIDDEN)), 'cls1_b': nrm((1, CLS_HIDDEN)),
        'cls2_w': nrm((CLS_HIDDEN, NUM_CLASSES)), 'cls2_b': nrm((1, NUM_CLASSES)),
    }
    layers = []
    for _ in range(NUM_LAYERS):
        layers.append(dict(
            ln1_w=jnp.ones((1, D_MODEL), f32), ln1_b=jnp.zeros((1, D_MODEL), f32),
            wq=nrm((D_MODEL, D_MODEL)), bq=nrm((1, D_MODEL)),
            wk=nrm((D_MODEL, D_MODEL)),                                # k_proj: no bias
            wv=nrm((D_MODEL, D_MODEL)), bv=nrm((1, D_MODEL)),
            wo=nrm((D_MODEL, D_MODEL)), bo=nrm((1, D_MODEL)),
            ln2_w=jnp.ones((1, D_MODEL), f32), ln2_b=jnp.zeros((1, D_MODEL), f32),
            fc1_w=nrm((D_MODEL, FFN_DIM)), fc1_b=nrm((1, FFN_DIM)),
            fc2_w=nrm((FFN_DIM, D_MODEL)), fc2_b=nrm((1, D_MODEL)),
        ))
    p['layers'] = layers
    return p


if __name__ == "__main__":
    key = jax.random.PRNGKey(0)
    pkey, xkey = jax.random.split(key)
    params = init_params(pkey)
    input_features = jax.random.normal(xkey, (B, N_MELS, T_IN), dtype=f32)
    logits = whisper_deepfake_classifier(params, input_features)
    jax.block_until_ready(logits)
    assert logits.shape == (B, NUM_CLASSES) and logits.dtype == f32
    print("KERNEL_OK")
</pallas_src>

<mosaic_0001>
module attributes {stable_mosaic.version = 11 : i64} {
  func.func @whisper_fused_kernel(%arg0: memref<3x32x8xbf16, #tpu.memory_space<vmem>>, %arg1: memref<3x8x32xbf16, #tpu.memory_space<vmem>>, %arg2: memref<1x32xf32, #tpu.memory_space<vmem>>, %arg3: memref<3x16x32xbf16, #tpu.memory_space<vmem>>, %arg4: memref<3x32x32xbf16, #tpu.memory_space<vmem>>, %arg5: memref<1x32xf32, #tpu.memory_space<vmem>>, %arg6: memref<16x32xf32, #tpu.memory_space<vmem>>, %arg7: memref<16x16xf32, #tpu.memory_space<vmem>>, %arg8: memref<2x1x32xf32, #tpu.memory_space<vmem>>, %arg9: memref<2x1x32xf32, #tpu.memory_space<vmem>>, %arg10: memref<2x32x96xbf16, #tpu.memory_space<vmem>>, %arg11: memref<2x1x96xf32, #tpu.memory_space<vmem>>, %arg12: memref<2x32x32xbf16, #tpu.memory_space<vmem>>, %arg13: memref<2x1x32xf32, #tpu.memory_space<vmem>>, %arg14: memref<2x1x32xf32, #tpu.memory_space<vmem>>, %arg15: memref<2x1x32xf32, #tpu.memory_space<vmem>>, %arg16: memref<2x32x128xbf16, #tpu.memory_space<vmem>>, %arg17: memref<2x1x128xf32, #tpu.memory_space<vmem>>, %arg18: memref<2x128x32xbf16, #tpu.memory_space<vmem>>, %arg19: memref<2x1x32xf32, #tpu.memory_space<vmem>>, %arg20: memref<1x32xf32, #tpu.memory_space<vmem>>, %arg21: memref<1x32xf32, #tpu.memory_space<vmem>>, %arg22: memref<8x16xbf16, #tpu.memory_space<vmem>>, %arg23: memref<32x256xbf16, #tpu.memory_space<vmem>>, %arg24: memref<1x256xf32, #tpu.memory_space<vmem>>, %arg25: memref<256x128xbf16, #tpu.memory_space<vmem>>, %arg26: memref<1x128xf32, #tpu.memory_space<vmem>>, %arg27: memref<8x128xf32, #tpu.memory_space<vmem>>) attributes {dimension_semantics = [], scalar_prefetch = 0 : i64, scratch_operands = 0 : i64, tpu.core_type = #tpu.core_type<tc>} {
    %c0 = arith.constant 0 : index
    %c0_0 = arith.constant 0 : index
    %c0_1 = arith.constant 0 : index
    %0 = vector.load %arg0[%c0, %c0_0, %c0_1] : memref<3x32x8xbf16, #tpu.memory_space<vmem>>, vector<1x32x8xbf16>
    %1 = vector.shape_cast %0 : vector<1x32x8xbf16> to vector<32x8xbf16>
    %c0_2 = arith.constant 0 : index
    %c0_3 = arith.constant 0 : index
    %c0_4 = arith.constant 0 : index
    %2 = vector.load %arg1[%c0_2, %c0_3, %c0_4] : memref<3x8x32xbf16, #tpu.memory_space<vmem>>, vector<1x8x32xbf16>
    %3 = vector.shape_cast %2 : vector<1x8x32xbf16> to vector<8x32xbf16>
    %cst = arith.constant dense<0.000000e+00> : vector<32x32xf32>
    %4 = tpu.matmul %1, %3, %cst {dimension_numbers = #tpu.dot_dimension_numbers<[1], [0], [0], [1], [0, 0, 1, 1], [], []>} : vector<32x8xbf16>, vector<8x32xbf16>, vector<32x32xf32> -> vector<32x32xf32>
    %c1 = arith.constant 1 : index
    %c0_5 = arith.constant 0 : index
    %c0_6 = arith.constant 0 : index
    %5 = vector.load %arg0[%c1, %c0_5, %c0_6] : memref<3x32x8xbf16, #tpu.memory_space<vmem>>, vector<1x32x8xbf16>
    %6 = vector.shape_cast %5 : vector<1x32x8xbf16> to vector<32x8xbf16>
    %c1_7 = arith.constant 1 : index
    %c0_8 = arith.constant 0 : index
    %c0_9 = arith.constant 0 : index
    %7 = vector.load %arg1[%c1_7, %c0_8, %c0_9] : memref<3x8x32xbf16, #tpu.memory_space<vmem>>, vector<1x8x32xbf16>
    %8 = vector.shape_cast %7 : vector<1x8x32xbf16> to vector<8x32xbf16>
    %cst_10 = arith.constant dense<0.000000e+00> : vector<32x32xf32>
    %9 = tpu.matmul %6, %8, %cst_10 {dimension_numbers = #tpu.dot_dimension_numbers<[1], [0], [0], [1], [0, 0, 1, 1], [], []>} : vector<32x8xbf16>, vector<8x32xbf16>, vector<32x32xf32> -> vector<32x32xf32>
    %10 = arith.addf %4, %9 : vector<32x32xf32>
    %c2 = arith.constant 2 : index
    %c0_11 = arith.constant 0 : index
    %c0_12 = arith.constant 0 : index
    %11 = vector.load %arg0[%c2, %c0_11, %c0_12] : memref<3x32x8xbf16, #tpu.memory_space<vmem>>, vector<1x32x8xbf16>
    %12 = vector.shape_cast %11 : vector<1x32x8xbf16> to vector<32x8xbf16>
    %c2_13 = arith.constant 2 : index
    %c0_14 = arith.constant 0 : index
    %c0_15 = arith.constant 0 : index
    %13 = vector.load %arg1[%c2_13, %c0_14, %c0_15] : memref<3x8x32xbf16, #tpu.memory_space<vmem>>, vector<1x8x32xbf16>
    %14 = vector.shape_cast %13 : vector<1x8x32xbf16> to vector<8x32xbf16>
    %cst_16 = arith.constant dense<0.000000e+00> : vector<32x32xf32>
    %15 = tpu.matmul %12, %14, %cst_16 {dimension_numbers = #tpu.dot_dimension_numbers<[1], [0], [0], [1], [0, 0, 1, 1], [], []>} : vector<32x8xbf16>, vector<8x32xbf16>, vector<32x32xf32> -> vector<32x32xf32>
    %16 = arith.addf %10, %15 : vector<32x32xf32>
    %c0_17 = arith.constant 0 : index
    %c0_18 = arith.constant 0 : index
    %17 = vector.load %arg2[%c0_17, %c0_18] : memref<1x32xf32, #tpu.memory_space<vmem>>, vector<1x32xf32>
    %18 = vector.broadcast %17 : vector<1x32xf32> to vector<32x32xf32>
    %19 = arith.addf %16, %18 : vector<32x32xf32>
    %20 = arith.mulf %19, %19 : vector<32x32xf32>
    %21 = arith.mulf %19, %20 : vector<32x32xf32>
    %cst_19 = arith.constant 4.471500e-02 : f32
    %22 = vector.broadcast %cst_19 : f32 to vector<32x32xf32>
    %23 = arith.mulf %22, %21 : vector<32x32xf32>
    %24 = arith.addf %19, %23 : vector<32x32xf32>
    %cst_20 = arith.constant 0.797884583 : f32
    %25 = vector.broadcast %cst_20 : f32 to vector<32x32xf32>
    %26 = arith.mulf %25, %24 : vector<32x32xf32>
    %27 = math.tanh %26 : vector<32x32xf32>
    %cst_21 = arith.constant 1.000000e+00 : f32
    %28 = vector.broadcast %cst_21 : f32 to vector<32x32xf32>
    %29 = arith.addf %28, %27 : vector<32x32xf32>
    %cst_22 = arith.constant 5.000000e-01 : f32
    %30 = vector.broadcast %cst_22 : f32 to vector<32x32xf32>
    %31 = arith.mulf %30, %29 : vector<32x32xf32>
    %32 = arith.mulf %19, %31 : vector<32x32xf32>
    %c0_23 = arith.constant 0 : index
    %c0_24 = arith.constant 0 : index
    %33 = vector.load %arg5[%c0_23, %c0_24] : memref<1x32xf32, #tpu.memory_space<vmem>>, vector<1x32xf32>
    %c0_25 = arith.constant 0 : index
    %c0_26 = arith.constant 0 : index
    %c0_27 = arith.constant 0 : index
    %34 = vector.load %arg3[%c0_25, %c0_26, %c0_27] : memref<3x16x32xbf16, #tpu.memory_space<vmem>>, vector<1x16x32xbf16>
    %35 = vector.shape_cast %34 : vector<1x16x32xbf16> to vector<16x32xbf16>
    %36 = arith.truncf %32 : vector<32x32xf32> to vector<32x32xbf16>
    %cst_28 = arith.constant dense<0.000000e+00> : vector<16x32xf32>
    %37 = tpu.matmul %35, %36, %cst_28 {dimension_numbers = #tpu.dot_dimension_numbers<[1], [0], [0], [1], [0, 0, 1, 1], [], []>} : vector<16x32xbf16>, vector<32x32xbf16>, vector<16x32xf32> -> vector<16x32xf32>
    %c0_29 = arith.constant 0 : index
    %c0_30 = arith.constant 0 : index
    %c0_31 = arith.constant 0 : index
    %38 = vector.load %arg4[%c0_29, %c0_30, %c0_31] : memref<3x32x32xbf16, #tpu.memory_space<vmem>>, vector<1x32x32xbf16>
    %39 = vector.shape_cast %38 : vector<1x32x32xbf16> to vector<32x32xbf16>
    %40 = arith.truncf %37 : vector<16x32xf32> to vector<16x32xbf16>
    %cst_32 = arith.constant dense<0.000000e+00> : vector<16x32xf32>
    %41 = tpu.matmul %40, %39, %cst_32 {dimension_numbers = #tpu.dot_dimension_numbers<[1], [0], [0], [1], [0, 0, 1, 1], [], []>} : vector<16x32xbf16>, vector<32x32xbf16>, vector<16x32xf32> -> vector<16x32xf32>
    %42 = vector.broadcast %33 : vector<1x32xf32> to vector<16x32xf32>
    %43 = arith.addf %42, %41 : vector<16x32xf32>
    %c1_33 = arith.constant 1 : index
    %c0_34 = arith.constant 0 : index
    %c0_35 = arith.constant 0 : index
    %44 = vector.load %arg3[%c1_33, %c0_34, %c0_35] : memref<3x16x32xbf16, #tpu.memory_space<vmem>>, vector<1x16x32xbf16>
    %45 = vector.shape_cast %44 : vector<1x16x32xbf16> to vector<16x32xbf16>
    %46 = arith.truncf %32 : vector<32x32xf32> to vector<32x32xbf16>
    %cst_36 = arith.constant dense<0.000000e+00> : vector<16x32xf32>
    %47 = tpu.matmul %45, %46, %cst_36 {dimension_numbers = #tpu.dot_dimension_numbers<[1], [0], [0], [1], [0, 0, 1, 1], [], []>} : vector<16x32xbf16>, vector<32x32xbf16>, vector<16x32xf32> -> vector<16x32xf32>
    %c1_37 = arith.constant 1 : index
    %c0_38 = arith.constant 0 : index
    %c0_39 = arith.constant 0 : index
    %48 = vector.load %arg4[%c1_37, %c0_38, %c0_39] : memref<3x32x32xbf16, #tpu.memory_space<vmem>>, vector<1x32x32xbf16>
    %49 = vector.shape_cast %48 : vector<1x32x32xbf16> to vector<32x32xbf16>
    %50 = arith.truncf %47 : vector<16x32xf32> to vector<16x32xbf16>
    %cst_40 = arith.constant dense<0.000000e+00> : vector<16x32xf32>
    %51 = tpu.matmul %50, %49, %cst_40 {dimension_numbers = #tpu.dot_dimension_numbers<[1], [0], [0], [1], [0, 0, 1, 1], [], []>} : vector<16x32xbf16>, vector<32x32xbf16>, vector<16x32xf32> -> vector<16x32xf32>
    %52 = arith.addf %43, %51 : vector<16x32xf32>
    %c2_41 = arith.constant 2 : index
    %c0_42 = arith.constant 0 : index
    %c0_43 = arith.constant 0 : index
    %53 = vector.load %arg3[%c2_41, %c0_42, %c0_43] : memref<3x16x32xbf16, #tpu.memory_space<vmem>>, vector<1x16x32xbf16>
    %54 = vector.shape_cast %53 : vector<1x16x32xbf16> to vector<16x32xbf16>
    %55 = arith.truncf %32 : vector<32x32xf32> to vector<32x32xbf16>
    %cst_44 = arith.constant dense<0.000000e+00> : vector<16x32xf32>
    %56 = tpu.matmul %54, %55, %cst_44 {dimension_numbers = #tpu.dot_dimension_numbers<[1], [0], [0], [1], [0, 0, 1, 1], [], []>} : vector<16x32xbf16>, vector<32x32xbf16>, vector<16x32xf32> -> vector<16x32xf32>
    %c2_45 = arith.constant 2 : index
    %c0_46 = arith.constant 0 : index
    %c0_47 = arith.constant 0 : index
    %57 = vector.load %arg4[%c2_45, %c0_46, %c0_47] : memref<3x32x32xbf16, #tpu.memory_space<vmem>>, vector<1x32x32xbf16>
    %58 = vector.shape_cast %57 : vector<1x32x32xbf16> to vector<32x32xbf16>
    %59 = arith.truncf %56 : vector<16x32xf32> to vector<16x32xbf16>
    %cst_48 = arith.constant dense<0.000000e+00> : vector<16x32xf32>
    %60 = tpu.matmul %59, %58, %cst_48 {dimension_numbers = #tpu.dot_dimension_numbers<[1], [0], [0], [1], [0, 0, 1, 1], [], []>} : vector<16x32xbf16>, vector<32x32xbf16>, vector<16x32xf32> -> vector<16x32xf32>
    %61 = arith.addf %52, %60 : vector<16x32xf32>
    %62 = arith.mulf %61, %61 : vector<16x32xf32>
    %63 = arith.mulf %61, %62 : vector<16x32xf32>
    %cst_49 = arith.constant 4.471500e-02 : f32
    %64 = vector.broadcast %cst_49 : f32 to vector<16x32xf32>
    %65 = arith.mulf %64, %63 : vector<16x32xf32>
    %66 = arith.addf %61, %65 : vector<16x32xf32>
    %cst_50 = arith.constant 0.797884583 : f32
    %67 = vector.broadcast %cst_50 : f32 to vector<16x32xf32>
    %68 = arith.mulf %67, %66 : vector<16x32xf32>
    %69 = math.tanh %68 : vector<16x32xf32>
    %cst_51 = arith.constant 1.000000e+00 : f32
    %70 = vector.broadcast %cst_51 : f32 to vector<16x32xf32>
    %71 = arith.addf %70, %69 : vector<16x32xf32>
    %cst_52 = arith.constant 5.000000e-01 : f32
    %72 = vector.broadcast %cst_52 : f32 to vector<16x32xf32>
    %73 = arith.mulf %72, %71 : vector<16x32xf32>
    %74 = arith.mulf %61, %73 : vector<16x32xf32>
    %c0_53 = arith.constant 0 : index
    %c0_54 = arith.constant 0 : index
    %75 = vector.load %arg6[%c0_53, %c0_54] : memref<16x32xf32, #tpu.memory_space<vmem>>, vector<16x32xf32>
    %76 = arith.addf %74, %75 : vector<16x32xf32>
    %c0_55 = arith.constant 0 : index
    %c0_56 = arith.constant 0 : index
    %77 = vector.load %arg7[%c0_55, %c0_56] : memref<16x16xf32, #tpu.memory_space<vmem>>, vector<16x16xf32>
    %c0_57 = arith.constant 0 : index
    %c0_58 = arith.constant 0 : index
    %c0_59 = arith.constant 0 : index
    %78 = vector.load %arg8[%c0_57, %c0_58, %c0_59] : memref<2x1x32xf32, #tpu.memory_space<vmem>>, vector<1x1x32xf32>
    %79 = vector.shape_cast %78 : vector<1x1x32xf32> to vector<1x32xf32>
    %c0_60 = arith.constant 0 : index
    %c0_61 = arith.constant 0 : index
    %c0_62 = arith.constant 0 : index
    %80 = vector.load %arg9[%c0_60, %c0_61, %c0_62] : memref<2x1x32xf32, #tpu.memory_space<vmem>>, vector<1x1x32xf32>
    %81 = vector.shape_cast %80 : vector<1x1x32xf32> to vector<1x32xf32>
    %cst_63 = arith.constant dense<0.000000e+00> : vector<16xf32>
    %82 = vector.multi_reduction <add>, %76, %cst_63 [1] : vector<16x32xf32> to vector<16xf32>
    %83 = vector.shape_cast %82 : vector<16xf32> to vector<16x1xf32>
    %cst_64 = arith.constant 3.200000e+01 : f32
    %84 = vector.broadcast %cst_64 : f32 to vector<16x1xf32>
    %85 = arith.divf %83, %84 : vector<16x1xf32>
    %86 = vector.broadcast %85 : vector<16x1xf32> to vector<16x32xf32>
    %87 = arith.subf %76, %86 : vector<16x32xf32>
    %88 = arith.mulf %87, %87 : vector<16x32xf32>
    %cst_65 = arith.constant dense<0.000000e+00> : vector<16xf32>
    %89 = vector.multi_reduction <add>, %88, %cst_65 [1] : vector<16x32xf32> to vector<16xf32>
    %90 = vector.shape_cast %89 : vector<16xf32> to vector<16x1xf32>
    %cst_66 = arith.constant 3.200000e+01 : f32
    %91 = vector.broadcast %cst_66 : f32 to vector<16x1xf32>
    %92 = arith.divf %90, %91 : vector<16x1xf32>
    %93 = vector.broadcast %85 : vector<16x1xf32> to vector<16x32xf32>
    %94 = arith.subf %76, %93 : vector<16x32xf32>
    %cst_67 = arith.constant 9.99999974E-6 : f32
    %95 = vector.broadcast %cst_67 : f32 to vector<16x1xf32>
    %96 = arith.addf %92, %95 : vector<16x1xf32>
    %97 = math.rsqrt %96 : vector<16x1xf32>
    %98 = vector.broadcast %97 : vector<16x1xf32> to vector<16x32xf32>
    %99 = arith.mulf %94, %98 : vector<16x32xf32>
    %100 = vector.broadcast %79 : vector<1x32xf32> to vector<16x32xf32>
    %101 = arith.mulf %99, %100 : vector<16x32xf32>
    %102 = vector.broadcast %81 : vector<1x32xf32> to vector<16x32xf32>
    %103 = arith.addf %101, %102 : vector<16x32xf32>
    %c0_68 = arith.constant 0 : index
    %c0_69 = arith.constant 0 : index
    %c0_70 = arith.constant 0 : index
    %104 = vector.load %arg10[%c0_68, %c0_69, %c0_70] : memref<2x32x96xbf16, #tpu.memory_space<vmem>>, vector<1x32x96xbf16>
    %105 = vector.shape_cast %104 : vector<1x32x96xbf16> to vector<32x96xbf16>
    %106 = arith.truncf %103 : vector<16x32xf32> to vector<16x32xbf16>
    %cst_71 = arith.constant dense<0.000000e+00> : vector<16x96xf32>
    %107 = tpu.matmul %106, %105, %cst_71 {dimension_numbers = #tpu.dot_dimension_numbers<[1], [0], [0], [1], [0, 0, 1, 1], [], []>} : vector<16x32xbf16>, vector<32x96xbf16>, vector<16x96xf32> -> vector<16x96xf32>
    %c0_72 = arith.constant 0 : index
    %c0_73 = arith.constant 0 : index
    %c0_74 = arith.constant 0 : index
    %108 = vector.load %arg11[%c0_72, %c0_73, %c0_74] : memref<2x1x96xf32, #tpu.memory_space<vmem>>, vector<1x1x96xf32>
    %109 = vector.shape_cast %108 : vector<1x1x96xf32> to vector<1x96xf32>
    %110 = vector.broadcast %109 : vector<1x96xf32> to vector<16x96xf32>
    %111 = arith.addf %107, %110 : vector<16x96xf32>
    %112 = vector.extract_strided_slice %111 {offsets = [0, 0], sizes = [16, 8], strides = [1, 1]} : vector<16x96xf32> to vector<16x8xf32>
    %113 = vector.extract_strided_slice %111 {offsets = [0, 32], sizes = [16, 8], strides = [1, 1]} : vector<16x96xf32> to vector<16x8xf32>
    %114 = vector.extract_strided_slice %111 {offsets = [0, 64], sizes = [16, 8], strides = [1, 1]} : vector<16x96xf32> to vector<16x8xf32>
    %115 = arith.truncf %112 : vector<16x8xf32> to vector<16x8xbf16>
    %116 = arith.truncf %113 : vector<16x8xf32> to vector<16x8xbf16>
    %cst_75 = arith.constant dense<0.000000e+00> : vector<16x16xf32>
    %117 = tpu.matmul %115, %116, %cst_75 {dimension_numbers = #tpu.dot_dimension_numbers<[1], [1], [0], [0], [0, 0, 1, 0], [], []>} : vector<16x8xbf16>, vector<16x8xbf16>, vector<16x16xf32> -> vector<16x16xf32>
    %118 = arith.addf %117, %77 : vector<16x16xf32>
    %cst_76 = arith.constant dense<0xFF800000> : vector<16xf32>
    %119 = vector.multi_reduction <maximumf>, %118, %cst_76 [1] : vector<16x16xf32> to vector<16xf32>
    %120 = vector.shape_cast %119 : vector<16xf32> to vector<16x1xf32>
    %121 = vector.broadcast %120 : vector<16x1xf32> to vector<16x16xf32>
    %122 = arith.subf %118, %121 : vector<16x16xf32>
    %123 = math.exp %122 : vector<16x16xf32>
    %cst_77 = arith.constant dense<0.000000e+00> : vector<16xf32>
    %124 = vector.multi_reduction <add>, %123, %cst_77 [1] : vector<16x16xf32> to vector<16xf32>
    %125 = vector.shape_cast %124 : vector<16xf32> to vector<16x1xf32>
    %126 = tpu.reciprocal %125 {approx = true} : vector<16x1xf32> -> vector<16x1xf32>
    %127 = vector.broadcast %126 : vector<16x1xf32> to vector<16x16xf32>
    %128 = arith.mulf %123, %127 : vector<16x16xf32>
    %129 = arith.truncf %128 : vector<16x16xf32> to vector<16x16xbf16>
    %130 = arith.truncf %114 : vector<16x8xf32> to vector<16x8xbf16>
    %cst_78 = arith.constant dense<0.000000e+00> : vector<16x8xf32>
    %131 = tpu.matmul %129, %130, %cst_78 {dimension_numbers = #tpu.dot_dimension_numbers<[1], [0], [0], [1], [0, 0, 1, 1], [], []>} : vector<16x16xbf16>, vector<16x8xbf16>, vector<16x8xf32> -> vector<16x8xf32>
    %132 = vector.extract_strided_slice %111 {offsets = [0, 8], sizes = [16, 8], strides = [1, 1]} : vector<16x96xf32> to vector<16x8xf32>
    %133 = vector.extract_strided_slice %111 {offsets = [0, 40], sizes = [16, 8], strides = [1, 1]} : vector<16x96xf32> to vector<16x8xf32>
    %134 = vector.extract_strided_slice %111 {offsets = [0, 72], sizes = [16, 8], strides = [1, 1]} : vector<16x96xf32> to vector<16x8xf32>
    %135 = arith.truncf %132 : vector<16x8xf32> to vector<16x8xbf16>
    %136 = arith.truncf %133 : vector<16x8xf32> to vector<16x8xbf16>
    %cst_79 = arith.constant dense<0.000000e+00> : vector<16x16xf32>
    %137 = tpu.matmul %135, %136, %cst_79 {dimension_numbers = #tpu.dot_dimension_numbers<[1], [1], [0], [0], [0, 0, 1, 0], [], []>} : vector<16x8xbf16>, vector<16x8xbf16>, vector<16x16xf32> -> vector<16x16xf32>
    %138 = arith.addf %137, %77 : vector<16x16xf32>
    %cst_80 = arith.constant dense<0xFF800000> : vector<16xf32>
    %139 = vector.multi_reduction <maximumf>, %138, %cst_80 [1] : vector<16x16xf32> to vector<16xf32>
    %140 = vector.shape_cast %139 : vector<16xf32> to vector<16x1xf32>
    %141 = vector.broadcast %140 : vector<16x1xf32> to vector<16x16xf32>
    %142 = arith.subf %138, %141 : vector<16x16xf32>
    %143 = math.exp %142 : vector<16x16xf32>
    %cst_81 = arith.constant dense<0.000000e+00> : vector<16xf32>
    %144 = vector.multi_reduction <add>, %143, %cst_81 [1] : vector<16x16xf32> to vector<16xf32>
    %145 = vector.shape_cast %144 : vector<16xf32> to vector<16x1xf32>
    %146 = tpu.reciprocal %145 {approx = true} : vector<16x1xf32> -> vector<16x1xf32>
    %147 = vector.broadcast %146 : vector<16x1xf32> to vector<16x16xf32>
    %148 = arith.mulf %143, %147 : vector<16x16xf32>
    %149 = arith.truncf %148 : vector<16x16xf32> to vector<16x16xbf16>
    %150 = arith.truncf %134 : vector<16x8xf32> to vector<16x8xbf16>
    %cst_82 = arith.constant dense<0.000000e+00> : vector<16x8xf32>
    %151 = tpu.matmul %149, %150, %cst_82 {dimension_numbers = #tpu.dot_dimension_numbers<[1], [0], [0], [1], [0, 0, 1, 1], [], []>} : vector<16x16xbf16>, vector<16x8xbf16>, vector<16x8xf32> -> vector<16x8xf32>
    %152 = vector.extract_strided_slice %111 {offsets = [0, 16], sizes = [16, 8], strides = [1, 1]} : vector<16x96xf32> to vector<16x8xf32>
    %153 = vector.extract_strided_slice %111 {offsets = [0, 48], sizes = [16, 8], strides = [1, 1]} : vector<16x96xf32> to vector<16x8xf32>
    %154 = vector.extract_strided_slice %111 {offsets = [0, 80], sizes = [16, 8], strides = [1, 1]} : vector<16x96xf32> to vector<16x8xf32>
    %155 = arith.truncf %152 : vector<16x8xf32> to vector<16x8xbf16>
    %156 = arith.truncf %153 : vector<16x8xf32> to vector<16x8xbf16>
    %cst_83 = arith.constant dense<0.000000e+00> : vector<16x16xf32>
    %157 = tpu.matmul %155, %156, %cst_83 {dimension_numbers = #tpu.dot_dimension_numbers<[1], [1], [0], [0], [0, 0, 1, 0], [], []>} : vector<16x8xbf16>, vector<16x8xbf16>, vector<16x16xf32> -> vector<16x16xf32>
    %158 = arith.addf %157, %77 : vector<16x16xf32>
    %cst_84 = arith.constant dense<0xFF800000> : vector<16xf32>
    %159 = vector.multi_reduction <maximumf>, %158, %cst_84 [1] : vector<16x16xf32> to vector<16xf32>
    %160 = vector.shape_cast %159 : vector<16xf32> to vector<16x1xf32>
    %161 = vector.broadcast %160 : vector<16x1xf32> to vector<16x16xf32>
    %162 = arith.subf %158, %161 : vector<16x16xf32>
    %163 = math.exp %162 : vector<16x16xf32>
    %cst_85 = arith.constant dense<0.000000e+00> : vector<16xf32>
    %164 = vector.multi_reduction <add>, %163, %cst_85 [1] : vector<16x16xf32> to vector<16xf32>
    %165 = vector.shape_cast %164 : vector<16xf32> to vector<16x1xf32>
    %166 = tpu.reciprocal %165 {approx = true} : vector<16x1xf32> -> vector<16x1xf32>
    %167 = vector.broadcast %166 : vector<16x1xf32> to vector<16x16xf32>
    %168 = arith.mulf %163, %167 : vector<16x16xf32>
    %169 = arith.truncf %168 : vector<16x16xf32> to vector<16x16xbf16>
    %170 = arith.truncf %154 : vector<16x8xf32> to vector<16x8xbf16>
    %cst_86 = arith.constant dense<0.000000e+00> : vector<16x8xf32>
    %171 = tpu.matmul %169, %170, %cst_86 {dimension_numbers = #tpu.dot_dimension_numbers<[1], [0], [0], [1], [0, 0, 1, 1], [], []>} : vector<16x16xbf16>, vector<16x8xbf16>, vector<16x8xf32> -> vector<16x8xf32>
    %172 = vector.extract_strided_slice %111 {offsets = [0, 24], sizes = [16, 8], strides = [1, 1]} : vector<16x96xf32> to vector<16x8xf32>
    %173 = vector.extract_strided_slice %111 {offsets = [0, 56], sizes = [16, 8], strides = [1, 1]} : vector<16x96xf32> to vector<16x8xf32>
    %174 = vector.extract_strided_slice %111 {offsets = [0, 88], sizes = [16, 8], strides = [1, 1]} : vector<16x96xf32> to vector<16x8xf32>
    %175 = arith.truncf %172 : vector<16x8xf32> to vector<16x8xbf16>
    %176 = arith.truncf %173 : vector<16x8xf32> to vector<16x8xbf16>
    %cst_87 = arith.constant dense<0.000000e+00> : vector<16x16xf32>
    %177 = tpu.matmul %175, %176, %cst_87 {dimension_numbers = #tpu.dot_dimension_numbers<[1], [1], [0], [0], [0, 0, 1, 0], [], []>} : vector<16x8xbf16>, vector<16x8xbf16>, vector<16x16xf32> -> vector<16x16xf32>
    %178 = arith.addf %177, %77 : vector<16x16xf32>
    %cst_88 = arith.constant dense<0xFF800000> : vector<16xf32>
    %179 = vector.multi_reduction <maximumf>, %178, %cst_88 [1] : vector<16x16xf32> to vector<16xf32>
    %180 = vector.shape_cast %179 : vector<16xf32> to vector<16x1xf32>
    %181 = vector.broadcast %180 : vector<16x1xf32> to vector<16x16xf32>
    %182 = arith.subf %178, %181 : vector<16x16xf32>
    %183 = math.exp %182 : vector<16x16xf32>
    %cst_89 = arith.constant dense<0.000000e+00> : vector<16xf32>
    %184 = vector.multi_reduction <add>, %183, %cst_89 [1] : vector<16x16xf32> to vector<16xf32>
    %185 = vector.shape_cast %184 : vector<16xf32> to vector<16x1xf32>
    %186 = tpu.reciprocal %185 {approx = true} : vector<16x1xf32> -> vector<16x1xf32>
    %187 = vector.broadcast %186 : vector<16x1xf32> to vector<16x16xf32>
    %188 = arith.mulf %183, %187 : vector<16x16xf32>
    %189 = arith.truncf %188 : vector<16x16xf32> to vector<16x16xbf16>
    %190 = arith.truncf %174 : vector<16x8xf32> to vector<16x8xbf16>
    %cst_90 = arith.constant dense<0.000000e+00> : vector<16x8xf32>
    %191 = tpu.matmul %189, %190, %cst_90 {dimension_numbers = #tpu.dot_dimension_numbers<[1], [0], [0], [1], [0, 0, 1, 1], [], []>} : vector<16x16xbf16>, vector<16x8xbf16>, vector<16x8xf32> -> vector<16x8xf32>
    %192 = tpu.concatenate %131, %151, %171, %191 in 1 : vector<16x8xf32>, vector<16x8xf32>, vector<16x8xf32>, vector<16x8xf32> -> vector<16x32xf32>
    %c0_91 = arith.constant 0 : index
    %c0_92 = arith.constant 0 : index
    %c0_93 = arith.constant 0 : index
    %193 = vector.load %arg12[%c0_91, %c0_92, %c0_93] : memref<2x32x32xbf16, #tpu.memory_space<vmem>>, vector<1x32x32xbf16>
    %194 = vector.shape_cast %193 : vector<1x32x32xbf16> to vector<32x32xbf16>
    %195 = arith.truncf %192 : vector<16x32xf32> to vector<16x32xbf16>
    %cst_94 = arith.constant dense<0.000000e+00> : vector<16x32xf32>
    %196 = tpu.matmul %195, %194, %cst_94 {dimension_numbers = #tpu.dot_dimension_numbers<[1], [0], [0], [1], [0, 0, 1, 1], [], []>} : vector<16x32xbf16>, vector<32x32xbf16>, vector<16x32xf32> -> vector<16x32xf32>
    %197 = arith.addf %76, %196 : vector<16x32xf32>
    %c0_95 = arith.constant 0 : index
    %c0_96 = arith.constant 0 : index
    %c0_97 = arith.constant 0 : index
    %198 = vector.load %arg13[%c0_95, %c0_96, %c0_97] : memref<2x1x32xf32, #tpu.memory_space<vmem>>, vector<1x1x32xf32>
    %199 = vector.shape_cast %198 : vector<1x1x32xf32> to vector<1x32xf32>
    %200 = vector.broadcast %199 : vector<1x32xf32> to vector<16x32xf32>
    %201 = arith.addf %197, %200 : vector<16x32xf32>
    %c0_98 = arith.constant 0 : index
    %c0_99 = arith.constant 0 : index
    %c0_100 = arith.constant 0 : index
    %202 = vector.load %arg14[%c0_98, %c0_99, %c0_100] : memref<2x1x32xf32, #tpu.memory_space<vmem>>, vector<1x1x32xf32>
    %203 = vector.shape_cast %202 : vector<1x1x32xf32> to vector<1x32xf32>
    %c0_101 = arith.constant 0 : index
    %c0_102 = arith.constant 0 : index
    %c0_103 = arith.constant 0 : index
    %204 = vector.load %arg15[%c0_101, %c0_102, %c0_103] : memref<2x1x32xf32, #tpu.memory_space<vmem>>, vector<1x1x32xf32>
    %205 = vector.shape_cast %204 : vector<1x1x32xf32> to vector<1x32xf32>
    %cst_104 = arith.constant dense<0.000000e+00> : vector<16xf32>
    %206 = vector.multi_reduction <add>, %201, %cst_104 [1] : vector<16x32xf32> to vector<16xf32>
    %207 = vector.shape_cast %206 : vector<16xf32> to vector<16x1xf32>
    %cst_105 = arith.constant 3.200000e+01 : f32
    %208 = vector.broadcast %cst_105 : f32 to vector<16x1xf32>
    %209 = arith.divf %207, %208 : vector<16x1xf32>
    %210 = vector.broadcast %209 : vector<16x1xf32> to vector<16x32xf32>
    %211 = arith.subf %201, %210 : vector<16x32xf32>
    %212 = arith.mulf %211, %211 : vector<16x32xf32>
    %cst_106 = arith.constant dense<0.000000e+00> : vector<16xf32>
    %213 = vector.multi_reduction <add>, %212, %cst_106 [1] : vector<16x32xf32> to vector<16xf32>
    %214 = vector.shape_cast %213 : vector<16xf32> to vector<16x1xf32>
    %cst_107 = arith.constant 3.200000e+01 : f32
    %215 = vector.broadcast %cst_107 : f32 to vector<16x1xf32>
    %216 = arith.divf %214, %215 : vector<16x1xf32>
    %217 = vector.broadcast %209 : vector<16x1xf32> to vector<16x32xf32>
    %218 = arith.subf %201, %217 : vector<16x32xf32>
    %cst_108 = arith.constant 9.99999974E-6 : f32
    %219 = vector.broadcast %cst_108 : f32 to vector<16x1xf32>
    %220 = arith.addf %216, %219 : vector<16x1xf32>
    %221 = math.rsqrt %220 : vector<16x1xf32>
    %222 = vector.broadcast %221 : vector<16x1xf32> to vector<16x32xf32>
    %223 = arith.mulf %218, %222 : vector<16x32xf32>
    %224 = vector.broadcast %203 : vector<1x32xf32> to vector<16x32xf32>
    %225 = arith.mulf %223, %224 : vector<16x32xf32>
    %226 = vector.broadcast %205 : vector<1x32xf32> to vector<16x32xf32>
    %227 = arith.addf %225, %226 : vector<16x32xf32>
    %c0_109 = arith.constant 0 : index
    %c0_110 = arith.constant 0 : index
    %c0_111 = arith.constant 0 : index
    %228 = vector.load %arg16[%c0_109, %c0_110, %c0_111] : memref<2x32x128xbf16, #tpu.memory_space<vmem>>, vector<1x32x128xbf16>
    %229 = vector.shape_cast %228 : vector<1x32x128xbf16> to vector<32x128xbf16>
    %230 = arith.truncf %227 : vector<16x32xf32> to vector<16x32xbf16>
    %cst_112 = arith.constant dense<0.000000e+00> : vector<16x128xf32>
    %231 = tpu.matmul %230, %229, %cst_112 {dimension_numbers = #tpu.dot_dimension_numbers<[1], [0], [0], [1], [0, 0, 1, 1], [], []>} : vector<16x32xbf16>, vector<32x128xbf16>, vector<16x128xf32> -> vector<16x128xf32>
    %c0_113 = arith.constant 0 : index
    %c0_114 = arith.constant 0 : index
    %c0_115 = arith.constant 0 : index
    %232 = vector.load %arg17[%c0_113, %c0_114, %c0_115] : memref<2x1x128xf32, #tpu.memory_space<vmem>>, vector<1x1x128xf32>
    %233 = vector.shape_cast %232 : vector<1x1x128xf32> to vector<1x128xf32>
    %234 = vector.broadcast %233 : vector<1x128xf32> to vector<16x128xf32>
    %235 = arith.addf %231, %234 : vector<16x128xf32>
    %236 = arith.mulf %235, %235 : vector<16x128xf32>
    %237 = arith.mulf %235, %236 : vector<16x128xf32>
    %cst_116 = arith.constant 4.471500e-02 : f32
    %238 = vector.broadcast %cst_116 : f32 to vector<16x128xf32>
    %239 = arith.mulf %238, %237 : vector<16x128xf32>
    %240 = arith.addf %235, %239 : vector<16x128xf32>
    %cst_117 = arith.constant 0.797884583 : f32
    %241 = vector.broadcast %cst_117 : f32 to vector<16x128xf32>
    %242 = arith.mulf %241, %240 : vector<16x128xf32>
    %243 = math.tanh %242 : vector<16x128xf32>
    %cst_118 = arith.constant 1.000000e+00 : f32
    %244 = vector.broadcast %cst_118 : f32 to vector<16x128xf32>
    %245 = arith.addf %244, %243 : vector<16x128xf32>
    %cst_119 = arith.constant 5.000000e-01 : f32
    %246 = vector.broadcast %cst_119 : f32 to vector<16x128xf32>
    %247 = arith.mulf %246, %245 : vector<16x128xf32>
    %248 = arith.mulf %235, %247 : vector<16x128xf32>
    %c0_120 = arith.constant 0 : index
    %c0_121 = arith.constant 0 : index
    %c0_122 = arith.constant 0 : index
    %249 = vector.load %arg18[%c0_120, %c0_121, %c0_122] : memref<2x128x32xbf16, #tpu.memory_space<vmem>>, vector<1x128x32xbf16>
    %250 = vector.shape_cast %249 : vector<1x128x32xbf16> to vector<128x32xbf16>
    %251 = arith.truncf %248 : vector<16x128xf32> to vector<16x128xbf16>
    %cst_123 = arith.constant dense<0.000000e+00> : vector<16x32xf32>
    %252 = tpu.matmul %251, %250, %cst_123 {dimension_numbers = #tpu.dot_dimension_numbers<[1], [0], [0], [1], [0, 0, 1, 1], [], []>} : vector<16x128xbf16>, vector<128x32xbf16>, vector<16x32xf32> -> vector<16x32xf32>
    %253 = arith.addf %201, %252 : vector<16x32xf32>
    %c0_124 = arith.constant 0 : index
    %c0_125 = arith.constant 0 : index
    %c0_126 = arith.constant 0 : index
    %254 = vector.load %arg19[%c0_124, %c0_125, %c0_126] : memref<2x1x32xf32, #tpu.memory_space<vmem>>, vector<1x1x32xf32>
    %255 = vector.shape_cast %254 : vector<1x1x32xf32> to vector<1x32xf32>
    %256 = vector.broadcast %255 : vector<1x32xf32> to vector<16x32xf32>
    %257 = arith.addf %253, %256 : vector<16x32xf32>
    %c1_127 = arith.constant 1 : index
    %c0_128 = arith.constant 0 : index
    %c0_129 = arith.constant 0 : index
    %258 = vector.load %arg8[%c1_127, %c0_128, %c0_129] : memref<2x1x32xf32, #tpu.memory_space<vmem>>, vector<1x1x32xf32>
    %259 = vector.shape_cast %258 : vector<1x1x32xf32> to vector<1x32xf32>
    %c1_130 = arith.constant 1 : index
    %c0_131 = arith.constant 0 : index
    %c0_132 = arith.constant 0 : index
    %260 = vector.load %arg9[%c1_130, %c0_131, %c0_132] : memref<2x1x32xf32, #tpu.memory_space<vmem>>, vector<1x1x32xf32>
    %261 = vector.shape_cast %260 : vector<1x1x32xf32> to vector<1x32xf32>
    %cst_133 = arith.constant dense<0.000000e+00> : vector<16xf32>
    %262 = vector.multi_reduction <add>, %257, %cst_133 [1] : vector<16x32xf32> to vector<16xf32>
    %263 = vector.shape_cast %262 : vector<16xf32> to vector<16x1xf32>
    %cst_134 = arith.constant 3.200000e+01 : f32
    %264 = vector.broadcast %cst_134 : f32 to vector<16x1xf32>
    %265 = arith.divf %263, %264 : vector<16x1xf32>
    %266 = vector.broadcast %265 : vector<16x1xf32> to vector<16x32xf32>
    %267 = arith.subf %257, %266 : vector<16x32xf32>
    %268 = arith.mulf %267, %267 : vector<16x32xf32>
    %cst_135 = arith.constant dense<0.000000e+00> : vector<16xf32>
    %269 = vector.multi_reduction <add>, %268, %cst_135 [1] : vector<16x32xf32> to vector<16xf32>
    %270 = vector.shape_cast %269 : vector<16xf32> to vector<16x1xf32>
    %cst_136 = arith.constant 3.200000e+01 : f32
    %271 = vector.broadcast %cst_136 : f32 to vector<16x1xf32>
    %272 = arith.divf %270, %271 : vector<16x1xf32>
    %273 = vector.broadcast %265 : vector<16x1xf32> to vector<16x32xf32>
    %274 = arith.subf %257, %273 : vector<16x32xf32>
    %cst_137 = arith.constant 9.99999974E-6 : f32
    %275 = vector.broadcast %cst_137 : f32 to vector<16x1xf32>
    %276 = arith.addf %272, %275 : vector<16x1xf32>
    %277 = math.rsqrt %276 : vector<16x1xf32>
    %278 = vector.broadcast %277 : vector<16x1xf32> to vector<16x32xf32>
    %279 = arith.mulf %274, %278 : vector<16x32xf32>
    %280 = vector.broadcast %259 : vector<1x32xf32> to vector<16x32xf32>
    %281 = arith.mulf %279, %280 : vector<16x32xf32>
    %282 = vector.broadcast %261 : vector<1x32xf32> to vector<16x32xf32>
    %283 = arith.addf %281, %282 : vector<16x32xf32>
    %c1_138 = arith.constant 1 : index
    %c0_139 = arith.constant 0 : index
    %c0_140 = arith.constant 0 : index
    %284 = vector.load %arg10[%c1_138, %c0_139, %c0_140] : memref<2x32x96xbf16, #tpu.memory_space<vmem>>, vector<1x32x96xbf16>
    %285 = vector.shape_cast %284 : vector<1x32x96xbf16> to vector<32x96xbf16>
    %286 = arith.truncf %283 : vector<16x32xf32> to vector<16x32xbf16>
    %cst_141 = arith.constant dense<0.000000e+00> : vector<16x96xf32>
    %287 = tpu.matmul %286, %285, %cst_141 {dimension_numbers = #tpu.dot_dimension_numbers<[1], [0], [0], [1], [0, 0, 1, 1], [], []>} : vector<16x32xbf16>, vector<32x96xbf16>, vector<16x96xf32> -> vector<16x96xf32>
    %c1_142 = arith.constant 1 : index
    %c0_143 = arith.constant 0 : index
    %c0_144 = arith.constant 0 : index
    %288 = vector.load %arg11[%c1_142, %c0_143, %c0_144] : memref<2x1x96xf32, #tpu.memory_space<vmem>>, vector<1x1x96xf32>
    %289 = vector.shape_cast %288 : vector<1x1x96xf32> to vector<1x96xf32>
    %290 = vector.broadcast %289 : vector<1x96xf32> to vector<16x96xf32>
    %291 = arith.addf %287, %290 : vector<16x96xf32>
    %292 = vector.extract_strided_slice %291 {offsets = [0, 0], sizes = [16, 8], strides = [1, 1]} : vector<16x96xf32> to vector<16x8xf32>
    %293 = vector.extract_strided_slice %291 {offsets = [0, 32], sizes = [16, 8], strides = [1, 1]} : vector<16x96xf32> to vector<16x8xf32>
    %294 = vector.extract_strided_slice %291 {offsets = [0, 64], sizes = [16, 8], strides = [1, 1]} : vector<16x96xf32> to vector<16x8xf32>
    %295 = arith.truncf %292 : vector<16x8xf32> to vector<16x8xbf16>
    %296 = arith.truncf %293 : vector<16x8xf32> to vector<16x8xbf16>
    %cst_145 = arith.constant dense<0.000000e+00> : vector<16x16xf32>
    %297 = tpu.matmul %295, %296, %cst_145 {dimension_numbers = #tpu.dot_dimension_numbers<[1], [1], [0], [0], [0, 0, 1, 0], [], []>} : vector<16x8xbf16>, vector<16x8xbf16>, vector<16x16xf32> -> vector<16x16xf32>
    %298 = arith.addf %297, %77 : vector<16x16xf32>
    %cst_146 = arith.constant dense<0xFF800000> : vector<16xf32>
    %299 = vector.multi_reduction <maximumf>, %298, %cst_146 [1] : vector<16x16xf32> to vector<16xf32>
    %300 = vector.shape_cast %299 : vector<16xf32> to vector<16x1xf32>
    %301 = vector.broadcast %300 : vector<16x1xf32> to vector<16x16xf32>
    %302 = arith.subf %298, %301 : vector<16x16xf32>
    %303 = math.exp %302 : vector<16x16xf32>
    %cst_147 = arith.constant dense<0.000000e+00> : vector<16xf32>
    %304 = vector.multi_reduction <add>, %303, %cst_147 [1] : vector<16x16xf32> to vector<16xf32>
    %305 = vector.shape_cast %304 : vector<16xf32> to vector<16x1xf32>
    %306 = tpu.reciprocal %305 {approx = true} : vector<16x1xf32> -> vector<16x1xf32>
    %307 = vector.broadcast %306 : vector<16x1xf32> to vector<16x16xf32>
    %308 = arith.mulf %303, %307 : vector<16x16xf32>
    %309 = arith.truncf %308 : vector<16x16xf32> to vector<16x16xbf16>
    %310 = arith.truncf %294 : vector<16x8xf32> to vector<16x8xbf16>
    %cst_148 = arith.constant dense<0.000000e+00> : vector<16x8xf32>
    %311 = tpu.matmul %309, %310, %cst_148 {dimension_numbers = #tpu.dot_dimension_numbers<[1], [0], [0], [1], [0, 0, 1, 1], [], []>} : vector<16x16xbf16>, vector<16x8xbf16>, vector<16x8xf32> -> vector<16x8xf32>
    %312 = vector.extract_strided_slice %291 {offsets = [0, 8], sizes = [16, 8], strides = [1, 1]} : vector<16x96xf32> to vector<16x8xf32>
    %313 = vector.extract_strided_slice %291 {offsets = [0, 40], sizes = [16, 8], strides = [1, 1]} : vector<16x96xf32> to vector<16x8xf32>
    %314 = vector.extract_strided_slice %291 {offsets = [0, 72], sizes = [16, 8], strides = [1, 1]} : vector<16x96xf32> to vector<16x8xf32>
    %315 = arith.truncf %312 : vector<16x8xf32> to vector<16x8xbf16>
    %316 = arith.truncf %313 : vector<16x8xf32> to vector<16x8xbf16>
    %cst_149 = arith.constant dense<0.000000e+00> : vector<16x16xf32>
    %317 = tpu.matmul %315, %316, %cst_149 {dimension_numbers = #tpu.dot_dimension_numbers<[1], [1], [0], [0], [0, 0, 1, 0], [], []>} : vector<16x8xbf16>, vector<16x8xbf16>, vector<16x16xf32> -> vector<16x16xf32>
    %318 = arith.addf %317, %77 : vector<16x16xf32>
    %cst_150 = arith.constant dense<0xFF800000> : vector<16xf32>
    %319 = vector.multi_reduction <maximumf>, %318, %cst_150 [1] : vector<16x16xf32> to vector<16xf32>
    %320 = vector.shape_cast %319 : vector<16xf32> to vector<16x1xf32>
    %321 = vector.broadcast %320 : vector<16x1xf32> to vector<16x16xf32>
    %322 = arith.subf %318, %321 : vector<16x16xf32>
    %323 = math.exp %322 : vector<16x16xf32>
    %cst_151 = arith.constant dense<0.000000e+00> : vector<16xf32>
    %324 = vector.multi_reduction <add>, %323, %cst_151 [1] : vector<16x16xf32> to vector<16xf32>
    %325 = vector.shape_cast %324 : vector<16xf32> to vector<16x1xf32>
    %326 = tpu.reciprocal %325 {approx = true} : vector<16x1xf32> -> vector<16x1xf32>
    %327 = vector.broadcast %326 : vector<16x1xf32> to vector<16x16xf32>
    %328 = arith.mulf %323, %327 : vector<16x16xf32>
    %329 = arith.truncf %328 : vector<16x16xf32> to vector<16x16xbf16>
    %330 = arith.truncf %314 : vector<16x8xf32> to vector<16x8xbf16>
    %cst_152 = arith.constant dense<0.000000e+00> : vector<16x8xf32>
    %331 = tpu.matmul %329, %330, %cst_152 {dimension_numbers = #tpu.dot_dimension_numbers<[1], [0], [0], [1], [0, 0, 1, 1], [], []>} : vector<16x16xbf16>, vector<16x8xbf16>, vector<16x8xf32> -> vector<16x8xf32>
    %332 = vector.extract_strided_slice %291 {offsets = [0, 16], sizes = [16, 8], strides = [1, 1]} : vector<16x96xf32> to vector<16x8xf32>
    %333 = vector.extract_strided_slice %291 {offsets = [0, 48], sizes = [16, 8], strides = [1, 1]} : vector<16x96xf32> to vector<16x8xf32>
    %334 = vector.extract_strided_slice %291 {offsets = [0, 80], sizes = [16, 8], strides = [1, 1]} : vector<16x96xf32> to vector<16x8xf32>
    %335 = arith.truncf %332 : vector<16x8xf32> to vector<16x8xbf16>
    %336 = arith.truncf %333 : vector<16x8xf32> to vector<16x8xbf16>
    %cst_153 = arith.constant dense<0.000000e+00> : vector<16x16xf32>
    %337 = tpu.matmul %335, %336, %cst_153 {dimension_numbers = #tpu.dot_dimension_numbers<[1], [1], [0], [0], [0, 0, 1, 0], [], []>} : vector<16x8xbf16>, vector<16x8xbf16>, vector<16x16xf32> -> vector<16x16xf32>
    %338 = arith.addf %337, %77 : vector<16x16xf32>
    %cst_154 = arith.constant dense<0xFF800000> : vector<16xf32>
    %339 = vector.multi_reduction <maximumf>, %338, %cst_154 [1] : vector<16x16xf32> to vector<16xf32>
    %340 = vector.shape_cast %339 : vector<16xf32> to vector<16x1xf32>
    %341 = vector.broadcast %340 : vector<16x1xf32> to vector<16x16xf32>
    %342 = arith.subf %338, %341 : vector<16x16xf32>
    %343 = math.exp %342 : vector<16x16xf32>
    %cst_155 = arith.constant dense<0.000000e+00> : vector<16xf32>
    %344 = vector.multi_reduction <add>, %343, %cst_155 [1] : vector<16x16xf32> to vector<16xf32>
    %345 = vector.shape_cast %344 : vector<16xf32> to vector<16x1xf32>
    %346 = tpu.reciprocal %345 {approx = true} : vector<16x1xf32> -> vector<16x1xf32>
    %347 = vector.broadcast %346 : vector<16x1xf32> to vector<16x16xf32>
    %348 = arith.mulf %343, %347 : vector<16x16xf32>
    %349 = arith.truncf %348 : vector<16x16xf32> to vector<16x16xbf16>
    %350 = arith.truncf %334 : vector<16x8xf32> to vector<16x8xbf16>
    %cst_156 = arith.constant dense<0.000000e+00> : vector<16x8xf32>
    %351 = tpu.matmul %349, %350, %cst_156 {dimension_numbers = #tpu.dot_dimension_numbers<[1], [0], [0], [1], [0, 0, 1, 1], [], []>} : vector<16x16xbf16>, vector<16x8xbf16>, vector<16x8xf32> -> vector<16x8xf32>
    %352 = vector.extract_strided_slice %291 {offsets = [0, 24], sizes = [16, 8], strides = [1, 1]} : vector<16x96xf32> to vector<16x8xf32>
    %353 = vector.extract_strided_slice %291 {offsets = [0, 56], sizes = [16, 8], strides = [1, 1]} : vector<16x96xf32> to vector<16x8xf32>
    %354 = vector.extract_strided_slice %291 {offsets = [0, 88], sizes = [16, 8], strides = [1, 1]} : vector<16x96xf32> to vector<16x8xf32>
    %355 = arith.truncf %352 : vector<16x8xf32> to vector<16x8xbf16>
    %356 = arith.truncf %353 : vector<16x8xf32> to vector<16x8xbf16>
    %cst_157 = arith.constant dense<0.000000e+00> : vector<16x16xf32>
    %357 = tpu.matmul %355, %356, %cst_157 {dimension_numbers = #tpu.dot_dimension_numbers<[1], [1], [0], [0], [0, 0, 1, 0], [], []>} : vector<16x8xbf16>, vector<16x8xbf16>, vector<16x16xf32> -> vector<16x16xf32>
    %358 = arith.addf %357, %77 : vector<16x16xf32>
    %cst_158 = arith.constant dense<0xFF800000> : vector<16xf32>
    %359 = vector.multi_reduction <maximumf>, %358, %cst_158 [1] : vector<16x16xf32> to vector<16xf32>
    %360 = vector.shape_cast %359 : vector<16xf32> to vector<16x1xf32>
    %361 = vector.broadcast %360 : vector<16x1xf32> to vector<16x16xf32>
    %362 = arith.subf %358, %361 : vector<16x16xf32>
    %363 = math.exp %362 : vector<16x16xf32>
    %cst_159 = arith.constant dense<0.000000e+00> : vector<16xf32>
    %364 = vector.multi_reduction <add>, %363, %cst_159 [1] : vector<16x16xf32> to vector<16xf32>
    %365 = vector.shape_cast %364 : vector<16xf32> to vector<16x1xf32>
    %366 = tpu.reciprocal %365 {approx = true} : vector<16x1xf32> -> vector<16x1xf32>
    %367 = vector.broadcast %366 : vector<16x1xf32> to vector<16x16xf32>
    %368 = arith.mulf %363, %367 : vector<16x16xf32>
    %369 = arith.truncf %368 : vector<16x16xf32> to vector<16x16xbf16>
    %370 = arith.truncf %354 : vector<16x8xf32> to vector<16x8xbf16>
    %cst_160 = arith.constant dense<0.000000e+00> : vector<16x8xf32>
    %371 = tpu.matmul %369, %370, %cst_160 {dimension_numbers = #tpu.dot_dimension_numbers<[1], [0], [0], [1], [0, 0, 1, 1], [], []>} : vector<16x16xbf16>, vector<16x8xbf16>, vector<16x8xf32> -> vector<16x8xf32>
    %372 = tpu.concatenate %311, %331, %351, %371 in 1 : vector<16x8xf32>, vector<16x8xf32>, vector<16x8xf32>, vector<16x8xf32> -> vector<16x32xf32>
    %c1_161 = arith.constant 1 : index
    %c0_162 = arith.constant 0 : index
    %c0_163 = arith.constant 0 : index
    %373 = vector.load %arg12[%c1_161, %c0_162, %c0_163] : memref<2x32x32xbf16, #tpu.memory_space<vmem>>, vector<1x32x32xbf16>
    %374 = vector.shape_cast %373 : vector<1x32x32xbf16> to vector<32x32xbf16>
    %375 = arith.truncf %372 : vector<16x32xf32> to vector<16x32xbf16>
    %cst_164 = arith.constant dense<0.000000e+00> : vector<16x32xf32>
    %376 = tpu.matmul %375, %374, %cst_164 {dimension_numbers = #tpu.dot_dimension_numbers<[1], [0], [0], [1], [0, 0, 1, 1], [], []>} : vector<16x32xbf16>, vector<32x32xbf16>, vector<16x32xf32> -> vector<16x32xf32>
    %377 = arith.addf %257, %376 : vector<16x32xf32>
    %c1_165 = arith.constant 1 : index
    %c0_166 = arith.constant 0 : index
    %c0_167 = arith.constant 0 : index
    %378 = vector.load %arg13[%c1_165, %c0_166, %c0_167] : memref<2x1x32xf32, #tpu.memory_space<vmem>>, vector<1x1x32xf32>
    %379 = vector.shape_cast %378 : vector<1x1x32xf32> to vector<1x32xf32>
    %380 = vector.broadcast %379 : vector<1x32xf32> to vector<16x32xf32>
    %381 = arith.addf %377, %380 : vector<16x32xf32>
    %c1_168 = arith.constant 1 : index
    %c0_169 = arith.constant 0 : index
    %c0_170 = arith.constant 0 : index
    %382 = vector.load %arg14[%c1_168, %c0_169, %c0_170] : memref<2x1x32xf32, #tpu.memory_space<vmem>>, vector<1x1x32xf32>
    %383 = vector.shape_cast %382 : vector<1x1x32xf32> to vector<1x32xf32>
    %c1_171 = arith.constant 1 : index
    %c0_172 = arith.constant 0 : index
    %c0_173 = arith.constant 0 : index
    %384 = vector.load %arg15[%c1_171, %c0_172, %c0_173] : memref<2x1x32xf32, #tpu.memory_space<vmem>>, vector<1x1x32xf32>
    %385 = vector.shape_cast %384 : vector<1x1x32xf32> to vector<1x32xf32>
    %cst_174 = arith.constant dense<0.000000e+00> : vector<16xf32>
    %386 = vector.multi_reduction <add>, %381, %cst_174 [1] : vector<16x32xf32> to vector<16xf32>
    %387 = vector.shape_cast %386 : vector<16xf32> to vector<16x1xf32>
    %cst_175 = arith.constant 3.200000e+01 : f32
    %388 = vector.broadcast %cst_175 : f32 to vector<16x1xf32>
    %389 = arith.divf %387, %388 : vector<16x1xf32>
    %390 = vector.broadcast %389 : vector<16x1xf32> to vector<16x32xf32>
    %391 = arith.subf %381, %390 : vector<16x32xf32>
    %392 = arith.mulf %391, %391 : vector<16x32xf32>
    %cst_176 = arith.constant dense<0.000000e+00> : vector<16xf32>
    %393 = vector.multi_reduction <add>, %392, %cst_176 [1] : vector<16x32xf32> to vector<16xf32>
    %394 = vector.shape_cast %393 : vector<16xf32> to vector<16x1xf32>
    %cst_177 = arith.constant 3.200000e+01 : f32
    %395 = vector.broadcast %cst_177 : f32 to vector<16x1xf32>
    %396 = arith.divf %394, %395 : vector<16x1xf32>
    %397 = vector.broadcast %389 : vector<16x1xf32> to vector<16x32xf32>
    %398 = arith.subf %381, %397 : vector<16x32xf32>
    %cst_178 = arith.constant 9.99999974E-6 : f32
    %399 = vector.broadcast %cst_178 : f32 to vector<16x1xf32>
    %400 = arith.addf %396, %399 : vector<16x1xf32>
    %401 = math.rsqrt %400 : vector<16x1xf32>
    %402 = vector.broadcast %401 : vector<16x1xf32> to vector<16x32xf32>
    %403 = arith.mulf %398, %402 : vector<16x32xf32>
    %404 = vector.broadcast %383 : vector<1x32xf32> to vector<16x32xf32>
    %405 = arith.mulf %403, %404 : vector<16x32xf32>
    %406 = vector.broadcast %385 : vector<1x32xf32> to vector<16x32xf32>
    %407 = arith.addf %405, %406 : vector<16x32xf32>
    %c1_179 = arith.constant 1 : index
    %c0_180 = arith.constant 0 : index
    %c0_181 = arith.constant 0 : index
    %408 = vector.load %arg16[%c1_179, %c0_180, %c0_181] : memref<2x32x128xbf16, #tpu.memory_space<vmem>>, vector<1x32x128xbf16>
    %409 = vector.shape_cast %408 : vector<1x32x128xbf16> to vector<32x128xbf16>
    %410 = arith.truncf %407 : vector<16x32xf32> to vector<16x32xbf16>
    %cst_182 = arith.constant dense<0.000000e+00> : vector<16x128xf32>
    %411 = tpu.matmul %410, %409, %cst_182 {dimension_numbers = #tpu.dot_dimension_numbers<[1], [0], [0], [1], [0, 0, 1, 1], [], []>} : vector<16x32xbf16>, vector<32x128xbf16>, vector<16x128xf32> -> vector<16x128xf32>
    %c1_183 = arith.constant 1 : index
    %c0_184 = arith.constant 0 : index
    %c0_185 = arith.constant 0 : index
    %412 = vector.load %arg17[%c1_183, %c0_184, %c0_185] : memref<2x1x128xf32, #tpu.memory_space<vmem>>, vector<1x1x128xf32>
    %413 = vector.shape_cast %412 : vector<1x1x128xf32> to vector<1x128xf32>
    %414 = vector.broadcast %413 : vector<1x128xf32> to vector<16x128xf32>
    %415 = arith.addf %411, %414 : vector<16x128xf32>
    %416 = arith.mulf %415, %415 : vector<16x128xf32>
    %417 = arith.mulf %415, %416 : vector<16x128xf32>
    %cst_186 = arith.constant 4.471500e-02 : f32
    %418 = vector.broadcast %cst_186 : f32 to vector<16x128xf32>
    %419 = arith.mulf %418, %417 : vector<16x128xf32>
    %420 = arith.addf %415, %419 : vector<16x128xf32>
    %cst_187 = arith.constant 0.797884583 : f32
    %421 = vector.broadcast %cst_187 : f32 to vector<16x128xf32>
    %422 = arith.mulf %421, %420 : vector<16x128xf32>
    %423 = math.tanh %422 : vector<16x128xf32>
    %cst_188 = arith.constant 1.000000e+00 : f32
    %424 = vector.broadcast %cst_188 : f32 to vector<16x128xf32>
    %425 = arith.addf %424, %423 : vector<16x128xf32>
    %cst_189 = arith.constant 5.000000e-01 : f32
    %426 = vector.broadcast %cst_189 : f32 to vector<16x128xf32>
    %427 = arith.mulf %426, %425 : vector<16x128xf32>
    %428 = arith.mulf %415, %427 : vector<16x128xf32>
    %c1_190 = arith.constant 1 : index
    %c0_191 = arith.constant 0 : index
    %c0_192 = arith.constant 0 : index
    %429 = vector.load %arg18[%c1_190, %c0_191, %c0_192] : memref<2x128x32xbf16, #tpu.memory_space<vmem>>, vector<1x128x32xbf16>
    %430 = vector.shape_cast %429 : vector<1x128x32xbf16> to vector<128x32xbf16>
    %431 = arith.truncf %428 : vector<16x128xf32> to vector<16x128xbf16>
    %cst_193 = arith.constant dense<0.000000e+00> : vector<16x32xf32>
    %432 = tpu.matmul %431, %430, %cst_193 {dimension_numbers = #tpu.dot_dimension_numbers<[1], [0], [0], [1], [0, 0, 1, 1], [], []>} : vector<16x128xbf16>, vector<128x32xbf16>, vector<16x32xf32> -> vector<16x32xf32>
    %433 = arith.addf %381, %432 : vector<16x32xf32>
    %c1_194 = arith.constant 1 : index
    %c0_195 = arith.constant 0 : index
    %c0_196 = arith.constant 0 : index
    %434 = vector.load %arg19[%c1_194, %c0_195, %c0_196] : memref<2x1x32xf32, #tpu.memory_space<vmem>>, vector<1x1x32xf32>
    %435 = vector.shape_cast %434 : vector<1x1x32xf32> to vector<1x32xf32>
    %436 = vector.broadcast %435 : vector<1x32xf32> to vector<16x32xf32>
    %437 = arith.addf %433, %436 : vector<16x32xf32>
    %c0_197 = arith.constant 0 : index
    %c0_198 = arith.constant 0 : index
    %438 = vector.load %arg20[%c0_197, %c0_198] : memref<1x32xf32, #tpu.memory_space<vmem>>, vector<1x32xf32>
    %c0_199 = arith.constant 0 : index
    %c0_200 = arith.constant 0 : index
    %439 = vector.load %arg21[%c0_199, %c0_200] : memref<1x32xf32, #tpu.memory_space<vmem>>, vector<1x32xf32>
    %cst_201 = arith.constant dense<0.000000e+00> : vector<16xf32>
    %440 = vector.multi_reduction <add>, %437, %cst_201 [1] : vector<16x32xf32> to vector<16xf32>
    %441 = vector.shape_cast %440 : vector<16xf32> to vector<16x1xf32>
    %cst_202 = arith.constant 3.200000e+01 : f32
    %442 = vector.broadcast %cst_202 : f32 to vector<16x1xf32>
    %443 = arith.divf %441, %442 : vector<16x1xf32>
    %444 = vector.broadcast %443 : vector<16x1xf32> to vector<16x32xf32>
    %445 = arith.subf %437, %444 : vector<16x32xf32>
    %446 = arith.mulf %445, %445 : vector<16x32xf32>
    %cst_203 = arith.constant dense<0.000000e+00> : vector<16xf32>
    %447 = vector.multi_reduction <add>, %446, %cst_203 [1] : vector<16x32xf32> to vector<16xf32>
    %448 = vector.shape_cast %447 : vector<16xf32> to vector<16x1xf32>
    %cst_204 = arith.constant 3.200000e+01 : f32
    %449 = vector.broadcast %cst_204 : f32 to vector<16x1xf32>
    %450 = arith.divf %448, %449 : vector<16x1xf32>
    %451 = vector.broadcast %443 : vector<16x1xf32> to vector<16x32xf32>
    %452 = arith.subf %437, %451 : vector<16x32xf32>
    %cst_205 = arith.constant 9.99999974E-6 : f32
    %453 = vector.broadcast %cst_205 : f32 to vector<16x1xf32>
    %454 = arith.addf %450, %453 : vector<16x1xf32>
    %455 = math.rsqrt %454 : vector<16x1xf32>
    %456 = vector.broadcast %455 : vector<16x1xf32> to vector<16x32xf32>
    %457 = arith.mulf %452, %456 : vector<16x32xf32>
    %458 = vector.broadcast %438 : vector<1x32xf32> to vector<16x32xf32>
    %459 = arith.mulf %457, %458 : vector<16x32xf32>
    %460 = vector.broadcast %439 : vector<1x32xf32> to vector<16x32xf32>
    %461 = arith.addf %459, %460 : vector<16x32xf32>
    %c0_206 = arith.constant 0 : index
    %c0_207 = arith.constant 0 : index
    %462 = vector.load %arg22[%c0_206, %c0_207] : memref<8x16xbf16, #tpu.memory_space<vmem>>, vector<8x16xbf16>
    %463 = arith.truncf %461 : vector<16x32xf32> to vector<16x32xbf16>
    %cst_208 = arith.constant dense<0.000000e+00> : vector<8x32xf32>
    %464 = tpu.matmul %462, %463, %cst_208 {dimension_numbers = #tpu.dot_dimension_numbers<[1], [0], [0], [1], [0, 0, 1, 1], [], []>} : vector<8x16xbf16>, vector<16x32xbf16>, vector<8x32xf32> -> vector<8x32xf32>
    %c0_209 = arith.constant 0 : index
    %c0_210 = arith.constant 0 : index
    %465 = vector.load %arg23[%c0_209, %c0_210] : memref<32x256xbf16, #tpu.memory_space<vmem>>, vector<32x256xbf16>
    %466 = arith.truncf %464 : vector<8x32xf32> to vector<8x32xbf16>
    %cst_211 = arith.constant dense<0.000000e+00> : vector<8x256xf32>
    %467 = tpu.matmul %466, %465, %cst_211 {dimension_numbers = #tpu.dot_dimension_numbers<[1], [0], [0], [1], [0, 0, 1, 1], [], []>} : vector<8x32xbf16>, vector<32x256xbf16>, vector<8x256xf32> -> vector<8x256xf32>
    %c0_212 = arith.constant 0 : index
    %c0_213 = arith.constant 0 : index
    %468 = vector.load %arg24[%c0_212, %c0_213] : memref<1x256xf32, #tpu.memory_space<vmem>>, vector<1x256xf32>
    %469 = vector.broadcast %468 : vector<1x256xf32> to vector<8x256xf32>
    %470 = arith.addf %467, %469 : vector<8x256xf32>
    %cst_214 = arith.constant 0.000000e+00 : f32
    %471 = vector.broadcast %cst_214 : f32 to vector<8x256xf32>
    %472 = arith.maximumf %470, %471 : vector<8x256xf32>
    %c0_215 = arith.constant 0 : index
    %c0_216 = arith.constant 0 : index
    %473 = vector.load %arg25[%c0_215, %c0_216] : memref<256x128xbf16, #tpu.memory_space<vmem>>, vector<256x128xbf16>
    %474 = arith.truncf %472 : vector<8x256xf32> to vector<8x256xbf16>
    %cst_217 = arith.constant dense<0.000000e+00> : vector<8x128xf32>
    %475 = tpu.matmul %474, %473, %cst_217 {dimension_numbers = #tpu.dot_dimension_numbers<[1], [0], [0], [1], [0, 0, 1, 1], [], []>} : vector<8x256xbf16>, vector<256x128xbf16>, vector<8x128xf32> -> vector<8x128xf32>
    %c0_218 = arith.constant 0 : index
    %c0_219 = arith.constant 0 : index
    %476 = vector.load %arg26[%c0_218, %c0_219] : memref<1x128xf32, #tpu.memory_space<vmem>>, vector<1x128xf32>
    %477 = vector.broadcast %476 : vector<1x128xf32> to vector<8x128xf32>
    %478 = arith.addf %475, %477 : vector<8x128xf32>
    %c0_220 = arith.constant 0 : index
    %c0_221 = arith.constant 0 : index
    %479 = vector.load %arg27[%c0_220, %c0_221] : memref<8x128xf32, #tpu.memory_space<vmem>>, vector<8x128xf32>
    tpu.vector_store %arg27[%c0_220, %c0_221], %478 {strides = array<i32>} : memref<8x128xf32, #tpu.memory_space<vmem>>, vector<8x128xf32>,
    return
  }
}

</mosaic_0001>

<llo_original>
// kernel: whisper_deepfake_classifier.1
$region0: #{whisper_deepfake_classifier.1}
  #allocation0 [shape = 'u32[]', space=smem, size = 0x4, offset = 0x4, fixed_abs, tag = 'smem constant byte address 0x4 - core index']
  #allocation1 [shape = 'u32[144,128]{1,0:T(1,128)}', space=vmem, size = 0x12000, scoped, tag = 'internal scratch']
  %s0 = inlined_call_operand.vmem [shape: bf16[3,32,8], index: 0, kind: input, shape index: {}]
  %s1 = inlined_call_operand.vmem [shape: bf16[3,8,32], index: 1, kind: input, shape index: {}]
  %s2 = inlined_call_operand.vmem [shape: f32[1,32], index: 2, kind: input, shape index: {}]
  %s3 = inlined_call_operand.vmem [shape: bf16[3,16,32], index: 3, kind: input, shape index: {}]
  %s4 = inlined_call_operand.vmem [shape: bf16[3,32,32], index: 4, kind: input, shape index: {}]
  %s5 = inlined_call_operand.vmem [shape: f32[1,32], index: 5, kind: input, shape index: {}]
  %s6 = inlined_call_operand.vmem [shape: f32[16,32], index: 6, kind: input, shape index: {}]
  %s7 = inlined_call_operand.vmem [shape: f32[16,16], index: 7, kind: input, shape index: {}]
  %s8 = inlined_call_operand.vmem [shape: f32[2,1,32], index: 8, kind: input, shape index: {}]
  %s9 = inlined_call_operand.vmem [shape: f32[2,1,32], index: 9, kind: input, shape index: {}]
  %s10 = inlined_call_operand.vmem [shape: bf16[2,32,96], index: 10, kind: input, shape index: {}]
  %s11 = inlined_call_operand.vmem [shape: f32[2,1,96], index: 11, kind: input, shape index: {}]
  %s12 = inlined_call_operand.vmem [shape: bf16[2,32,32], index: 12, kind: input, shape index: {}]
  %s13 = inlined_call_operand.vmem [shape: f32[2,1,32], index: 13, kind: input, shape index: {}]
  %s14 = inlined_call_operand.vmem [shape: f32[2,1,32], index: 14, kind: input, shape index: {}]
  %s15 = inlined_call_operand.vmem [shape: f32[2,1,32], index: 15, kind: input, shape index: {}]
  %s16 = inlined_call_operand.vmem [shape: bf16[2,32,128], index: 16, kind: input, shape index: {}]
  %s17 = inlined_call_operand.vmem [shape: f32[2,1,128], index: 17, kind: input, shape index: {}]
  %s18 = inlined_call_operand.vmem [shape: bf16[2,128,32], index: 18, kind: input, shape index: {}]
  %s19 = inlined_call_operand.vmem [shape: f32[2,1,32], index: 19, kind: input, shape index: {}]
  %s20 = inlined_call_operand.vmem [shape: f32[1,32], index: 20, kind: input, shape index: {}]
  %s21 = inlined_call_operand.vmem [shape: f32[1,32], index: 21, kind: input, shape index: {}]
  %s22 = inlined_call_operand.vmem [shape: bf16[8,16], index: 22, kind: input, shape index: {}]
  %s23 = inlined_call_operand.vmem [shape: bf16[32,256], index: 23, kind: input, shape index: {}]
  %s24 = inlined_call_operand.vmem [shape: f32[1,256], index: 24, kind: input, shape index: {}]
  %s25 = inlined_call_operand.vmem [shape: bf16[256,128], index: 25, kind: input, shape index: {}]
  %s26 = inlined_call_operand.vmem [shape: f32[1,128], index: 26, kind: input, shape index: {}]
  %s27 = inlined_call_operand.vmem [shape: f32[8,128], index: 27, kind: output, shape index: {}]
  %s28 = sld [smem:[#allocation0]]
  $region118: #{whisper_deepfake_classifier.1} parent=0
    _
  %s30 = ssub.s32 1, %s28
  %s31 = scalar_select 0, %s30, %s28
  // Predicated region
  $region2: #{whisper_deepfake_classifier.1} parent=0 // pred_check
    _
  $region3: #{whisper_deepfake_classifier.1} parent=0 // pred_check_branch
    %33 = sbr.rel (0) target = $region5
  $region4: #{whisper_deepfake_classifier.1} parent=0 // pred_region
    _
  $region5: #{whisper_deepfake_classifier.1} parent=0 // pred_fallthru
    _
  // Predicated region
  $region6: #{whisper_deepfake_classifier.1} parent=0 // pred_check
    _
  $region7: #{whisper_deepfake_classifier.1} parent=0 // pred_check_branch
    %35 = sbr.rel (0) target = $region9
  $region8: #{whisper_deepfake_classifier.1} parent=0 // pred_region
    _
  $region9: #{whisper_deepfake_classifier.1} parent=0 // pred_fallthru
    _
  // Predicated region
  $region10: #{whisper_deepfake_classifier.1} parent=0 // pred_check
    _
  $region11: #{whisper_deepfake_classifier.1} parent=0 // pred_check_branch
    %37 = sbr.rel (0) target = $region13
  $region12: #{whisper_deepfake_classifier.1} parent=0 // pred_region
    _
  $region13: #{whisper_deepfake_classifier.1} parent=0 // pred_fallthru
    _
  // Predicated region
  $region14: #{whisper_deepfake_classifier.1} parent=0 // pred_check
    _
  $region15: #{whisper_deepfake_classifier.1} parent=0 // pred_check_branch
    %39 = sbr.rel (0) target = $region17
  $region16: #{whisper_deepfake_classifier.1} parent=0 // pred_region
    _
  $region17: #{whisper_deepfake_classifier.1} parent=0 // pred_fallthru
    _
  // Predicated region
  $region18: #{whisper_deepfake_classifier.1} parent=0 // pred_check
    _
  $region19: #{whisper_deepfake_classifier.1} parent=0 // pred_check_branch
    %41 = sbr.rel (0) target = $region21
  $region20: #{whisper_deepfake_classifier.1} parent=0 // pred_region
    _
  $region21: #{whisper_deepfake_classifier.1} parent=0 // pred_fallthru
    _
  // Predicated region
  $region22: #{whisper_deepfake_classifier.1} parent=0 // pred_check
    _
  $region23: #{whisper_deepfake_classifier.1} parent=0 // pred_check_branch
    %43 = sbr.rel (0) target = $region25
  $region24: #{whisper_deepfake_classifier.1} parent=0 // pred_region
    _
  $region25: #{whisper_deepfake_classifier.1} parent=0 // pred_fallthru
    _
  // Predicated region
  $region26: #{whisper_deepfake_classifier.1} parent=0 // pred_check
    _
  $region27: #{whisper_deepfake_classifier.1} parent=0 // pred_check_branch
    %45 = sbr.rel (0) target = $region29
  $region28: #{whisper_deepfake_classifier.1} parent=0 // pred_region
    _
  $region29: #{whisper_deepfake_classifier.1} parent=0 // pred_fallthru
    _
  // Predicated region
  $region30: #{whisper_deepfake_classifier.1} parent=0 // pred_check
    _
  $region31: #{whisper_deepfake_classifier.1} parent=0 // pred_check_branch
    %47 = sbr.rel (0) target = $region33
  $region32: #{whisper_deepfake_classifier.1} parent=0 // pred_region
    _
  $region33: #{whisper_deepfake_classifier.1} parent=0 // pred_fallthru
    _
  // Predicated region
  $region34: #{whisper_deepfake_classifier.1} parent=0 // pred_check
    _
  $region35: #{whisper_deepfake_classifier.1} parent=0 // pred_check_branch
    %49 = sbr.rel (0) target = $region37
  $region36: #{whisper_deepfake_classifier.1} parent=0 // pred_region
    _
  $region37: #{whisper_deepfake_classifier.1} parent=0 // pred_fallthru
    _
  // Predicated region
  $region38: #{whisper_deepfake_classifier.1} parent=0 // pred_check
    _
  $region39: #{whisper_deepfake_classifier.1} parent=0 // pred_check_branch
    %51 = sbr.rel (0) target = $region41
  $region40: #{whisper_deepfake_classifier.1} parent=0 // pred_region
    _
  $region41: #{whisper_deepfake_classifier.1} parent=0 // pred_fallthru
    _
  // Predicated region
  $region42: #{whisper_deepfake_classifier.1} parent=0 // pred_check
    _
  $region43: #{whisper_deepfake_classifier.1} parent=0 // pred_check_branch
    %53 = sbr.rel (0) target = $region45
  $region44: #{whisper_deepfake_classifier.1} parent=0 // pred_region
    _
  $region45: #{whisper_deepfake_classifier.1} parent=0 // pred_fallthru
    _
  // Predicated region
  $region46: #{whisper_deepfake_classifier.1} parent=0 // pred_check
    _
  $region47: #{whisper_deepfake_classifier.1} parent=0 // pred_check_branch
    %55 = sbr.rel (0) target = $region49
  $region48: #{whisper_deepfake_classifier.1} parent=0 // pred_region
    _
  $region49: #{whisper_deepfake_classifier.1} parent=0 // pred_fallthru
    _
  // Predicated region
  $region50: #{whisper_deepfake_classifier.1} parent=0 // pred_check
    _
  $region51: #{whisper_deepfake_classifier.1} parent=0 // pred_check_branch
    %57 = sbr.rel (0) target = $region53
  $region52: #{whisper_deepfake_classifier.1} parent=0 // pred_region
    _
  $region53: #{whisper_deepfake_classifier.1} parent=0 // pred_fallthru
    _
  // Predicated region
  $region54: #{whisper_deepfake_classifier.1} parent=0 // pred_check
    _
  $region55: #{whisper_deepfake_classifier.1} parent=0 // pred_check_branch
    %59 = sbr.rel (0) target = $region57
  $region56: #{whisper_deepfake_classifier.1} parent=0 // pred_region
    _
  $region57: #{whisper_deepfake_classifier.1} parent=0 // pred_fallthru
    _
  // Predicated region
  $region58: #{whisper_deepfake_classifier.1} parent=0 // pred_check
    _
  $region59: #{whisper_deepfake_classifier.1} parent=0 // pred_check_branch
    %61 = sbr.rel (0) target = $region61
  $region60: #{whisper_deepfake_classifier.1} parent=0 // pred_region
    _
  $region61: #{whisper_deepfake_classifier.1} parent=0 // pred_fallthru
    _
  // Predicated region
  $region62: #{whisper_deepfake_classifier.1} parent=0 // pred_check
    _
  $region63: #{whisper_deepfake_classifier.1} parent=0 // pred_check_branch
    %63 = sbr.rel (0) target = $region65
  $region64: #{whisper_deepfake_classifier.1} parent=0 // pred_region
    _
  $region65: #{whisper_deepfake_classifier.1} parent=0 // pred_fallthru
    _
  // Predicated region
  $region66: #{whisper_deepfake_classifier.1} parent=0 // pred_check
    _
  $region67: #{whisper_deepfake_classifier.1} parent=0 // pred_check_branch
    %65 = sbr.rel (0) target = $region69
  $region68: #{whisper_deepfake_classifier.1} parent=0 // pred_region
    _
  $region69: #{whisper_deepfake_classifier.1} parent=0 // pred_fallthru
    _
  // Predicated region
  $region70: #{whisper_deepfake_classifier.1} parent=0 // pred_check
    _
  $region71: #{whisper_deepfake_classifier.1} parent=0 // pred_check_branch
    %67 = sbr.rel (0) target = $region73
  $region72: #{whisper_deepfake_classifier.1} parent=0 // pred_region
    _
  $region73: #{whisper_deepfake_classifier.1} parent=0 // pred_fallthru
    _
  // Predicated region
  $region74: #{whisper_deepfake_classifier.1} parent=0 // pred_check
    _
  $region75: #{whisper_deepfake_classifier.1} parent=0 // pred_check_branch
    %69 = sbr.rel (0) target = $region77
  $region76: #{whisper_deepfake_classifier.1} parent=0 // pred_region
    _
  $region77: #{whisper_deepfake_classifier.1} parent=0 // pred_fallthru
    _
  // Predicated region
  $region78: #{whisper_deepfake_classifier.1} parent=0 // pred_check
    _
  $region79: #{whisper_deepfake_classifier.1} parent=0 // pred_check_branch
    %71 = sbr.rel (0) target = $region81
  $region80: #{whisper_deepfake_classifier.1} parent=0 // pred_region
    _
  $region81: #{whisper_deepfake_classifier.1} parent=0 // pred_fallthru
    _
  // Predicated region
  $region82: #{whisper_deepfake_classifier.1} parent=0 // pred_check
    _
  $region83: #{whisper_deepfake_classifier.1} parent=0 // pred_check_branch
    %73 = sbr.rel (0) target = $region85
  $region84: #{whisper_deepfake_classifier.1} parent=0 // pred_region
    _
  $region85: #{whisper_deepfake_classifier.1} parent=0 // pred_fallthru
    _
  // Predicated region
  $region86: #{whisper_deepfake_classifier.1} parent=0 // pred_check
    _
  $region87: #{whisper_deepfake_classifier.1} parent=0 // pred_check_branch
    %75 = sbr.rel (0) target = $region89
  $region88: #{whisper_deepfake_classifier.1} parent=0 // pred_region
    _
  $region89: #{whisper_deepfake_classifier.1} parent=0 // pred_fallthru
    _
  // Predicated region
  $region90: #{whisper_deepfake_classifier.1} parent=0 // pred_check
    _
  $region91: #{whisper_deepfake_classifier.1} parent=0 // pred_check_branch
    %77 = sbr.rel (0) target = $region93
  $region92: #{whisper_deepfake_classifier.1} parent=0 // pred_region
    _
  $region93: #{whisper_deepfake_classifier.1} parent=0 // pred_fallthru
    _
  // Predicated region
  $region94: #{whisper_deepfake_classifier.1} parent=0 // pred_check
    _
  $region95: #{whisper_deepfake_classifier.1} parent=0 // pred_check_branch
    %79 = sbr.rel (0) target = $region97
  $region96: #{whisper_deepfake_classifier.1} parent=0 // pred_region
    _
  $region97: #{whisper_deepfake_classifier.1} parent=0 // pred_fallthru
    _
  // Predicated region
  $region98: #{whisper_deepfake_classifier.1} parent=0 // pred_check
    _
  $region99: #{whisper_deepfake_classifier.1} parent=0 // pred_check_branch
    %81 = sbr.rel (0) target = $region101
  $region100: #{whisper_deepfake_classifier.1} parent=0 // pred_region
    _
  $region101: #{whisper_deepfake_classifier.1} parent=0 // pred_fallthru
    _
  // Predicated region
  $region102: #{whisper_deepfake_classifier.1} parent=0 // pred_check
    _
  $region103: #{whisper_deepfake_classifier.1} parent=0 // pred_check_branch
    %83 = sbr.rel (0) target = $region105
  $region104: #{whisper_deepfake_classifier.1} parent=0 // pred_region
    _
  $region105: #{whisper_deepfake_classifier.1} parent=0 // pred_fallthru
    _
  // Predicated region
  $region106: #{whisper_deepfake_classifier.1} parent=0 // pred_check
    _
  $region107: #{whisper_deepfake_classifier.1} parent=0 // pred_check_branch
    %85 = sbr.rel (0) target = $region109
  $region108: #{whisper_deepfake_classifier.1} parent=0 // pred_region
    _
  $region109: #{whisper_deepfake_classifier.1} parent=0 // pred_fallthru
    _
  %v87 = vld [vmem:[%s0] sm:$0xf]
  %v88 = vld [vmem:[%s0 + $0x4] sm:$0xf]
  %v89 = vld [vmem:[%s0 + $0x8] sm:$0xf]
  %v90 = vld [vmem:[%s0 + $0xc] sm:$0xf]
  %v91 = vld [vmem:[%s1] sm:$0xf]
  %s92 = scalar_lea.vmem %s0, 16
  %v93 = vld [vmem:[%s92] sm:$0xf]
  %v94 = vld [vmem:[%s92 + $0x4] sm:$0xf]
  %v95 = vld [vmem:[%s92 + $0x8] sm:$0xf]
  %v96 = vld [vmem:[%s92 + $0xc] sm:$0xf]
  %s97 = scalar_lea.vmem %s1, 4
  %v98 = vld [vmem:[%s97] sm:$0xf]
  %v103 = vunpack.c.l.b16 %v93
  %v104 = vunpack.c.l.b16 %v94
  %v105 = vunpack.c.l.b16 %v95
  %v106 = vunpack.c.l.b16 %v96
  %v107 = vpack.c.b16 %v104, %v103
  %v108 = vpack.c.b16 %v106, %v105
  %vm109 = vcmask 64512
  %v111 = vsel %vm109, %v107, 0
  %v114 = vsel %vm109, %v108, 0
  %vm116 = vcmask 1043456
  %v118 = vsel %vm116, %v98, 0
  %120 = vmatprep.subr.bf16.mxu0 0
  %121 = vmatpush1.bf16.msra.mxu0 0
  %122 = vmatprep.subr.bf16.mxu0 0
  %123 = vmatpush1.bf16.msra.mxu0 0
  %124 = vmatprep.subr.bf16.mxu0 0
  %125 = vmatpush1.bf16.msra.mxu0 0
  %126 = vmatprep.subr.bf16.mxu0 0
  %127 = vmatpush1.bf16.msra.mxu0 0
  %128 = vmatprep.subr.bf16.mxu0 0
  %129 = vmatpush1.bf16.msra.mxu0 0
  %130 = vmatprep.subr.bf16.mxu0 0
  %131 = vmatpush1.bf16.msra.mxu0 0
  %132 = vmatprep.subr.bf16.mxu0 0
  %133 = vmatpush1.bf16.msra.mxu0 0
  %134 = vmatprep.subr.bf16.mxu0 0
  %135 = vmatpush1.bf16.msra.mxu0 %v118
  %136 = vmatprep.subr.bf16.mxu0 0
  %137 = vmatpush2.bf16.msra.mxu0 0
  %138 = vmatprep.subr.bf16.mxu0 0
  %139 = vmatpush2.bf16.msra.mxu0 0
  %140 = vmatprep.subr.bf16.mxu0 0
  %141 = vmatpush2.bf16.msra.mxu0 0
  %142 = vmatprep.subr.bf16.mxu0 0
  %143 = vmatpush2.bf16.msra.mxu0 0
  %144 = vmatprep.subr.bf16.mxu0 0
  %145 = vmatpush2.bf16.msra.mxu0 0
  %146 = vmatprep.subr.bf16.mxu0 0
  %147 = vmatpush2.bf16.msra.mxu0 0
  %148 = vmatprep.subr.bf16.mxu0 0
  %149 = vmatpush2.bf16.msra.mxu0 0
  %150 = vmatprep.subr.bf16.mxu0 0
  %151 = vmatpush2.bf16.msra.mxu0 0
  %152 = vmatprep.mubr.bf16.mxu0 0
  %153 = vmatmul.mubr.bf16.gmra.mxu0 %v111
  %v154 = vpop.f32.mrf.mxu0
  %v155 = vadd.f32 0.0, %v154
  %v156 = vpop.f32.mrf.mxu0
  %v157 = vpop.f32.mrf.mxu0
  %v158 = vadd.f32 0.0, %v157
  %v159 = vpop.f32.mrf.mxu0
  %160 = vmatprep.mubr.bf16.mxu0 0
  %161 = vmatmul.mubr.bf16.gmra.mxu0 %v114
  %v162 = vpop.f32.mrf.mxu0
  %v163 = vadd.f32 0.0, %v162
  %v164 = vpop.f32.mrf.mxu0
  %v165 = vpop.f32.mrf.mxu0
  %v166 = vadd.f32 0.0, %v165
  %v167 = vpop.f32.mrf.mxu0
  %168 = vdwg.mxu0
  %v173 = vunpack.c.l.b16 %v87
  %v174 = vunpack.c.l.b16 %v88
  %v175 = vunpack.c.l.b16 %v89
  %v176 = vunpack.c.l.b16 %v90
  %v177 = vpack.c.b16 %v174, %v173
  %v178 = vpack.c.b16 %v176, %v175
  %v180 = vsel %vm109, %v177, 0
  %v183 = vsel %vm109, %v178, 0
  %v186 = vsel %vm116, %v91, 0
  %188 = vmatprep.subr.bf16.mxu0 0
  %189 = vmatpush1.bf16.msra.mxu0 0
  %190 = vmatprep.subr.bf16.mxu0 0
  %191 = vmatpush1.bf16.msra.mxu0 0
  %192 = vmatprep.subr.bf16.mxu0 0
  %193 = vmatpush1.bf16.msra.mxu0 0
  %194 = vmatprep.subr.bf16.mxu0 0
  %195 = vmatpush1.bf16.msra.mxu0 0
  %196 = vmatprep.subr.bf16.mxu0 0
  %197 = vmatpush1.bf16.msra.mxu0 0
  %198 = vmatprep.subr.bf16.mxu0 0
  %199 = vmatpush1.bf16.msra.mxu0 0
  %200 = vmatprep.subr.bf16.mxu0 0
  %201 = vmatpush1.bf16.msra.mxu0 0
  %202 = vmatprep.subr.bf16.mxu0 0
  %203 = vmatpush1.bf16.msra.mxu0 %v186
  %204 = vmatprep.subr.bf16.mxu0 0
  %205 = vmatpush2.bf16.msra.mxu0 0
  %206 = vmatprep.subr.bf16.mxu0 0
  %207 = vmatpush2.bf16.msra.mxu0 0
  %208 = vmatprep.subr.bf16.mxu0 0
  %209 = vmatpush2.bf16.msra.mxu0 0
  %210 = vmatprep.subr.bf16.mxu0 0
  %211 = vmatpush2.bf16.msra.mxu0 0
  %212 = vmatprep.subr.bf16.mxu0 0
  %213 = vmatpush2.bf16.msra.mxu0 0
  %214 = vmatprep.subr.bf16.mxu0 0
  %215 = vmatpush2.bf16.msra.mxu0 0
  %216 = vmatprep.subr.bf16.mxu0 0
  %217 = vmatpush2.bf16.msra.mxu0 0
  %218 = vmatprep.subr.bf16.mxu0 0
  %219 = vmatpush2.bf16.msra.mxu0 0
  %220 = vmatprep.mubr.bf16.mxu0 0
  %221 = vmatmul.mubr.bf16.gmra.mxu0 %v180
  %v222 = vpop.f32.mrf.mxu0
  %v223 = vadd.f32 %v155, %v222
  %v224 = vpop.f32.mrf.mxu0
  %v225 = vpop.f32.mrf.mxu0
  %v226 = vadd.f32 %v158, %v225
  %v227 = vpop.f32.mrf.mxu0
  %228 = vmatprep.mubr.bf16.mxu0 0
  %229 = vmatmul.mubr.bf16.gmra.mxu0 %v183
  %v230 = vpop.f32.mrf.mxu0
  %v231 = vadd.f32 %v163, %v230
  %v232 = vpop.f32.mrf.mxu0
  %v233 = vpop.f32.mrf.mxu0
  %v234 = vadd.f32 %v166, %v233
  %v235 = vpop.f32.mrf.mxu0
  %236 = vdwg.mxu0
  %s237 = scalar_lea.vmem %s0, 32
  %v238 = vld [vmem:[%s237] sm:$0xf]
  %v239 = vld [vmem:[%s237 + $0x4] sm:$0xf]
  %v240 = vld [vmem:[%s237 + $0x8] sm:$0xf]
  %v241 = vld [vmem:[%s237 + $0xc] sm:$0xf]
  %s242 = scalar_lea.vmem %s1, 8
  %v243 = vld [vmem:[%s242] sm:$0xf]
  %v248 = vunpack.c.l.b16 %v238
  %v249 = vunpack.c.l.b16 %v239
  %v250 = vunpack.c.l.b16 %v240
  %v251 = vunpack.c.l.b16 %v241
  %v252 = vpack.c.b16 %v249, %v248
  %v253 = vpack.c.b16 %v251, %v250
  %v255 = vsel %vm109, %v252, 0
  %v258 = vsel %vm109, %v253, 0
  %v261 = vsel %vm116, %v243, 0
  %263 = vmatprep.subr.bf16.mxu0 0
  %264 = vmatpush1.bf16.msra.mxu0 0
  %265 = vmatprep.subr.bf16.mxu0 0
  %266 = vmatpush1.bf16.msra.mxu0 0
  %267 = vmatprep.subr.bf16.mxu0 0
  %268 = vmatpush1.bf16.msra.mxu0 0
  %269 = vmatprep.subr.bf16.mxu0 0
  %270 = vmatpush1.bf16.msra.mxu0 0
  %271 = vmatprep.subr.bf16.mxu0 0
  %272 = vmatpush1.bf16.msra.mxu0 0
  %273 = vmatprep.subr.bf16.mxu0 0
  %274 = vmatpush1.bf16.msra.mxu0 0
  %275 = vmatprep.subr.bf16.mxu0 0
  %276 = vmatpush1.bf16.msra.mxu0 0
  %277 = vmatprep.subr.bf16.mxu0 0
  %278 = vmatpush1.bf16.msra.mxu0 %v261
  %279 = vmatprep.subr.bf16.mxu0 0
  %280 = vmatpush2.bf16.msra.mxu0 0
  %281 = vmatprep.subr.bf16.mxu0 0
  %282 = vmatpush2.bf16.msra.mxu0 0
  %283 = vmatprep.subr.bf16.mxu0 0
  %284 = vmatpush2.bf16.msra.mxu0 0
  %285 = vmatprep.subr.bf16.mxu0 0
  %286 = vmatpush2.bf16.msra.mxu0 0
  %287 = vmatprep.subr.bf16.mxu0 0
  %288 = vmatpush2.bf16.msra.mxu0 0
  %289 = vmatprep.subr.bf16.mxu0 0
  %290 = vmatpush2.bf16.msra.mxu0 0
  %291 = vmatprep.subr.bf16.mxu0 0
  %292 = vmatpush2.bf16.msra.mxu0 0
  %293 = vmatprep.subr.bf16.mxu0 0
  %294 = vmatpush2.bf16.msra.mxu0 0
  %295 = vmatprep.mubr.bf16.mxu0 0
  %296 = vmatmul.mubr.bf16.gmra.mxu0 %v255
  %v297 = vpop.f32.mrf.mxu0
  %v298 = vadd.f32 0.0, %v297
  %v299 = vpop.f32.mrf.mxu0
  %v300 = vpop.f32.mrf.mxu0
  %v301 = vadd.f32 0.0, %v300
  %v302 = vpop.f32.mrf.mxu0
  %303 = vmatprep.mubr.bf16.mxu0 0
  %304 = vmatmul.mubr.bf16.gmra.mxu0 %v258
  %v305 = vpop.f32.mrf.mxu0
  %v306 = vadd.f32 0.0, %v305
  %v307 = vpop.f32.mrf.mxu0
  %v308 = vpop.f32.mrf.mxu0
  %v309 = vadd.f32 0.0, %v308
  %v310 = vpop.f32.mrf.mxu0
  %311 = vdwg.mxu0
  %v312 = vadd.f32 %v223, %v298
  %v313 = vadd.f32 %v226, %v301
  %v314 = vadd.f32 %v231, %v306
  %v315 = vadd.f32 %v234, %v309
  %v316 = vld [vmem:[%s2] sm:$0x1]
  %v318 = vlaneseq
  %v319 = vshrl.u32 %v318, 7
  %v320 = vsub.s32 0, %v319
  %v321 = vrot.slane %v316, %v320
  %v323 = vadd.f32 %v312, %v321
  %v324 = vadd.f32 %v313, %v321
  %v325 = vadd.f32 %v314, %v321
  %v326 = vadd.f32 %v315, %v321
  %v327 = vmul.f32 %v323, %v323
  %v328 = vmul.f32 %v324, %v324
  %v329 = vmul.f32 %v325, %v325
  %v330 = vmul.f32 %v326, %v326
  %v331 = vmul.f32 %v323, %v327
  %v332 = vmul.f32 %v324, %v328
  %v333 = vmul.f32 %v325, %v329
  %v334 = vmul.f32 %v326, %v330
  %v335 = vmul.f32 %v331, 0.044715
  %v336 = vmul.f32 %v332, 0.044715
  %v337 = vmul.f32 %v333, 0.044715
  %v338 = vmul.f32 %v334, 0.044715
  %v339 = vadd.f32 %v323, %v335
  %v340 = vadd.f32 %v324, %v336
  %v341 = vadd.f32 %v325, %v337
  %v342 = vadd.f32 %v326, %v338
  %v343 = vmul.f32 %v339, 0.7978846
  %v344 = vmul.f32 %v340, 0.7978846
  %v345 = vmul.f32 %v341, 0.7978846
  %v346 = vmul.f32 %v342, 0.7978846
  %v347 = vtanh.pop %v343
  %v348 = vtanh.pop %v344
  %v349 = vtanh.pop %v345
  %v350 = vtanh.pop %v346
  %v351 = vadd.f32 %v347, 1.0
  %v352 = vadd.f32 %v348, 1.0
  %v353 = vadd.f32 %v349, 1.0
  %v354 = vadd.f32 %v350, 1.0
  %v355 = vmul.f32 %v351, 0.5
  %v356 = vmul.f32 %v352, 0.5
  %v357 = vmul.f32 %v353, 0.5
  %v358 = vmul.f32 %v354, 0.5
  %v359 = vmul.f32 %v323, %v355
  %v360 = vmul.f32 %v324, %v356
  %v361 = vmul.f32 %v325, %v357
  %v362 = vmul.f32 %v326, %v358
  %v363 = vld [vmem:[%s5] sm:$0x1]
  %v364 = vld [vmem:[%s3] sm:$0xf]
  %v365 = vld [vmem:[%s3 + $0x4] sm:$0xf]
  %v366 = vpack.c.bf16 %v360, %v359
  %v367 = vpack.c.bf16 %v362, %v361
  %v370 = vunpack.c.l.b16 %v364
  %v371 = vunpack.c.l.b16 %v365
  %v372 = vpack.c.b16 %v371, %v370
  %vm373 = vcmask 261120
  %v375 = vsel %vm373, %v372, 0
  %377 = vmatprep.subr.bf16.mxu0 0
  %378 = vmatpush1.bf16.msra.mxu0 0
  %379 = vmatprep.subr.bf16.mxu0 0
  %380 = vmatpush1.bf16.msra.mxu0 0
  %381 = vmatprep.subr.bf16.mxu0 0
  %382 = vmatpush1.bf16.msra.mxu0 0
  %383 = vmatprep.subr.bf16.mxu0 0
  %384 = vmatpush1.bf16.msra.mxu0 0
  %385 = vmatprep.subr.bf16.mxu0 0
  %386 = vmatpush1.bf16.msra.mxu0 0
  %387 = vmatprep.subr.bf16.mxu0 0
  %388 = vmatpush1.bf16.msra.mxu0 0
  %389 = vmatprep.subr.bf16.mxu0 0
  %390 = vmatpush1.bf16.msra.mxu0 %v367
  %391 = vmatprep.subr.bf16.mxu0 0
  %392 = vmatpush1.bf16.msra.mxu0 %v366
  %393 = vmatprep.subr.bf16.mxu0 0
  %394 = vmatpush2.bf16.msra.mxu0 0
  %395 = vmatprep.subr.bf16.mxu0 0
  %396 = vmatpush2.bf16.msra.mxu0 0
  %397 = vmatprep.subr.bf16.mxu0 0
  %398 = vmatpush2.bf16.msra.mxu0 0
  %399 = vmatprep.subr.bf16.mxu0 0
  %400 = vmatpush2.bf16.msra.mxu0 0
  %401 = vmatprep.subr.bf16.mxu0 0
  %402 = vmatpush2.bf16.msra.mxu0 0
  %403 = vmatprep.subr.bf16.mxu0 0
  %404 = vmatpush2.bf16.msra.mxu0 0
  %405 = vmatprep.subr.bf16.mxu0 0
  %406 = vmatpush2.bf16.msra.mxu0 0
  %407 = vmatprep.subr.bf16.mxu0 0
  %408 = vmatpush2.bf16.msra.mxu0 0
  %409 = vmatprep.mubr.bf16.mxu0 0
  %410 = vmatmul.mubr.bf16.gmra.mxu0 %v375
  %v411 = vpop.f32.mrf.mxu0
  %v412 = vadd.f32 0.0, %v411
  %v413 = vpop.f32.mrf.mxu0
  %v414 = vpop.f32.mrf.mxu0
  %v415 = vadd.f32 0.0, %v414
  %v416 = vpop.f32.mrf.mxu0
  %417 = vdwg.mxu0
  %v418 = vld [vmem:[%s4] sm:$0xf]
  %v419 = vld [vmem:[%s4 + $0x4] sm:$0xf]
  %v420 = vld [vmem:[%s4 + $0x8] sm:$0xf]
  %v421 = vld [vmem:[%s4 + $0xc] sm:$0xf]
  %v422 = vpack.c.bf16 %v415, %v412
  %v427 = vunpack.c.l.b16 %v418
  %v428 = vunpack.c.l.b16 %v419
  %v429 = vunpack.c.l.b16 %v420
  %v430 = vunpack.c.l.b16 %v421
  %v431 = vpack.c.b16 %v428, %v427
  %v432 = vpack.c.b16 %v430, %v429
  %v436 = vsel %vm373, %v422, 0
  %438 = vmatprep.subr.bf16.mxu0 0
  %439 = vmatpush1.bf16.msra.mxu0 0
  %440 = vmatprep.subr.bf16.mxu0 0
  %441 = vmatpush1.bf16.msra.mxu0 0
  %442 = vmatprep.subr.bf16.mxu0 0
  %443 = vmatpush1.bf16.msra.mxu0 0
  %444 = vmatprep.subr.bf16.mxu0 0
  %445 = vmatpush1.bf16.msra.mxu0 0
  %446 = vmatprep.subr.bf16.mxu0 0
  %447 = vmatpush1.bf16.msra.mxu0 0
  %448 = vmatprep.subr.bf16.mxu0 0
  %449 = vmatpush1.bf16.msra.mxu0 0
  %450 = vmatprep.subr.bf16.mxu0 0
  %451 = vmatpush1.bf16.msra.mxu0 %v432
  %452 = vmatprep.subr.bf16.mxu0 0
  %453 = vmatpush1.bf16.msra.mxu0 %v431
  %454 = vmatprep.subr.bf16.mxu0 0
  %455 = vmatpush2.bf16.msra.mxu0 0
  %456 = vmatprep.subr.bf16.mxu0 0
  %457 = vmatpush2.bf16.msra.mxu0 0
  %458 = vmatprep.subr.bf16.mxu0 0
  %459 = vmatpush2.bf16.msra.mxu0 0
  %460 = vmatprep.subr.bf16.mxu0 0
  %461 = vmatpush2.bf16.msra.mxu0 0
  %462 = vmatprep.subr.bf16.mxu0 0
  %463 = vmatpush2.bf16.msra.mxu0 0
  %464 = vmatprep.subr.bf16.mxu0 0
  %465 = vmatpush2.bf16.msra.mxu0 0
  %466 = vmatprep.subr.bf16.mxu0 0
  %467 = vmatpush2.bf16.msra.mxu0 0
  %468 = vmatprep.subr.bf16.mxu0 0
  %469 = vmatpush2.bf16.msra.mxu0 0
  %470 = vmatprep.mubr.bf16.mxu0 0
  %471 = vmatmul.mubr.bf16.gmra.mxu0 %v436
  %v472 = vpop.f32.mrf.mxu0
  %v473 = vadd.f32 0.0, %v472
  %v474 = vpop.f32.mrf.mxu0
  %v475 = vpop.f32.mrf.mxu0
  %v476 = vadd.f32 0.0, %v475
  %v477 = vpop.f32.mrf.mxu0
  %478 = vdwg.mxu0
  %v480 = vlaneseq
  %v481 = vshrl.u32 %v480, 7
  %v482 = vsub.s32 0, %v481
  %v483 = vrot.slane %v363, %v482
  %v485 = vadd.f32 %v483, %v473
  %v486 = vadd.f32 %v483, %v476
  %s487 = scalar_lea.vmem %s3, 8
  %v488 = vld [vmem:[%s487] sm:$0xf]
  %v489 = vld [vmem:[%s487 + $0x4] sm:$0xf]
  %v492 = vunpack.c.l.b16 %v488
  %v493 = vunpack.c.l.b16 %v489
  %v494 = vpack.c.b16 %v493, %v492
  %v496 = vsel %vm373, %v494, 0
  %498 = vmatprep.subr.bf16.mxu0 0
  %499 = vmatpush1.bf16.msra.mxu0 0
  %500 = vmatprep.subr.bf16.mxu0 0
  %501 = vmatpush1.bf16.msra.mxu0 0
  %502 = vmatprep.subr.bf16.mxu0 0
  %503 = vmatpush1.bf16.msra.mxu0 0
  %504 = vmatprep.subr.bf16.mxu0 0
  %505 = vmatpush1.bf16.msra.mxu0 0
  %506 = vmatprep.subr.bf16.mxu0 0
  %507 = vmatpush1.bf16.msra.mxu0 0
  %508 = vmatprep.subr.bf16.mxu0 0
  %509 = vmatpush1.bf16.msra.mxu0 0
  %510 = vmatprep.subr.bf16.mxu0 0
  %511 = vmatpush1.bf16.msra.mxu0 %v367
  %512 = vmatprep.subr.bf16.mxu0 0
  %513 = vmatpush1.bf16.msra.mxu0 %v366
  %514 = vmatprep.subr.bf16.mxu0 0
  %515 = vmatpush2.bf16.msra.mxu0 0
  %516 = vmatprep.subr.bf16.mxu0 0
  %517 = vmatpush2.bf16.msra.mxu0 0
  %518 = vmatprep.subr.bf16.mxu0 0
  %519 = vmatpush2.bf16.msra.mxu0 0
  %520 = vmatprep.subr.bf16.mxu0 0
  %521 = vmatpush2.bf16.msra.mxu0 0
  %522 = vmatprep.subr.bf16.mxu0 0
  %523 = vmatpush2.bf16.msra.mxu0 0
  %524 = vmatprep.subr.bf16.mxu0 0
  %525 = vmatpush2.bf16.msra.mxu0 0
  %526 = vmatprep.subr.bf16.mxu0 0
  %527 = vmatpush2.bf16.msra.mxu0 0
  %528 = vmatprep.subr.bf16.mxu0 0
  %529 = vmatpush2.bf16.msra.mxu0 0
  %530 = vmatprep.mubr.bf16.mxu0 0
  %531 = vmatmul.mubr.bf16.gmra.mxu0 %v496
  %v532 = vpop.f32.mrf.mxu0
  %v533 = vadd.f32 0.0, %v532
  %v534 = vpop.f32.mrf.mxu0
  %v535 = vpop.f32.mrf.mxu0
  %v536 = vadd.f32 0.0, %v535
  %v537 = vpop.f32.mrf.mxu0
  %538 = vdwg.mxu0
  %s539 = scalar_lea.vmem %s4, 16
  %v540 = vld [vmem:[%s539] sm:$0xf]
  %v541 = vld [vmem:[%s539 + $0x4] sm:$0xf]
  %v542 = vld [vmem:[%s539 + $0x8] sm:$0xf]
  %v543 = vld [vmem:[%s539 + $0xc] sm:$0xf]
  %v544 = vpack.c.bf16 %v536, %v533
  %v549 = vunpack.c.l.b16 %v540
  %v550 = vunpack.c.l.b16 %v541
  %v551 = vunpack.c.l.b16 %v542
  %v552 = vunpack.c.l.b16 %v543
  %v553 = vpack.c.b16 %v550, %v549
  %v554 = vpack.c.b16 %v552, %v551
  %v558 = vsel %vm373, %v544, 0
  %560 = vmatprep.subr.bf16.mxu0 0
  %561 = vmatpush1.bf16.msra.mxu0 0
  %562 = vmatprep.subr.bf16.mxu0 0
  %563 = vmatpush1.bf16.msra.mxu0 0
  %564 = vmatprep.subr.bf16.mxu0 0
  %565 = vmatpush1.bf16.msra.mxu0 0
  %566 = vmatprep.subr.bf16.mxu0 0
  %567 = vmatpush1.bf16.msra.mxu0 0
  %568 = vmatprep.subr.bf16.mxu0 0
  %569 = vmatpush1.bf16.msra.mxu0 0
  %570 = vmatprep.subr.bf16.mxu0 0
  %571 = vmatpush1.bf16.msra.mxu0 0
  %572 = vmatprep.subr.bf16.mxu0 0
  %573 = vmatpush1.bf16.msra.mxu0 %v554
  %574 = vmatprep.subr.bf16.mxu0 0
  %575 = vmatpush1.bf16.msra.mxu0 %v553
  %576 = vmatprep.subr.bf16.mxu0 0
  %577 = vmatpush2.bf16.msra.mxu0 0
  %578 = vmatprep.subr.bf16.mxu0 0
  %579 = vmatpush2.bf16.msra.mxu0 0
  %580 = vmatprep.subr.bf16.mxu0 0
  %581 = vmatpush2.bf16.msra.mxu0 0
  %582 = vmatprep.subr.bf16.mxu0 0
  %583 = vmatpush2.bf16.msra.mxu0 0
  %584 = vmatprep.subr.bf16.mxu0 0
  %585 = vmatpush2.bf16.msra.mxu0 0
  %586 = vmatprep.subr.bf16.mxu0 0
  %587 = vmatpush2.bf16.msra.mxu0 0
  %588 = vmatprep.subr.bf16.mxu0 0
  %589 = vmatpush2.bf16.msra.mxu0 0
  %590 = vmatprep.subr.bf16.mxu0 0
  %591 = vmatpush2.bf16.msra.mxu0 0
  %592 = vmatprep.mubr.bf16.mxu0 0
  %593 = vmatmul.mubr.bf16.gmra.mxu0 %v558
  %v594 = vpop.f32.mrf.mxu0
  %v595 = vadd.f32 0.0, %v594
  %v596 = vpop.f32.mrf.mxu0
  %v597 = vpop.f32.mrf.mxu0
  %v598 = vadd.f32 0.0, %v597
  %v599 = vpop.f32.mrf.mxu0
  %600 = vdwg.mxu0
  %v601 = vadd.f32 %v485, %v595
  %v602 = vadd.f32 %v486, %v598
  %s603 = scalar_lea.vmem %s3, 16
  %v604 = vld [vmem:[%s603] sm:$0xf]
  %v605 = vld [vmem:[%s603 + $0x4] sm:$0xf]
  %v608 = vunpack.c.l.b16 %v604
  %v609 = vunpack.c.l.b16 %v605
  %v610 = vpack.c.b16 %v609, %v608
  %v612 = vsel %vm373, %v610, 0
  %614 = vmatprep.subr.bf16.mxu0 0
  %615 = vmatpush1.bf16.msra.mxu0 0
  %616 = vmatprep.subr.bf16.mxu0 0
  %617 = vmatpush1.bf16.msra.mxu0 0
  %618 = vmatprep.subr.bf16.mxu0 0
  %619 = vmatpush1.bf16.msra.mxu0 0
  %620 = vmatprep.subr.bf16.mxu0 0
  %621 = vmatpush1.bf16.msra.mxu0 0
  %622 = vmatprep.subr.bf16.mxu0 0
  %623 = vmatpush1.bf16.msra.mxu0 0
  %624 = vmatprep.subr.bf16.mxu0 0
  %625 = vmatpush1.bf16.msra.mxu0 0
  %626 = vmatprep.subr.bf16.mxu0 0
  %627 = vmatpush1.bf16.msra.mxu0 %v367
  %628 = vmatprep.subr.bf16.mxu0 0
  %629 = vmatpush1.bf16.msra.mxu0 %v366
  %630 = vmatprep.subr.bf16.mxu0 0
  %631 = vmatpush2.bf16.msra.mxu0 0
  %632 = vmatprep.subr.bf16.mxu0 0
  %633 = vmatpush2.bf16.msra.mxu0 0
  %634 = vmatprep.subr.bf16.mxu0 0
  %635 = vmatpush2.bf16.msra.mxu0 0
  %636 = vmatprep.subr.bf16.mxu0 0
  %637 = vmatpush2.bf16.msra.mxu0 0
  %638 = vmatprep.subr.bf16.mxu0 0
  %639 = vmatpush2.bf16.msra.mxu0 0
  %640 = vmatprep.subr.bf16.mxu0 0
  %641 = vmatpush2.bf16.msra.mxu0 0
  %642 = vmatprep.subr.bf16.mxu0 0
  %643 = vmatpush2.bf16.msra.mxu0 0
  %644 = vmatprep.subr.bf16.mxu0 0
  %645 = vmatpush2.bf16.msra.mxu0 0
  %646 = vmatprep.mubr.bf16.mxu0 0
  %647 = vmatmul.mubr.bf16.gmra.mxu0 %v612
  %v648 = vpop.f32.mrf.mxu0
  %v649 = vadd.f32 0.0, %v648
  %v650 = vpop.f32.mrf.mxu0
  %v651 = vpop.f32.mrf.mxu0
  %v652 = vadd.f32 0.0, %v651
  %v653 = vpop.f32.mrf.mxu0
  %654 = vdwg.mxu0
  %s655 = scalar_lea.vmem %s4, 32
  %v656 = vld [vmem:[%s655] sm:$0xf]
  %v657 = vld [vmem:[%s655 + $0x4] sm:$0xf]
  %v658 = vld [vmem:[%s655 + $0x8] sm:$0xf]
  %v659 = vld [vmem:[%s655 + $0xc] sm:$0xf]
  %v660 = vpack.c.bf16 %v652, %v649
  %v665 = vunpack.c.l.b16 %v656
  %v666 = vunpack.c.l.b16 %v657
  %v667 = vunpack.c.l.b16 %v658
  %v668 = vunpack.c.l.b16 %v659
  %v669 = vpack.c.b16 %v666, %v665
  %v670 = vpack.c.b16 %v668, %v667
  %v674 = vsel %vm373, %v660, 0
  %676 = vmatprep.subr.bf16.mxu0 0
  %677 = vmatpush1.bf16.msra.mxu0 0
  %678 = vmatprep.subr.bf16.mxu0 0
  %679 = vmatpush1.bf16.msra.mxu0 0
  %680 = vmatprep.subr.bf16.mxu0 0
  %681 = vmatpush1.bf16.msra.mxu0 0
  %682 = vmatprep.subr.bf16.mxu0 0
  %683 = vmatpush1.bf16.msra.mxu0 0
  %684 = vmatprep.subr.bf16.mxu0 0
  %685 = vmatpush1.bf16.msra.mxu0 0
  %686 = vmatprep.subr.bf16.mxu0 0
  %687 = vmatpush1.bf16.msra.mxu0 0
  %688 = vmatprep.subr.bf16.mxu0 0
  %689 = vmatpush1.bf16.msra.mxu0 %v670
  %690 = vmatprep.subr.bf16.mxu0 0
  %691 = vmatpush1.bf16.msra.mxu0 %v669
  %692 = vmatprep.subr.bf16.mxu0 0
  %693 = vmatpush2.bf16.msra.mxu0 0
  %694 = vmatprep.subr.bf16.mxu0 0
  %695 = vmatpush2.bf16.msra.mxu0 0
  %696 = vmatprep.subr.bf16.mxu0 0
  %697 = vmatpush2.bf16.msra.mxu0 0
  %698 = vmatprep.subr.bf16.mxu0 0
  %699 = vmatpush2.bf16.msra.mxu0 0
  %700 = vmatprep.subr.bf16.mxu0 0
  %701 = vmatpush2.bf16.msra.mxu0 0
  %702 = vmatprep.subr.bf16.mxu0 0
  %703 = vmatpush2.bf16.msra.mxu0 0
  %704 = vmatprep.subr.bf16.mxu0 0
  %705 = vmatpush2.bf16.msra.mxu0 0
  %706 = vmatprep.subr.bf16.mxu0 0
  %707 = vmatpush2.bf16.msra.mxu0 0
  %708 = vmatprep.mubr.bf16.mxu0 0
  %709 = vmatmul.mubr.bf16.gmra.mxu0 %v674
  %v710 = vpop.f32.mrf.mxu0
  %v711 = vadd.f32 0.0, %v710
  %v712 = vpop.f32.mrf.mxu0
  %v713 = vpop.f32.mrf.mxu0
  %v714 = vadd.f32 0.0, %v713
  %v715 = vpop.f32.mrf.mxu0
  %716 = vdwg.mxu0
  %v717 = vadd.f32 %v601, %v711
  %v718 = vadd.f32 %v602, %v714
  %v719 = vmul.f32 %v717, %v717
  %v720 = vmul.f32 %v718, %v718
  %v721 = vmul.f32 %v717, %v719
  %v722 = vmul.f32 %v718, %v720
  %v723 = vmul.f32 %v721, 0.044715
  %v724 = vmul.f32 %v722, 0.044715
  %v725 = vadd.f32 %v717, %v723
  %v726 = vadd.f32 %v718, %v724
  %v727 = vmul.f32 %v725, 0.7978846
  %v728 = vmul.f32 %v726, 0.7978846
  %v729 = vtanh.pop %v727
  %v730 = vtanh.pop %v728
  %v731 = vadd.f32 %v729, 1.0
  %v732 = vadd.f32 %v730, 1.0
  %v733 = vmul.f32 %v731, 0.5
  %v734 = vmul.f32 %v732, 0.5
  %v735 = vmul.f32 %v717, %v733
  %v736 = vmul.f32 %v718, %v734
  %v737 = vld [vmem:[%s6] sm:$0xff]
  %v738 = vld [vmem:[%s6 + $0x8] sm:$0xff]
  %v739 = vadd.f32 %v735, %v737
  %v740 = vadd.f32 %v736, %v738
  %v741 = vld [vmem:[%s7] sm:$0xff]
  %v742 = vld [vmem:[%s7 + $0x8] sm:$0xff]
  %v743 = vld [vmem:[%s8] sm:$0x1]
  %v744 = vld [vmem:[%s9] sm:$0x1]
  %v745 = vsel %vm373, %v739, 0.0
  %746 = vadd.xlane.f32.xlu0 %v745
  %v747 = vpop.xlane.xlu0 %746
  %v748 = vsel %vm373, %v740, 0.0
  %749 = vadd.xlane.f32.xlu0 %v748
  %v750 = vpop.xlane.xlu0 %749
  %v751 = vrcp.pop 32.0
  %v752 = vmul.f32 %v747, %v751
  %v753 = vmul.f32 %v750, %v751
  %v754 = vsub.f32 %v739, %v752
  %v755 = vsub.f32 %v740, %v753
  %v756 = vmul.f32 %v754, %v754
  %v757 = vmul.f32 %v755, %v755
  %v758 = vsel %vm373, %v756, 0.0
  %759 = vadd.xlane.f32.xlu0 %v758
  %v760 = vpop.xlane.xlu0 %759
  %v761 = vsel %vm373, %v757, 0.0
  %762 = vadd.xlane.f32.xlu0 %v761
  %v763 = vpop.xlane.xlu0 %762
  %v764 = vmul.f32 %v760, %v751
  %v765 = vmul.f32 %v763, %v751
  %v766 = vadd.f32 %v764, 1e-05
  %v767 = vadd.f32 %v765, 1e-05
  %v768 = vrsqrt.pop %v766
  %v769 = vrsqrt.pop %v767
  %v770 = vmul.f32 %v754, %v768
  %v771 = vmul.f32 %v755, %v769
  %v773 = vlaneseq
  %v774 = vshrl.u32 %v773, 7
  %v775 = vsub.s32 0, %v774
  %v776 = vrot.slane %v743, %v775
  %v778 = vmul.f32 %v770, %v776
  %v779 = vmul.f32 %v771, %v776
  %v781 = vlaneseq
  %v782 = vshrl.u32 %v781, 7
  %v783 = vsub.s32 0, %v782
  %v784 = vrot.slane %v744, %v783
  %v786 = vadd.f32 %v778, %v784
  %v787 = vadd.f32 %v779, %v784
  %v788 = vld [vmem:[%s10] sm:$0xf]
  %v789 = vld [vmem:[%s10 + $0x4] sm:$0xf]
  %v790 = vld [vmem:[%s10 + $0x8] sm:$0xf]
  %v791 = vld [vmem:[%s10 + $0xc] sm:$0xf]
  %v792 = vpack.c.bf16 %v787, %v786
  %v793 = vld [vmem:[%s11] sm:$0x1]
  %v795 = vlaneseq
  %v796 = vshrl.u32 %v795, 7
  %v797 = vsub.s32 0, %v796
  %v798 = vrot.slane %v793, %v797
  %v804 = vunpack.c.l.b16 %v788
  %v805 = vunpack.c.l.b16 %v789
  %v806 = vunpack.c.l.b16 %v790
  %v807 = vunpack.c.l.b16 %v791
  %v808 = vpack.c.b16 %v805, %v804
  %v809 = vpack.c.b16 %v807, %v806
  %v813 = vsel %vm373, %v792, 0
  %815 = vmatprep.subr.bf16.mxu0 0
  %816 = vmatpush1.bf16.msra.mxu0 0
  %817 = vmatprep.subr.bf16.mxu0 0
  %818 = vmatpush1.bf16.msra.mxu0 0
  %819 = vmatprep.subr.bf16.mxu0 0
  %820 = vmatpush1.bf16.msra.mxu0 0
  %821 = vmatprep.subr.bf16.mxu0 0
  %822 = vmatpush1.bf16.msra.mxu0 0
  %823 = vmatprep.subr.bf16.mxu0 0
  %824 = vmatpush1.bf16.msra.mxu0 0
  %825 = vmatprep.subr.bf16.mxu0 0
  %826 = vmatpush1.bf16.msra.mxu0 0
  %827 = vmatprep.subr.bf16.mxu0 0
  %828 = vmatpush1.bf16.msra.mxu0 %v809
  %829 = vmatprep.subr.bf16.mxu0 0
  %830 = vmatpush1.bf16.msra.mxu0 %v808
  %831 = vmatprep.subr.bf16.mxu0 0
  %832 = vmatpush2.bf16.msra.mxu0 0
  %833 = vmatprep.subr.bf16.mxu0 0
  %834 = vmatpush2.bf16.msra.mxu0 0
  %835 = vmatprep.subr.bf16.mxu0 0
  %836 = vmatpush2.bf16.msra.mxu0 0
  %837 = vmatprep.subr.bf16.mxu0 0
  %838 = vmatpush2.bf16.msra.mxu0 0
  %839 = vmatprep.subr.bf16.mxu0 0
  %840 = vmatpush2.bf16.msra.mxu0 0
  %841 = vmatprep.subr.bf16.mxu0 0
  %842 = vmatpush2.bf16.msra.mxu0 0
  %843 = vmatprep.subr.bf16.mxu0 0
  %844 = vmatpush2.bf16.msra.mxu0 0
  %845 = vmatprep.subr.bf16.mxu0 0
  %846 = vmatpush2.bf16.msra.mxu0 0
  %847 = vmatprep.mubr.bf16.mxu0 0
  %848 = vmatmul.mubr.bf16.gmra.mxu0 %v813
  %v849 = vpop.f32.mrf.mxu0
  %v850 = vadd.f32 %v798, %v849
  %v851 = vpop.f32.mrf.mxu0
  %v852 = vpop.f32.mrf.mxu0
  %v853 = vadd.f32 %v798, %v852
  %v854 = vpop.f32.mrf.mxu0
  %855 = vdwg.mxu0
  %v856 = vpack.c.bf16 %v853, %v850
  %858 = vrot.lane.b32.xlu0 %v856, 96
  %v859 = vpop.permute.xlu0 %858
  %v861 = vsel %vm109, %v856, 0
  %v864 = vsel %vm109, %v859, 0
  %866 = vmatprep.subr.bf16.mxu0 0
  %867 = vmatpush1.bf16.xpose.msra.mxu0 0
  %868 = vmatprep.subr.bf16.mxu0 0
  %869 = vmatpush1.bf16.xpose.msra.mxu0 0
  %870 = vmatprep.subr.bf16.mxu0 0
  %871 = vmatpush1.bf16.xpose.msra.mxu0 0
  %872 = vmatprep.subr.bf16.mxu0 0
  %873 = vmatpush1.bf16.xpose.msra.mxu0 0
  %874 = vmatprep.subr.bf16.mxu0 0
  %875 = vmatpush1.bf16.xpose.msra.mxu0 0
  %876 = vmatprep.subr.bf16.mxu0 0
  %877 = vmatpush1.bf16.xpose.msra.mxu0 0
  %878 = vmatprep.subr.bf16.mxu0 0
  %879 = vmatpush1.bf16.xpose.msra.mxu0 0
  %880 = vmatprep.subr.bf16.mxu0 0
  %881 = vmatpush1.bf16.xpose.msra.mxu0 %v864
  %882 = vmatprep.subr.bf16.mxu0 0
  %883 = vmatpush2.bf16.xpose.msra.mxu0 0
  %884 = vmatprep.subr.bf16.mxu0 0
  %885 = vmatpush2.bf16.xpose.msra.mxu0 0
  %886 = vmatprep.subr.bf16.mxu0 0
  %887 = vmatpush2.bf16.xpose.msra.mxu0 0
  %888 = vmatprep.subr.bf16.mxu0 0
  %889 = vmatpush2.bf16.xpose.msra.mxu0 0
  %890 = vmatprep.subr.bf16.mxu0 0
  %891 = vmatpush2.bf16.xpose.msra.mxu0 0
  %892 = vmatprep.subr.bf16.mxu0 0
  %893 = vmatpush2.bf16.xpose.msra.mxu0 0
  %894 = vmatprep.subr.bf16.mxu0 0
  %895 = vmatpush2.bf16.xpose.msra.mxu0 0
  %896 = vmatprep.subr.bf16.mxu0 0
  %897 = vmatpush2.bf16.xpose.msra.mxu0 0
  %898 = vmatprep.mubr.bf16.mxu0 0
  %899 = vmatmul.mubr.bf16.gmra.mxu0 %v861
  %v900 = vpop.f32.mrf.mxu0
  %v901 = vadd.f32 %v741, %v900
  %v902 = vpop.f32.mrf.mxu0
  %v903 = vpop.f32.mrf.mxu0
  %v904 = vadd.f32 %v742, %v903
  %v905 = vpop.f32.mrf.mxu0
  %906 = vdwg.mxu0
  %vm907 = vcmask 130048
  %v908 = vsel %vm907, %v901, -inf
  %909 = vmax.xlane.f32.xlu0 %v908
  %v910 = vpop.xlane.xlu0 %909
  %v911 = vsel %vm907, %v904, -inf
  %912 = vmax.xlane.f32.xlu0 %v911
  %v913 = vpop.xlane.xlu0 %912
  %v914 = vsub.f32 %v901, %v910
  %v915 = vsub.f32 %v904, %v913
  %v916 = vmul.f32 %v914, 1.442695
  %v917 = vpow.pop %v916
  %v918 = vmul.f32 %v915, 1.442695
  %v919 = vpow.pop %v918
  %v920 = vsel %vm907, %v917, 0.0
  %921 = vadd.xlane.f32.xlu0 %v920
  %v922 = vpop.xlane.xlu0 %921
  %v923 = vsel %vm907, %v919, 0.0
  %924 = vadd.xlane.f32.xlu0 %v923
  %v925 = vpop.xlane.xlu0 %924
  %v926 = vrcp.pop %v922
  %v927 = vrcp.pop %v925
  %v928 = vmul.f32 %v917, %v926
  %v929 = vmul.f32 %v919, %v927
  %v930 = vpack.c.bf16 %v929, %v928
  %931 = vrot.lane.b32.xlu0 %v856, 64
  %v932 = vpop.permute.xlu0 %931
  %v935 = vsel %vm907, %v930, 0
  %937 = vmatprep.subr.bf16.mxu0 0
  %938 = vmatpush1.bf16.msra.mxu0 0
  %939 = vmatprep.subr.bf16.mxu0 0
  %940 = vmatpush1.bf16.msra.mxu0 0
  %941 = vmatprep.subr.bf16.mxu0 0
  %942 = vmatpush1.bf16.msra.mxu0 0
  %943 = vmatprep.subr.bf16.mxu0 0
  %944 = vmatpush1.bf16.msra.mxu0 0
  %945 = vmatprep.subr.bf16.mxu0 0
  %946 = vmatpush1.bf16.msra.mxu0 0
  %947 = vmatprep.subr.bf16.mxu0 0
  %948 = vmatpush1.bf16.msra.mxu0 0
  %949 = vmatprep.subr.bf16.mxu0 0
  %950 = vmatpush1.bf16.msra.mxu0 0
  %951 = vmatprep.subr.bf16.mxu0 0
  %952 = vmatpush1.bf16.msra.mxu0 %v932
  %953 = vmatprep.subr.bf16.mxu0 0
  %954 = vmatpush2.bf16.msra.mxu0 0
  %955 = vmatprep.subr.bf16.mxu0 0
  %956 = vmatpush2.bf16.msra.mxu0 0
  %957 = vmatprep.subr.bf16.mxu0 0
  %958 = vmatpush2.bf16.msra.mxu0 0
  %959 = vmatprep.subr.bf16.mxu0 0
  %960 = vmatpush2.bf16.msra.mxu0 0
  %961 = vmatprep.subr.bf16.mxu0 0
  %962 = vmatpush2.bf16.msra.mxu0 0
  %963 = vmatprep.subr.bf16.mxu0 0
  %964 = vmatpush2.bf16.msra.mxu0 0
  %965 = vmatprep.subr.bf16.mxu0 0
  %966 = vmatpush2.bf16.msra.mxu0 0
  %967 = vmatprep.subr.bf16.mxu0 0
  %968 = vmatpush2.bf16.msra.mxu0 0
  %969 = vmatprep.mubr.bf16.mxu0 0
  %970 = vmatmul.mubr.bf16.gmra.mxu0 %v935
  %v971 = vpop.f32.mrf.mxu0
  %v972 = vadd.f32 0.0, %v971
  %v973 = vpop.f32.mrf.mxu0
  %v974 = vpop.f32.mrf.mxu0
  %v975 = vadd.f32 0.0, %v974
  %v976 = vpop.f32.mrf.mxu0
  %977 = vdwg.mxu0
  %978 = vrot.lane.b32.xlu0 %v856, 120
  %v979 = vpop.permute.xlu0 %978
  %980 = vrot.lane.b32.xlu0 %v856, 88
  %v981 = vpop.permute.xlu0 %980
  %v983 = vsel %vm109, %v979, 0
  %v986 = vsel %vm109, %v981, 0
  %988 = vmatprep.subr.bf16.mxu0 0
  %989 = vmatpush1.bf16.xpose.msra.mxu0 0
  %990 = vmatprep.subr.bf16.mxu0 0
  %991 = vmatpush1.bf16.xpose.msra.mxu0 0
  %992 = vmatprep.subr.bf16.mxu0 0
  %993 = vmatpush1.bf16.xpose.msra.mxu0 0
  %994 = vmatprep.subr.bf16.mxu0 0
  %995 = vmatpush1.bf16.xpose.msra.mxu0 0
  %996 = vmatprep.subr.bf16.mxu0 0
  %997 = vmatpush1.bf16.xpose.msra.mxu0 0
  %998 = vmatprep.subr.bf16.mxu0 0
  %999 = vmatpush1.bf16.xpose.msra.mxu0 0
  %1000 = vmatprep.subr.bf16.mxu0 0
  %1001 = vmatpush1.bf16.xpose.msra.mxu0 0
  %1002 = vmatprep.subr.bf16.mxu0 0
  %1003 = vmatpush1.bf16.xpose.msra.mxu0 %v986
  %1004 = vmatprep.subr.bf16.mxu0 0
  %1005 = vmatpush2.bf16.xpose.msra.mxu0 0
  %1006 = vmatprep.subr.bf16.mxu0 0
  %1007 = vmatpush2.bf16.xpose.msra.mxu0 0
  %1008 = vmatprep.subr.bf16.mxu0 0
  %1009 = vmatpush2.bf16.xpose.msra.mxu0 0
  %1010 = vmatprep.subr.bf16.mxu0 0
  %1011 = vmatpush2.bf16.xpose.msra.mxu0 0
  %1012 = vmatprep.subr.bf16.mxu0 0
  %1013 = vmatpush2.bf16.xpose.msra.mxu0 0
  %1014 = vmatprep.subr.bf16.mxu0 0
  %1015 = vmatpush2.bf16.xpose.msra.mxu0 0
  %1016 = vmatprep.subr.bf16.mxu0 0
  %1017 = vmatpush2.bf16.xpose.msra.mxu0 0
  %1018 = vmatprep.subr.bf16.mxu0 0
  %1019 = vmatpush2.bf16.xpose.msra.mxu0 0
  %1020 = vmatprep.mubr.bf16.mxu0 0
  %1021 = vmatmul.mubr.bf16.gmra.mxu0 %v983
  %v1022 = vpop.f32.mrf.mxu0
  %v1023 = vadd.f32 %v741, %v1022
  %v1024 = vpop.f32.mrf.mxu0
  %v1025 = vpop.f32.mrf.mxu0
  %v1026 = vadd.f32 %v742, %v1025
  %v1027 = vpop.f32.mrf.mxu0
  %1028 = vdwg.mxu0
  %v1029 = vsel %vm907, %v1023, -inf
  %1030 = vmax.xlane.f32.xlu0 %v1029
  %v1031 = vpop.xlane.xlu0 %1030
  %v1032 = vsel %vm907, %v1026, -inf
  %1033 = vmax.xlane.f32.xlu0 %v1032
  %v1034 = vpop.xlane.xlu0 %1033
  %v1035 = vsub.f32 %v1023, %v1031
  %v1036 = vsub.f32 %v1026, %v1034
  %v1037 = vmul.f32 %v1035, 1.442695
  %v1038 = vpow.pop %v1037
  %v1039 = vmul.f32 %v1036, 1.442695
  %v1040 = vpow.pop %v1039
  %v1041 = vsel %vm907, %v1038, 0.0
  %1042 = vadd.xlane.f32.xlu0 %v1041
  %v1043 = vpop.xlane.xlu0 %1042
  %v1044 = vsel %vm907, %v1040, 0.0
  %1045 = vadd.xlane.f32.xlu0 %v1044
  %v1046 = vpop.xlane.xlu0 %1045
  %v1047 = vrcp.pop %v1043
  %v1048 = vrcp.pop %v1046
  %v1049 = vmul.f32 %v1038, %v1047
  %v1050 = vmul.f32 %v1040, %v1048
  %v1051 = vpack.c.bf16 %v1050, %v1049
  %1052 = vrot.lane.b32.xlu0 %v856, 56
  %v1053 = vpop.permute.xlu0 %1052
  %v1056 = vsel %vm907, %v1051, 0
  %1058 = vmatprep.subr.bf16.mxu0 0
  %1059 = vmatpush1.bf16.msra.mxu0 0
  %1060 = vmatprep.subr.bf16.mxu0 0
  %1061 = vmatpush1.bf16.msra.mxu0 0
  %1062 = vmatprep.subr.bf16.mxu0 0
  %1063 = vmatpush1.bf16.msra.mxu0 0
  %1064 = vmatprep.subr.bf16.mxu0 0
  %1065 = vmatpush1.bf16.msra.mxu0 0
  %1066 = vmatprep.subr.bf16.mxu0 0
  %1067 = vmatpush1.bf16.msra.mxu0 0
  %1068 = vmatprep.subr.bf16.mxu0 0
  %1069 = vmatpush1.bf16.msra.mxu0 0
  %1070 = vmatprep.subr.bf16.mxu0 0
  %1071 = vmatpush1.bf16.msra.mxu0 0
  %1072 = vmatprep.subr.bf16.mxu0 0
  %1073 = vmatpush1.bf16.msra.mxu0 %v1053
  %1074 = vmatprep.subr.bf16.mxu0 0
  %1075 = vmatpush2.bf16.msra.mxu0 0
  %1076 = vmatprep.subr.bf16.mxu0 0
  %1077 = vmatpush2.bf16.msra.mxu0 0
  %1078 = vmatprep.subr.bf16.mxu0 0
  %1079 = vmatpush2.bf16.msra.mxu0 0
  %1080 = vmatprep.subr.bf16.mxu0 0
  %1081 = vmatpush2.bf16.msra.mxu0 0
  %1082 = vmatprep.subr.bf16.mxu0 0
  %1083 = vmatpush2.bf16.msra.mxu0 0
  %1084 = vmatprep.subr.bf16.mxu0 0
  %1085 = vmatpush2.bf16.msra.mxu0 0
  %1086 = vmatprep.subr.bf16.mxu0 0
  %1087 = vmatpush2.bf16.msra.mxu0 0
  %1088 = vmatprep.subr.bf16.mxu0 0
  %1089 = vmatpush2.bf16.msra.mxu0 0
  %1090 = vmatprep.mubr.bf16.mxu0 0
  %1091 = vmatmul.mubr.bf16.gmra.mxu0 %v1056
  %v1092 = vpop.f32.mrf.mxu0
  %v1093 = vadd.f32 0.0, %v1092
  %v1094 = vpop.f32.mrf.mxu0
  %v1095 = vpop.f32.mrf.mxu0
  %v1096 = vadd.f32 0.0, %v1095
  %v1097 = vpop.f32.mrf.mxu0
  %1098 = vdwg.mxu0
  %1099 = vrot.lane.b32.xlu0 %v856, 112
  %v1100 = vpop.permute.xlu0 %1099
  %1101 = vrot.lane.b32.xlu0 %v856, 80
  %v1102 = vpop.permute.xlu0 %1101
  %v1104 = vsel %vm109, %v1100, 0
  %v1107 = vsel %vm109, %v1102, 0
  %1109 = vmatprep.subr.bf16.mxu0 0
  %1110 = vmatpush1.bf16.xpose.msra.mxu0 0
  %1111 = vmatprep.subr.bf16.mxu0 0
  %1112 = vmatpush1.bf16.xpose.msra.mxu0 0
  %1113 = vmatprep.subr.bf16.mxu0 0
  %1114 = vmatpush1.bf16.xpose.msra.mxu0 0
  %1115 = vmatprep.subr.bf16.mxu0 0
  %1116 = vmatpush1.bf16.xpose.msra.mxu0 0
  %1117 = vmatprep.subr.bf16.mxu0 0
  %1118 = vmatpush1.bf16.xpose.msra.mxu0 0
  %1119 = vmatprep.subr.bf16.mxu0 0
  %1120 = vmatpush1.bf16.xpose.msra.mxu0 0
  %1121 = vmatprep.subr.bf16.mxu0 0
  %1122 = vmatpush1.bf16.xpose.msra.mxu0 0
  %1123 = vmatprep.subr.bf16.mxu0 0
  %1124 = vmatpush1.bf16.xpose.msra.mxu0 %v1107
  %1125 = vmatprep.subr.bf16.mxu0 0
  %1126 = vmatpush2.bf16.xpose.msra.mxu0 0
  %1127 = vmatprep.subr.bf16.mxu0 0
  %1128 = vmatpush2.bf16.xpose.msra.mxu0 0
  %1129 = vmatprep.subr.bf16.mxu0 0
  %1130 = vmatpush2.bf16.xpose.msra.mxu0 0
  %1131 = vmatprep.subr.bf16.mxu0 0
  %1132 = vmatpush2.bf16.xpose.msra.mxu0 0
  %1133 = vmatprep.subr.bf16.mxu0 0
  %1134 = vmatpush2.bf16.xpose.msra.mxu0 0
  %1135 = vmatprep.subr.bf16.mxu0 0
  %1136 = vmatpush2.bf16.xpose.msra.mxu0 0
  %1137 = vmatprep.subr.bf16.mxu0 0
  %1138 = vmatpush2.bf16.xpose.msra.mxu0 0
  %1139 = vmatprep.subr.bf16.mxu0 0
  %1140 = vmatpush2.bf16.xpose.msra.mxu0 0
  %1141 = vmatprep.mubr.bf16.mxu0 0
  %1142 = vmatmul.mubr.bf16.gmra.mxu0 %v1104
  %v1143 = vpop.f32.mrf.mxu0
  %v1144 = vadd.f32 %v741, %v1143
  %v1145 = vpop.f32.mrf.mxu0
  %v1146 = vpop.f32.mrf.mxu0
  %v1147 = vadd.f32 %v742, %v1146
  %v1148 = vpop.f32.mrf.mxu0
  %1149 = vdwg.mxu0
  %v1150 = vsel %vm907, %v1144, -inf
  %1151 = vmax.xlane.f32.xlu0 %v1150
  %v1152 = vpop.xlane.xlu0 %1151
  %v1153 = vsel %vm907, %v1147, -inf
  %1154 = vmax.xlane.f32.xlu0 %v1153
  %v1155 = vpop.xlane.xlu0 %1154
  %v1156 = vsub.f32 %v1144, %v1152
  %v1157 = vsub.f32 %v1147, %v1155
  %v1158 = vmul.f32 %v1156, 1.442695
  %v1159 = vpow.pop %v1158
  %v1160 = vmul.f32 %v1157, 1.442695
  %v1161 = vpow.pop %v1160
  %v1162 = vsel %vm907, %v1159, 0.0
  %1163 = vadd.xlane.f32.xlu0 %v1162
  %v1164 = vpop.xlane.xlu0 %1163
  %v1165 = vsel %vm907, %v1161, 0.0
  %1166 = vadd.xlane.f32.xlu0 %v1165
  %v1167 = vpop.xlane.xlu0 %1166
  %v1168 = vrcp.pop %v1164
  %v1169 = vrcp.pop %v1167
  %v1170 = vmul.f32 %v1159, %v1168
  %v1171 = vmul.f32 %v1161, %v1169
  %v1172 = vpack.c.bf16 %v1171, %v1170
  %1173 = vrot.lane.b32.xlu0 %v856, 48
  %v1174 = vpop.permute.xlu0 %1173
  %v1177 = vsel %vm907, %v1172, 0
  %1179 = vmatprep.subr.bf16.mxu0 0
  %1180 = vmatpush1.bf16.msra.mxu0 0
  %1181 = vmatprep.subr.bf16.mxu0 0
  %1182 = vmatpush1.bf16.msra.mxu0 0
  %1183 = vmatprep.subr.bf16.mxu0 0
  %1184 = vmatpush1.bf16.msra.mxu0 0
  %1185 = vmatprep.subr.bf16.mxu0 0
  %1186 = vmatpush1.bf16.msra.mxu0 0
  %1187 = vmatprep.subr.bf16.mxu0 0
  %1188 = vmatpush1.bf16.msra.mxu0 0
  %1189 = vmatprep.subr.bf16.mxu0 0
  %1190 = vmatpush1.bf16.msra.mxu0 0
  %1191 = vmatprep.subr.bf16.mxu0 0
  %1192 = vmatpush1.bf16.msra.mxu0 0
  %1193 = vmatprep.subr.bf16.mxu0 0
  %1194 = vmatpush1.bf16.msra.mxu0 %v1174
  %1195 = vmatprep.subr.bf16.mxu0 0
  %1196 = vmatpush2.bf16.msra.mxu0 0
  %1197 = vmatprep.subr.bf16.mxu0 0
  %1198 = vmatpush2.bf16.msra.mxu0 0
  %1199 = vmatprep.subr.bf16.mxu0 0
  %1200 = vmatpush2.bf16.msra.mxu0 0
  %1201 = vmatprep.subr.bf16.mxu0 0
  %1202 = vmatpush2.bf16.msra.mxu0 0
  %1203 = vmatprep.subr.bf16.mxu0 0
  %1204 = vmatpush2.bf16.msra.mxu0 0
  %1205 = vmatprep.subr.bf16.mxu0 0
  %1206 = vmatpush2.bf16.msra.mxu0 0
  %1207 = vmatprep.subr.bf16.mxu0 0
  %1208 = vmatpush2.bf16.msra.mxu0 0
  %1209 = vmatprep.subr.bf16.mxu0 0
  %1210 = vmatpush2.bf16.msra.mxu0 0
  %1211 = vmatprep.mubr.bf16.mxu0 0
  %1212 = vmatmul.mubr.bf16.gmra.mxu0 %v1177
  %v1213 = vpop.f32.mrf.mxu0
  %v1214 = vadd.f32 0.0, %v1213
  %v1215 = vpop.f32.mrf.mxu0
  %v1216 = vpop.f32.mrf.mxu0
  %v1217 = vadd.f32 0.0, %v1216
  %v1218 = vpop.f32.mrf.mxu0
  %1219 = vdwg.mxu0
  %1220 = vrot.lane.b32.xlu0 %v856, 104
  %v1221 = vpop.permute.xlu0 %1220
  %1222 = vrot.lane.b32.xlu0 %v856, 72
  %v1223 = vpop.permute.xlu0 %1222
  %v1225 = vsel %vm109, %v1221, 0
  %v1228 = vsel %vm109, %v1223, 0
  %1230 = vmatprep.subr.bf16.mxu0 0
  %1231 = vmatpush1.bf16.xpose.msra.mxu0 0
  %1232 = vmatprep.subr.bf16.mxu0 0
  %1233 = vmatpush1.bf16.xpose.msra.mxu0 0
  %1234 = vmatprep.subr.bf16.mxu0 0
  %1235 = vmatpush1.bf16.xpose.msra.mxu0 0
  %1236 = vmatprep.subr.bf16.mxu0 0
  %1237 = vmatpush1.bf16.xpose.msra.mxu0 0
  %1238 = vmatprep.subr.bf16.mxu0 0
  %1239 = vmatpush1.bf16.xpose.msra.mxu0 0
  %1240 = vmatprep.subr.bf16.mxu0 0
  %1241 = vmatpush1.bf16.xpose.msra.mxu0 0
  %1242 = vmatprep.subr.bf16.mxu0 0
  %1243 = vmatpush1.bf16.xpose.msra.mxu0 0
  %1244 = vmatprep.subr.bf16.mxu0 0
  %1245 = vmatpush1.bf16.xpose.msra.mxu0 %v1228
  %1246 = vmatprep.subr.bf16.mxu0 0
  %1247 = vmatpush2.bf16.xpose.msra.mxu0 0
  %1248 = vmatprep.subr.bf16.mxu0 0
  %1249 = vmatpush2.bf16.xpose.msra.mxu0 0
  %1250 = vmatprep.subr.bf16.mxu0 0
  %1251 = vmatpush2.bf16.xpose.msra.mxu0 0
  %1252 = vmatprep.subr.bf16.mxu0 0
  %1253 = vmatpush2.bf16.xpose.msra.mxu0 0
  %1254 = vmatprep.subr.bf16.mxu0 0
  %1255 = vmatpush2.bf16.xpose.msra.mxu0 0
  %1256 = vmatprep.subr.bf16.mxu0 0
  %1257 = vmatpush2.bf16.xpose.msra.mxu0 0
  %1258 = vmatprep.subr.bf16.mxu0 0
  %1259 = vmatpush2.bf16.xpose.msra.mxu0 0
  %1260 = vmatprep.subr.bf16.mxu0 0
  %1261 = vmatpush2.bf16.xpose.msra.mxu0 0
  %1262 = vmatprep.mubr.bf16.mxu0 0
  %1263 = vmatmul.mubr.bf16.gmra.mxu0 %v1225
  %v1264 = vpop.f32.mrf.mxu0
  %v1265 = vadd.f32 %v741, %v1264
  %v1266 = vpop.f32.mrf.mxu0
  %v1267 = vpop.f32.mrf.mxu0
  %v1268 = vadd.f32 %v742, %v1267
  %v1269 = vpop.f32.mrf.mxu0
  %1270 = vdwg.mxu0
  %v1271 = vsel %vm907, %v1265, -inf
  %1272 = vmax.xlane.f32.xlu0 %v1271
  %v1273 = vpop.xlane.xlu0 %1272
  %v1274 = vsel %vm907, %v1268, -inf
  %1275 = vmax.xlane.f32.xlu0 %v1274
  %v1276 = vpop.xlane.xlu0 %1275
  %v1277 = vsub.f32 %v1265, %v1273
  %v1278 = vsub.f32 %v1268, %v1276
  %v1279 = vmul.f32 %v1277, 1.442695
  %v1280 = vpow.pop %v1279
  %v1281 = vmul.f32 %v1278, 1.442695
  %v1282 = vpow.pop %v1281
  %v1283 = vsel %vm907, %v1280, 0.0
  %1284 = vadd.xlane.f32.xlu0 %v1283
  %v1285 = vpop.xlane.xlu0 %1284
  %v1286 = vsel %vm907, %v1282, 0.0
  %1287 = vadd.xlane.f32.xlu0 %v1286
  %v1288 = vpop.xlane.xlu0 %1287
  %v1289 = vrcp.pop %v1285
  %v1290 = vrcp.pop %v1288
  %v1291 = vmul.f32 %v1280, %v1289
  %v1292 = vmul.f32 %v1282, %v1290
  %v1293 = vpack.c.bf16 %v1292, %v1291
  %1294 = vrot.lane.b32.xlu0 %v856, 40
  %v1295 = vpop.permute.xlu0 %1294
  %v1298 = vsel %vm907, %v1293, 0
  %1300 = vmatprep.subr.bf16.mxu0 0
  %1301 = vmatpush1.bf16.msra.mxu0 0
  %1302 = vmatprep.subr.bf16.mxu0 0
  %1303 = vmatpush1.bf16.msra.mxu0 0
  %1304 = vmatprep.subr.bf16.mxu0 0
  %1305 = vmatpush1.bf16.msra.mxu0 0
  %1306 = vmatprep.subr.bf16.mxu0 0
  %1307 = vmatpush1.bf16.msra.mxu0 0
  %1308 = vmatprep.subr.bf16.mxu0 0
  %1309 = vmatpush1.bf16.msra.mxu0 0
  %1310 = vmatprep.subr.bf16.mxu0 0
  %1311 = vmatpush1.bf16.msra.mxu0 0
  %1312 = vmatprep.subr.bf16.mxu0 0
  %1313 = vmatpush1.bf16.msra.mxu0 0
  %1314 = vmatprep.subr.bf16.mxu0 0
  %1315 = vmatpush1.bf16.msra.mxu0 %v1295
  %1316 = vmatprep.subr.bf16.mxu0 0
  %1317 = vmatpush2.bf16.msra.mxu0 0
  %1318 = vmatprep.subr.bf16.mxu0 0
  %1319 = vmatpush2.bf16.msra.mxu0 0
  %1320 = vmatprep.subr.bf16.mxu0 0
  %1321 = vmatpush2.bf16.msra.mxu0 0
  %1322 = vmatprep.subr.bf16.mxu0 0
  %1323 = vmatpush2.bf16.msra.mxu0 0
  %1324 = vmatprep.subr.bf16.mxu0 0
  %1325 = vmatpush2.bf16.msra.mxu0 0
  %1326 = vmatprep.subr.bf16.mxu0 0
  %1327 = vmatpush2.bf16.msra.mxu0 0
  %1328 = vmatprep.subr.bf16.mxu0 0
  %1329 = vmatpush2.bf16.msra.mxu0 0
  %1330 = vmatprep.subr.bf16.mxu0 0
  %1331 = vmatpush2.bf16.msra.mxu0 0
  %1332 = vmatprep.mubr.bf16.mxu0 0
  %1333 = vmatmul.mubr.bf16.gmra.mxu0 %v1298
  %v1334 = vpop.f32.mrf.mxu0
  %v1335 = vadd.f32 0.0, %v1334
  %v1336 = vpop.f32.mrf.mxu0
  %v1337 = vpop.f32.mrf.mxu0
  %v1338 = vadd.f32 0.0, %v1337
  %v1339 = vpop.f32.mrf.mxu0
  %1340 = vdwg.mxu0
  %1343 = vrot.lane.b32.xlu0 %v1093, 8
  %v1344 = vpop.permute.xlu0 %1343
  %1345 = vrot.lane.b32.xlu0 %v1096, 8
  %v1346 = vpop.permute.xlu0 %1345
  %1351 = vrot.lane.b32.xlu0 %v1214, 16
  %v1352 = vpop.permute.xlu0 %1351
  %1353 = vrot.lane.b32.xlu0 %v1217, 16
  %v1354 = vpop.permute.xlu0 %1353
  %1359 = vrot.lane.b32.xlu0 %v1335, 24
  %v1360 = vpop.permute.xlu0 %1359
  %1361 = vrot.lane.b32.xlu0 %v1338, 24
  %v1362 = vpop.permute.xlu0 %1361
  %v1365 = vsel %vm109, %v972, %v1344
  %v1366 = vsel %vm109, %v975, %v1346
  %v1367 = vsel %vm907, %v1365, %v1352
  %v1368 = vsel %vm907, %v1366, %v1354
  %vm1369 = vcmask 195584
  %v1370 = vsel %vm1369, %v1367, %v1360
  %v1371 = vsel %vm1369, %v1368, %v1362
  %v1372 = vld [vmem:[%s12] sm:$0xf]
  %v1373 = vld [vmem:[%s12 + $0x4] sm:$0xf]
  %v1374 = vld [vmem:[%s12 + $0x8] sm:$0xf]
  %v1375 = vld [vmem:[%s12 + $0xc] sm:$0xf]
  %v1376 = vpack.c.bf16 %v1371, %v1370
  %v1381 = vunpack.c.l.b16 %v1372
  %v1382 = vunpack.c.l.b16 %v1373
  %v1383 = vunpack.c.l.b16 %v1374
  %v1384 = vunpack.c.l.b16 %v1375
  %v1385 = vpack.c.b16 %v1382, %v1381
  %v1386 = vpack.c.b16 %v1384, %v1383
  %v1390 = vsel %vm373, %v1376, 0
  %1392 = vmatprep.subr.bf16.mxu0 0
  %1393 = vmatpush1.bf16.msra.mxu0 0
  %1394 = vmatprep.subr.bf16.mxu0 0
  %1395 = vmatpush1.bf16.msra.mxu0 0
  %1396 = vmatprep.subr.bf16.mxu0 0
  %1397 = vmatpush1.bf16.msra.mxu0 0
  %1398 = vmatprep.subr.bf16.mxu0 0
  %1399 = vmatpush1.bf16.msra.mxu0 0
  %1400 = vmatprep.subr.bf16.mxu0 0
  %1401 = vmatpush1.bf16.msra.mxu0 0
  %1402 = vmatprep.subr.bf16.mxu0 0
  %1403 = vmatpush1.bf16.msra.mxu0 0
  %1404 = vmatprep.subr.bf16.mxu0 0
  %1405 = vmatpush1.bf16.msra.mxu0 %v1386
  %1406 = vmatprep.subr.bf16.mxu0 0
  %1407 = vmatpush1.bf16.msra.mxu0 %v1385
  %1408 = vmatprep.subr.bf16.mxu0 0
  %1409 = vmatpush2.bf16.msra.mxu0 0
  %1410 = vmatprep.subr.bf16.mxu0 0
  %1411 = vmatpush2.bf16.msra.mxu0 0
  %1412 = vmatprep.subr.bf16.mxu0 0
  %1413 = vmatpush2.bf16.msra.mxu0 0
  %1414 = vmatprep.subr.bf16.mxu0 0
  %1415 = vmatpush2.bf16.msra.mxu0 0
  %1416 = vmatprep.subr.bf16.mxu0 0
  %1417 = vmatpush2.bf16.msra.mxu0 0
  %1418 = vmatprep.subr.bf16.mxu0 0
  %1419 = vmatpush2.bf16.msra.mxu0 0
  %1420 = vmatprep.subr.bf16.mxu0 0
  %1421 = vmatpush2.bf16.msra.mxu0 0
  %1422 = vmatprep.subr.bf16.mxu0 0
  %1423 = vmatpush2.bf16.msra.mxu0 0
  %1424 = vmatprep.mubr.bf16.mxu0 0
  %1425 = vmatmul.mubr.bf16.gmra.mxu0 %v1390
  %v1426 = vpop.f32.mrf.mxu0
  %v1427 = vadd.f32 0.0, %v1426
  %v1428 = vpop.f32.mrf.mxu0
  %v1429 = vpop.f32.mrf.mxu0
  %v1430 = vadd.f32 0.0, %v1429
  %v1431 = vpop.f32.mrf.mxu0
  %1432 = vdwg.mxu0
  %v1433 = vadd.f32 %v739, %v1427
  %v1434 = vadd.f32 %v740, %v1430
  %v1435 = vld [vmem:[%s13] sm:$0x1]
  %v1437 = vlaneseq
  %v1438 = vshrl.u32 %v1437, 7
  %v1439 = vsub.s32 0, %v1438
  %v1440 = vrot.slane %v1435, %v1439
  %v1442 = vadd.f32 %v1433, %v1440
  %v1443 = vadd.f32 %v1434, %v1440
  %v1444 = vld [vmem:[%s14] sm:$0x1]
  %v1445 = vld [vmem:[%s15] sm:$0x1]
  %v1446 = vsel %vm373, %v1442, 0.0
  %1447 = vadd.xlane.f32.xlu0 %v1446
  %v1448 = vpop.xlane.xlu0 %1447
  %v1449 = vsel %vm373, %v1443, 0.0
  %1450 = vadd.xlane.f32.xlu0 %v1449
  %v1451 = vpop.xlane.xlu0 %1450
  %v1452 = vmul.f32 %v1448, %v751
  %v1453 = vmul.f32 %v1451, %v751
  %v1454 = vsub.f32 %v1442, %v1452
  %v1455 = vsub.f32 %v1443, %v1453
  %v1456 = vmul.f32 %v1454, %v1454
  %v1457 = vmul.f32 %v1455, %v1455
  %v1458 = vsel %vm373, %v1456, 0.0
  %1459 = vadd.xlane.f32.xlu0 %v1458
  %v1460 = vpop.xlane.xlu0 %1459
  %v1461 = vsel %vm373, %v1457, 0.0
  %1462 = vadd.xlane.f32.xlu0 %v1461
  %v1463 = vpop.xlane.xlu0 %1462
  %v1464 = vmul.f32 %v1460, %v751
  %v1465 = vmul.f32 %v1463, %v751
  %v1466 = vadd.f32 %v1464, 1e-05
  %v1467 = vadd.f32 %v1465, 1e-05
  %v1468 = vrsqrt.pop %v1466
  %v1469 = vrsqrt.pop %v1467
  %v1470 = vmul.f32 %v1454, %v1468
  %v1471 = vmul.f32 %v1455, %v1469
  %v1473 = vlaneseq
  %v1474 = vshrl.u32 %v1473, 7
  %v1475 = vsub.s32 0, %v1474
  %v1476 = vrot.slane %v1444, %v1475
  %v1478 = vmul.f32 %v1470, %v1476
  %v1479 = vmul.f32 %v1471, %v1476
  %v1481 = vlaneseq
  %v1482 = vshrl.u32 %v1481, 7
  %v1483 = vsub.s32 0, %v1482
  %v1484 = vrot.slane %v1445, %v1483
  %v1486 = vadd.f32 %v1478, %v1484
  %v1487 = vadd.f32 %v1479, %v1484
  %v1488 = vld [vmem:[%s16] sm:$0xf]
  %v1489 = vld [vmem:[%s16 + $0x4] sm:$0xf]
  %v1490 = vld [vmem:[%s16 + $0x8] sm:$0xf]
  %v1491 = vld [vmem:[%s16 + $0xc] sm:$0xf]
  %v1492 = vpack.c.bf16 %v1487, %v1486
  %v1493 = vld [vmem:[%s17] sm:$0x1]
  %v1495 = vlaneseq
  %v1496 = vshrl.u32 %v1495, 7
  %v1497 = vsub.s32 0, %v1496
  %v1498 = vrot.slane %v1493, %v1497
  %v1504 = vunpack.c.l.b16 %v1488
  %v1505 = vunpack.c.l.b16 %v1489
  %v1506 = vunpack.c.l.b16 %v1490
  %v1507 = vunpack.c.l.b16 %v1491
  %v1508 = vpack.c.b16 %v1505, %v1504
  %v1509 = vpack.c.b16 %v1507, %v1506
  %v1513 = vsel %vm373, %v1492, 0
  %1515 = vmatprep.subr.bf16.mxu0 0
  %1516 = vmatpush1.bf16.msra.mxu0 0
  %1517 = vmatprep.subr.bf16.mxu0 0
  %1518 = vmatpush1.bf16.msra.mxu0 0
  %1519 = vmatprep.subr.bf16.mxu0 0
  %1520 = vmatpush1.bf16.msra.mxu0 0
  %1521 = vmatprep.subr.bf16.mxu0 0
  %1522 = vmatpush1.bf16.msra.mxu0 0
  %1523 = vmatprep.subr.bf16.mxu0 0
  %1524 = vmatpush1.bf16.msra.mxu0 0
  %1525 = vmatprep.subr.bf16.mxu0 0
  %1526 = vmatpush1.bf16.msra.mxu0 0
  %1527 = vmatprep.subr.bf16.mxu0 0
  %1528 = vmatpush1.bf16.msra.mxu0 %v1509
  %1529 = vmatprep.subr.bf16.mxu0 0
  %1530 = vmatpush1.bf16.msra.mxu0 %v1508
  %1531 = vmatprep.subr.bf16.mxu0 0
  %1532 = vmatpush2.bf16.msra.mxu0 0
  %1533 = vmatprep.subr.bf16.mxu0 0
  %1534 = vmatpush2.bf16.msra.mxu0 0
  %1535 = vmatprep.subr.bf16.mxu0 0
  %1536 = vmatpush2.bf16.msra.mxu0 0
  %1537 = vmatprep.subr.bf16.mxu0 0
  %1538 = vmatpush2.bf16.msra.mxu0 0
  %1539 = vmatprep.subr.bf16.mxu0 0
  %1540 = vmatpush2.bf16.msra.mxu0 0
  %1541 = vmatprep.subr.bf16.mxu0 0
  %1542 = vmatpush2.bf16.msra.mxu0 0
  %1543 = vmatprep.subr.bf16.mxu0 0
  %1544 = vmatpush2.bf16.msra.mxu0 0
  %1545 = vmatprep.subr.bf16.mxu0 0
  %1546 = vmatpush2.bf16.msra.mxu0 0
  %1547 = vmatprep.mubr.bf16.mxu0 0
  %1548 = vmatmul.mubr.bf16.gmra.mxu0 %v1513
  %v1549 = vpop.f32.mrf.mxu0
  %v1550 = vadd.f32 %v1498, %v1549
  %v1551 = vpop.f32.mrf.mxu0
  %v1552 = vpop.f32.mrf.mxu0
  %v1553 = vadd.f32 %v1498, %v1552
  %v1554 = vpop.f32.mrf.mxu0
  %1555 = vdwg.mxu0
  %v1556 = vmul.f32 %v1550, %v1550
  %v1557 = vmul.f32 %v1553, %v1553
  %v1558 = vmul.f32 %v1550, %v1556
  %v1559 = vmul.f32 %v1553, %v1557
  %v1560 = vmul.f32 %v1558, 0.044715
  %v1561 = vmul.f32 %v1559, 0.044715
  %v1562 = vadd.f32 %v1550, %v1560
  %v1563 = vadd.f32 %v1553, %v1561
  %v1564 = vmul.f32 %v1562, 0.7978846
  %v1565 = vmul.f32 %v1563, 0.7978846
  %v1566 = vtanh.pop %v1564
  %v1567 = vtanh.pop %v1565
  %v1568 = vadd.f32 %v1566, 1.0
  %v1569 = vadd.f32 %v1567, 1.0
  %v1570 = vmul.f32 %v1568, 0.5
  %v1571 = vmul.f32 %v1569, 0.5
  %v1572 = vmul.f32 %v1550, %v1570
  %v1573 = vmul.f32 %v1553, %v1571
  %v1574 = vld [vmem:[%s18] sm:$0xf]
  %v1575 = vld [vmem:[%s18 + $0x4] sm:$0xf]
  %v1576 = vld [vmem:[%s18 + $0x8] sm:$0xf]
  %v1577 = vld [vmem:[%s18 + $0xc] sm:$0xf]
  %v1578 = vld [vmem:[%s18 + $0x10] sm:$0xf]
  %v1579 = vld [vmem:[%s18 + $0x14] sm:$0xf]
  %v1580 = vld [vmem:[%s18 + $0x18] sm:$0xf]
  %v1581 = vld [vmem:[%s18 + $0x1c] sm:$0xf]
  %v1582 = vld [vmem:[%s18 + $0x20] sm:$0xf]
  %v1583 = vld [vmem:[%s18 + $0x24] sm:$0xf]
  %v1584 = vld [vmem:[%s18 + $0x28] sm:$0xf]
  %v1585 = vld [vmem:[%s18 + $0x2c] sm:$0xf]
  %v1586 = vld [vmem:[%s18 + $0x30] sm:$0xf]
  %v1587 = vld [vmem:[%s18 + $0x34] sm:$0xf]
  %v1588 = vld [vmem:[%s18 + $0x38] sm:$0xf]
  %v1589 = vld [vmem:[%s18 + $0x3c] sm:$0xf]
  %v1590 = vpack.c.bf16 %v1573, %v1572
  %v1607 = vunpack.c.l.b16 %v1574
  %v1608 = vunpack.c.l.b16 %v1575
  %v1609 = vunpack.c.l.b16 %v1576
  %v1610 = vunpack.c.l.b16 %v1577
  %v1611 = vunpack.c.l.b16 %v1578
  %v1612 = vunpack.c.l.b16 %v1579
  %v1613 = vunpack.c.l.b16 %v1580
  %v1614 = vunpack.c.l.b16 %v1581
  %v1615 = vunpack.c.l.b16 %v1582
  %v1616 = vunpack.c.l.b16 %v1583
  %v1617 = vunpack.c.l.b16 %v1584
  %v1618 = vunpack.c.l.b16 %v1585
  %v1619 = vunpack.c.l.b16 %v1586
  %v1620 = vunpack.c.l.b16 %v1587
  %v1621 = vunpack.c.l.b16 %v1588
  %v1622 = vunpack.c.l.b16 %v1589
  %v1623 = vpack.c.b16 %v1608, %v1607
  %v1624 = vpack.c.b16 %v1610, %v1609
  %v1625 = vpack.c.b16 %v1612, %v1611
  %v1626 = vpack.c.b16 %v1614, %v1613
  %v1627 = vpack.c.b16 %v1616, %v1615
  %v1628 = vpack.c.b16 %v1618, %v1617
  %v1629 = vpack.c.b16 %v1620, %v1619
  %v1630 = vpack.c.b16 %v1622, %v1621
  %1639 = vmatprep.subr.bf16.mxu0 0
  %1640 = vmatpush1.bf16.msra.mxu0 %v1630
  %1641 = vmatprep.subr.bf16.mxu0 0
  %1642 = vmatpush1.bf16.msra.mxu0 %v1629
  %1643 = vmatprep.subr.bf16.mxu0 0
  %1644 = vmatpush1.bf16.msra.mxu0 %v1628
  %1645 = vmatprep.subr.bf16.mxu0 0
  %1646 = vmatpush1.bf16.msra.mxu0 %v1627
  %1647 = vmatprep.subr.bf16.mxu0 0
  %1648 = vmatpush1.bf16.msra.mxu0 %v1626
  %1649 = vmatprep.subr.bf16.mxu0 0
  %1650 = vmatpush1.bf16.msra.mxu0 %v1625
  %1651 = vmatprep.subr.bf16.mxu0 0
  %1652 = vmatpush1.bf16.msra.mxu0 %v1624
  %1653 = vmatprep.subr.bf16.mxu0 0
  %1654 = vmatpush1.bf16.msra.mxu0 %v1623
  %1655 = vmatprep.subr.bf16.mxu0 0
  %1656 = vmatpush2.bf16.msra.mxu0 0
  %1657 = vmatprep.subr.bf16.mxu0 0
  %1658 = vmatpush2.bf16.msra.mxu0 0
  %1659 = vmatprep.subr.bf16.mxu0 0
  %1660 = vmatpush2.bf16.msra.mxu0 0
  %1661 = vmatprep.subr.bf16.mxu0 0
  %1662 = vmatpush2.bf16.msra.mxu0 0
  %1663 = vmatprep.subr.bf16.mxu0 0
  %1664 = vmatpush2.bf16.msra.mxu0 0
  %1665 = vmatprep.subr.bf16.mxu0 0
  %1666 = vmatpush2.bf16.msra.mxu0 0
  %1667 = vmatprep.subr.bf16.mxu0 0
  %1668 = vmatpush2.bf16.msra.mxu0 0
  %1669 = vmatprep.subr.bf16.mxu0 0
  %1670 = vmatpush2.bf16.msra.mxu0 0
  %1671 = vmatprep.mubr.bf16.mxu0 0
  %1672 = vmatmul.mubr.bf16.gmra.mxu0 %v1590
  %v1673 = vpop.f32.mrf.mxu0
  %v1674 = vadd.f32 0.0, %v1673
  %v1675 = vpop.f32.mrf.mxu0
  %v1676 = vpop.f32.mrf.mxu0
  %v1677 = vadd.f32 0.0, %v1676
  %v1678 = vpop.f32.mrf.mxu0
  %1679 = vdwg.mxu0
  %v1680 = vadd.f32 %v1442, %v1674
  %v1681 = vadd.f32 %v1443, %v1677
  %v1682 = vld [vmem:[%s19] sm:$0x1]
  %v1684 = vlaneseq
  %v1685 = vshrl.u32 %v1684, 7
  %v1686 = vsub.s32 0, %v1685
  %v1687 = vrot.slane %v1682, %v1686
  %v1689 = vadd.f32 %v1680, %v1687
  %v1690 = vadd.f32 %v1681, %v1687
  %s1691 = scalar_lea.vmem %s8, 1
  %v1692 = vld [vmem:[%s1691] sm:$0x1]
  %s1693 = scalar_lea.vmem %s9, 1
  %v1694 = vld [vmem:[%s1693] sm:$0x1]
  %v1695 = vsel %vm373, %v1689, 0.0
  %1696 = vadd.xlane.f32.xlu0 %v1695
  %v1697 = vpop.xlane.xlu0 %1696
  %v1698 = vsel %vm373, %v1690, 0.0
  %1699 = vadd.xlane.f32.xlu0 %v1698
  %v1700 = vpop.xlane.xlu0 %1699
  %v1701 = vmul.f32 %v1697, %v751
  %v1702 = vmul.f32 %v1700, %v751
  %v1703 = vsub.f32 %v1689, %v1701
  %v1704 = vsub.f32 %v1690, %v1702
  %v1705 = vmul.f32 %v1703, %v1703
  %v1706 = vmul.f32 %v1704, %v1704
  %v1707 = vsel %vm373, %v1705, 0.0
  %1708 = vadd.xlane.f32.xlu0 %v1707
  %v1709 = vpop.xlane.xlu0 %1708
  %v1710 = vsel %vm373, %v1706, 0.0
  %1711 = vadd.xlane.f32.xlu0 %v1710
  %v1712 = vpop.xlane.xlu0 %1711
  %v1713 = vmul.f32 %v1709, %v751
  %v1714 = vmul.f32 %v1712, %v751
  %v1715 = vadd.f32 %v1713, 1e-05
  %v1716 = vadd.f32 %v1714, 1e-05
  %v1717 = vrsqrt.pop %v1715
  %v1718 = vrsqrt.pop %v1716
  %v1719 = vmul.f32 %v1703, %v1717
  %v1720 = vmul.f32 %v1704, %v1718
  %v1722 = vlaneseq
  %v1723 = vshrl.u32 %v1722, 7
  %v1724 = vsub.s32 0, %v1723
  %v1725 = vrot.slane %v1692, %v1724
  %v1727 = vmul.f32 %v1719, %v1725
  %v1728 = vmul.f32 %v1720, %v1725
  %v1730 = vlaneseq
  %v1731 = vshrl.u32 %v1730, 7
  %v1732 = vsub.s32 0, %v1731
  %v1733 = vrot.slane %v1694, %v1732
  %v1735 = vadd.f32 %v1727, %v1733
  %v1736 = vadd.f32 %v1728, %v1733
  %s1737 = scalar_lea.vmem %s10, 16
  %v1738 = vld [vmem:[%s1737] sm:$0xf]
  %v1739 = vld [vmem:[%s1737 + $0x4] sm:$0xf]
  %v1740 = vld [vmem:[%s1737 + $0x8] sm:$0xf]
  %v1741 = vld [vmem:[%s1737 + $0xc] sm:$0xf]
  %v1742 = vpack.c.bf16 %v1736, %v1735
  %s1743 = scalar_lea.vmem %s11, 1
  %v1744 = vld [vmem:[%s1743] sm:$0x1]
  %v1746 = vlaneseq
  %v1747 = vshrl.u32 %v1746, 7
  %v1748 = vsub.s32 0, %v1747
  %v1749 = vrot.slane %v1744, %v1748
  %v1755 = vunpack.c.l.b16 %v1738
  %v1756 = vunpack.c.l.b16 %v1739
  %v1757 = vunpack.c.l.b16 %v1740
  %v1758 = vunpack.c.l.b16 %v1741
  %v1759 = vpack.c.b16 %v1756, %v1755
  %v1760 = vpack.c.b16 %v1758, %v1757
  %v1764 = vsel %vm373, %v1742, 0
  %1766 = vmatprep.subr.bf16.mxu0 0
  %1767 = vmatpush1.bf16.msra.mxu0 0
  %1768 = vmatprep.subr.bf16.mxu0 0
  %1769 = vmatpush1.bf16.msra.mxu0 0
  %1770 = vmatprep.subr.bf16.mxu0 0
  %1771 = vmatpush1.bf16.msra.mxu0 0
  %1772 = vmatprep.subr.bf16.mxu0 0
  %1773 = vmatpush1.bf16.msra.mxu0 0
  %1774 = vmatprep.subr.bf16.mxu0 0
  %1775 = vmatpush1.bf16.msra.mxu0 0
  %1776 = vmatprep.subr.bf16.mxu0 0
  %1777 = vmatpush1.bf16.msra.mxu0 0
  %1778 = vmatprep.subr.bf16.mxu0 0
  %1779 = vmatpush1.bf16.msra.mxu0 %v1760
  %1780 = vmatprep.subr.bf16.mxu0 0
  %1781 = vmatpush1.bf16.msra.mxu0 %v1759
  %1782 = vmatprep.subr.bf16.mxu0 0
  %1783 = vmatpush2.bf16.msra.mxu0 0
  %1784 = vmatprep.subr.bf16.mxu0 0
  %1785 = vmatpush2.bf16.msra.mxu0 0
  %1786 = vmatprep.subr.bf16.mxu0 0
  %1787 = vmatpush2.bf16.msra.mxu0 0
  %1788 = vmatprep.subr.bf16.mxu0 0
  %1789 = vmatpush2.bf16.msra.mxu0 0
  %1790 = vmatprep.subr.bf16.mxu0 0
  %1791 = vmatpush2.bf16.msra.mxu0 0
  %1792 = vmatprep.subr.bf16.mxu0 0
  %1793 = vmatpush2.bf16.msra.mxu0 0
  %1794 = vmatprep.subr.bf16.mxu0 0
  %1795 = vmatpush2.bf16.msra.mxu0 0
  %1796 = vmatprep.subr.bf16.mxu0 0
  %1797 = vmatpush2.bf16.msra.mxu0 0
  %1798 = vmatprep.mubr.bf16.mxu0 0
  %1799 = vmatmul.mubr.bf16.gmra.mxu0 %v1764
  %v1800 = vpop.f32.mrf.mxu0
  %v1801 = vadd.f32 %v1749, %v1800
  %v1802 = vpop.f32.mrf.mxu0
  %v1803 = vpop.f32.mrf.mxu0
  %v1804 = vadd.f32 %v1749, %v1803
  %v1805 = vpop.f32.mrf.mxu0
  %1806 = vdwg.mxu0
  %v1807 = vpack.c.bf16 %v1804, %v1801
  %1809 = vrot.lane.b32.xlu0 %v1807, 96
  %v1810 = vpop.permute.xlu0 %1809
  %v1812 = vsel %vm109, %v1807, 0
  %v1815 = vsel %vm109, %v1810, 0
  %1817 = vmatprep.subr.bf16.mxu0 0
  %1818 = vmatpush1.bf16.xpose.msra.mxu0 0
  %1819 = vmatprep.subr.bf16.mxu0 0
  %1820 = vmatpush1.bf16.xpose.msra.mxu0 0
  %1821 = vmatprep.subr.bf16.mxu0 0
  %1822 = vmatpush1.bf16.xpose.msra.mxu0 0
  %1823 = vmatprep.subr.bf16.mxu0 0
  %1824 = vmatpush1.bf16.xpose.msra.mxu0 0
  %1825 = vmatprep.subr.bf16.mxu0 0
  %1826 = vmatpush1.bf16.xpose.msra.mxu0 0
  %1827 = vmatprep.subr.bf16.mxu0 0
  %1828 = vmatpush1.bf16.xpose.msra.mxu0 0
  %1829 = vmatprep.subr.bf16.mxu0 0
  %1830 = vmatpush1.bf16.xpose.msra.mxu0 0
  %1831 = vmatprep.subr.bf16.mxu0 0
  %1832 = vmatpush1.bf16.xpose.msra.mxu0 %v1815
  %1833 = vmatprep.subr.bf16.mxu0 0
  %1834 = vmatpush2.bf16.xpose.msra.mxu0 0
  %1835 = vmatprep.subr.bf16.mxu0 0
  %1836 = vmatpush2.bf16.xpose.msra.mxu0 0
  %1837 = vmatprep.subr.bf16.mxu0 0
  %1838 = vmatpush2.bf16.xpose.msra.mxu0 0
  %1839 = vmatprep.subr.bf16.mxu0 0
  %1840 = vmatpush2.bf16.xpose.msra.mxu0 0
  %1841 = vmatprep.subr.bf16.mxu0 0
  %1842 = vmatpush2.bf16.xpose.msra.mxu0 0
  %1843 = vmatprep.subr.bf16.mxu0 0
  %1844 = vmatpush2.bf16.xpose.msra.mxu0 0
  %1845 = vmatprep.subr.bf16.mxu0 0
  %1846 = vmatpush2.bf16.xpose.msra.mxu0 0
  %1847 = vmatprep.subr.bf16.mxu0 0
  %1848 = vmatpush2.bf16.xpose.msra.mxu0 0
  %1849 = vmatprep.mubr.bf16.mxu0 0
  %1850 = vmatmul.mubr.bf16.gmra.mxu0 %v1812
  %v1851 = vpop.f32.mrf.mxu0
  %v1852 = vadd.f32 %v741, %v1851
  %v1853 = vpop.f32.mrf.mxu0
  %v1854 = vpop.f32.mrf.mxu0
  %v1855 = vadd.f32 %v742, %v1854
  %v1856 = vpop.f32.mrf.mxu0
  %1857 = vdwg.mxu0
  %v1858 = vsel %vm907, %v1852, -inf
  %1859 = vmax.xlane.f32.xlu0 %v1858
  %v1860 = vpop.xlane.xlu0 %1859
  %v1861 = vsel %vm907, %v1855, -inf
  %1862 = vmax.xlane.f32.xlu0 %v1861
  %v1863 = vpop.xlane.xlu0 %1862
  %v1864 = vsub.f32 %v1852, %v1860
  %v1865 = vsub.f32 %v1855, %v1863
  %v1866 = vmul.f32 %v1864, 1.442695
  %v1867 = vpow.pop %v1866
  %v1868 = vmul.f32 %v1865, 1.442695
  %v1869 = vpow.pop %v1868
  %v1870 = vsel %vm907, %v1867, 0.0
  %1871 = vadd.xlane.f32.xlu0 %v1870
  %v1872 = vpop.xlane.xlu0 %1871
  %v1873 = vsel %vm907, %v1869, 0.0
  %1874 = vadd.xlane.f32.xlu0 %v1873
  %v1875 = vpop.xlane.xlu0 %1874
  %v1876 = vrcp.pop %v1872
  %v1877 = vrcp.pop %v1875
  %v1878 = vmul.f32 %v1867, %v1876
  %v1879 = vmul.f32 %v1869, %v1877
  %v1880 = vpack.c.bf16 %v1879, %v1878
  %1881 = vrot.lane.b32.xlu0 %v1807, 64
  %v1882 = vpop.permute.xlu0 %1881
  %v1885 = vsel %vm907, %v1880, 0
  %1887 = vmatprep.subr.bf16.mxu0 0
  %1888 = vmatpush1.bf16.msra.mxu0 0
  %1889 = vmatprep.subr.bf16.mxu0 0
  %1890 = vmatpush1.bf16.msra.mxu0 0
  %1891 = vmatprep.subr.bf16.mxu0 0
  %1892 = vmatpush1.bf16.msra.mxu0 0
  %1893 = vmatprep.subr.bf16.mxu0 0
  %1894 = vmatpush1.bf16.msra.mxu0 0
  %1895 = vmatprep.subr.bf16.mxu0 0
  %1896 = vmatpush1.bf16.msra.mxu0 0
  %1897 = vmatprep.subr.bf16.mxu0 0
  %1898 = vmatpush1.bf16.msra.mxu0 0
  %1899 = vmatprep.subr.bf16.mxu0 0
  %1900 = vmatpush1.bf16.msra.mxu0 0
  %1901 = vmatprep.subr.bf16.mxu0 0
  %1902 = vmatpush1.bf16.msra.mxu0 %v1882
  %1903 = vmatprep.subr.bf16.mxu0 0
  %1904 = vmatpush2.bf16.msra.mxu0 0
  %1905 = vmatprep.subr.bf16.mxu0 0
  %1906 = vmatpush2.bf16.msra.mxu0 0
  %1907 = vmatprep.subr.bf16.mxu0 0
  %1908 = vmatpush2.bf16.msra.mxu0 0
  %1909 = vmatprep.subr.bf16.mxu0 0
  %1910 = vmatpush2.bf16.msra.mxu0 0
  %1911 = vmatprep.subr.bf16.mxu0 0
  %1912 = vmatpush2.bf16.msra.mxu0 0
  %1913 = vmatprep.subr.bf16.mxu0 0
  %1914 = vmatpush2.bf16.msra.mxu0 0
  %1915 = vmatprep.subr.bf16.mxu0 0
  %1916 = vmatpush2.bf16.msra.mxu0 0
  %1917 = vmatprep.subr.bf16.mxu0 0
  %1918 = vmatpush2.bf16.msra.mxu0 0
  %1919 = vmatprep.mubr.bf16.mxu0 0
  %1920 = vmatmul.mubr.bf16.gmra.mxu0 %v1885
  %v1921 = vpop.f32.mrf.mxu0
  %v1922 = vadd.f32 0.0, %v1921
  %v1923 = vpop.f32.mrf.mxu0
  %v1924 = vpop.f32.mrf.mxu0
  %v1925 = vadd.f32 0.0, %v1924
  %v1926 = vpop.f32.mrf.mxu0
  %1927 = vdwg.mxu0
  %1928 = vrot.lane.b32.xlu0 %v1807, 120
  %v1929 = vpop.permute.xlu0 %1928
  %1930 = vrot.lane.b32.xlu0 %v1807, 88
  %v1931 = vpop.permute.xlu0 %1930
  %v1933 = vsel %vm109, %v1929, 0
  %v1936 = vsel %vm109, %v1931, 0
  %1938 = vmatprep.subr.bf16.mxu0 0
  %1939 = vmatpush1.bf16.xpose.msra.mxu0 0
  %1940 = vmatprep.subr.bf16.mxu0 0
  %1941 = vmatpush1.bf16.xpose.msra.mxu0 0
  %1942 = vmatprep.subr.bf16.mxu0 0
  %1943 = vmatpush1.bf16.xpose.msra.mxu0 0
  %1944 = vmatprep.subr.bf16.mxu0 0
  %1945 = vmatpush1.bf16.xpose.msra.mxu0 0
  %1946 = vmatprep.subr.bf16.mxu0 0
  %1947 = vmatpush1.bf16.xpose.msra.mxu0 0
  %1948 = vmatprep.subr.bf16.mxu0 0
  %1949 = vmatpush1.bf16.xpose.msra.mxu0 0
  %1950 = vmatprep.subr.bf16.mxu0 0
  %1951 = vmatpush1.bf16.xpose.msra.mxu0 0
  %1952 = vmatprep.subr.bf16.mxu0 0
  %1953 = vmatpush1.bf16.xpose.msra.mxu0 %v1936
  %1954 = vmatprep.subr.bf16.mxu0 0
  %1955 = vmatpush2.bf16.xpose.msra.mxu0 0
  %1956 = vmatprep.subr.bf16.mxu0 0
  %1957 = vmatpush2.bf16.xpose.msra.mxu0 0
  %1958 = vmatprep.subr.bf16.mxu0 0
  %1959 = vmatpush2.bf16.xpose.msra.mxu0 0
  %1960 = vmatprep.subr.bf16.mxu0 0
  %1961 = vmatpush2.bf16.xpose.msra.mxu0 0
  %1962 = vmatprep.subr.bf16.mxu0 0
  %1963 = vmatpush2.bf16.xpose.msra.mxu0 0
  %1964 = vmatprep.subr.bf16.mxu0 0
  %1965 = vmatpush2.bf16.xpose.msra.mxu0 0
  %1966 = vmatprep.subr.bf16.mxu0 0
  %1967 = vmatpush2.bf16.xpose.msra.mxu0 0
  %1968 = vmatprep.subr.bf16.mxu0 0
  %1969 = vmatpush2.bf16.xpose.msra.mxu0 0
  %1970 = vmatprep.mubr.bf16.mxu0 0
  %1971 = vmatmul.mubr.bf16.gmra.mxu0 %v1933
  %v1972 = vpop.f32.mrf.mxu0
  %v1973 = vadd.f32 %v741, %v1972
  %v1974 = vpop.f32.mrf.mxu0
  %v1975 = vpop.f32.mrf.mxu0
  %v1976 = vadd.f32 %v742, %v1975
  %v1977 = vpop.f32.mrf.mxu0
  %1978 = vdwg.mxu0
  %v1979 = vsel %vm907, %v1973, -inf
  %1980 = vmax.xlane.f32.xlu0 %v1979
  %v1981 = vpop.xlane.xlu0 %1980
  %v1982 = vsel %vm907, %v1976, -inf
  %1983 = vmax.xlane.f32.xlu0 %v1982
  %v1984 = vpop.xlane.xlu0 %1983
  %v1985 = vsub.f32 %v1973, %v1981
  %v1986 = vsub.f32 %v1976, %v1984
  %v1987 = vmul.f32 %v1985, 1.442695
  %v1988 = vpow.pop %v1987
  %v1989 = vmul.f32 %v1986, 1.442695
  %v1990 = vpow.pop %v1989
  %v1991 = vsel %vm907, %v1988, 0.0
  %1992 = vadd.xlane.f32.xlu0 %v1991
  %v1993 = vpop.xlane.xlu0 %1992
  %v1994 = vsel %vm907, %v1990, 0.0
  %1995 = vadd.xlane.f32.xlu0 %v1994
  %v1996 = vpop.xlane.xlu0 %1995
  %v1997 = vrcp.pop %v1993
  %v1998 = vrcp.pop %v1996
  %v1999 = vmul.f32 %v1988, %v1997
  %v2000 = vmul.f32 %v1990, %v1998
  %v2001 = vpack.c.bf16 %v2000, %v1999
  %2002 = vrot.lane.b32.xlu0 %v1807, 56
  %v2003 = vpop.permute.xlu0 %2002
  %v2006 = vsel %vm907, %v2001, 0
  %2008 = vmatprep.subr.bf16.mxu0 0
  %2009 = vmatpush1.bf16.msra.mxu0 0
  %2010 = vmatprep.subr.bf16.mxu0 0
  %2011 = vmatpush1.bf16.msra.mxu0 0
  %2012 = vmatprep.subr.bf16.mxu0 0
  %2013 = vmatpush1.bf16.msra.mxu0 0
  %2014 = vmatprep.subr.bf16.mxu0 0
  %2015 = vmatpush1.bf16.msra.mxu0 0
  %2016 = vmatprep.subr.bf16.mxu0 0
  %2017 = vmatpush1.bf16.msra.mxu0 0
  %2018 = vmatprep.subr.bf16.mxu0 0
  %2019 = vmatpush1.bf16.msra.mxu0 0
  %2020 = vmatprep.subr.bf16.mxu0 0
  %2021 = vmatpush1.bf16.msra.mxu0 0
  %2022 = vmatprep.subr.bf16.mxu0 0
  %2023 = vmatpush1.bf16.msra.mxu0 %v2003
  %2024 = vmatprep.subr.bf16.mxu0 0
  %2025 = vmatpush2.bf16.msra.mxu0 0
  %2026 = vmatprep.subr.bf16.mxu0 0
  %2027 = vmatpush2.bf16.msra.mxu0 0
  %2028 = vmatprep.subr.bf16.mxu0 0
  %2029 = vmatpush2.bf16.msra.mxu0 0
  %2030 = vmatprep.subr.bf16.mxu0 0
  %2031 = vmatpush2.bf16.msra.mxu0 0
  %2032 = vmatprep.subr.bf16.mxu0 0
  %2033 = vmatpush2.bf16.msra.mxu0 0
  %2034 = vmatprep.subr.bf16.mxu0 0
  %2035 = vmatpush2.bf16.msra.mxu0 0
  %2036 = vmatprep.subr.bf16.mxu0 0
  %2037 = vmatpush2.bf16.msra.mxu0 0
  %2038 = vmatprep.subr.bf16.mxu0 0
  %2039 = vmatpush2.bf16.msra.mxu0 0
  %2040 = vmatprep.mubr.bf16.mxu0 0
  %2041 = vmatmul.mubr.bf16.gmra.mxu0 %v2006
  %v2042 = vpop.f32.mrf.mxu0
  %v2043 = vadd.f32 0.0, %v2042
  %v2044 = vpop.f32.mrf.mxu0
  %v2045 = vpop.f32.mrf.mxu0
  %v2046 = vadd.f32 0.0, %v2045
  %v2047 = vpop.f32.mrf.mxu0
  %2048 = vdwg.mxu0
  %2049 = vrot.lane.b32.xlu0 %v1807, 112
  %v2050 = vpop.permute.xlu0 %2049
  %2051 = vrot.lane.b32.xlu0 %v1807, 80
  %v2052 = vpop.permute.xlu0 %2051
  %v2054 = vsel %vm109, %v2050, 0
  %v2057 = vsel %vm109, %v2052, 0
  %2059 = vmatprep.subr.bf16.mxu0 0
  %2060 = vmatpush1.bf16.xpose.msra.mxu0 0
  %2061 = vmatprep.subr.bf16.mxu0 0
  %2062 = vmatpush1.bf16.xpose.msra.mxu0 0
  %2063 = vmatprep.subr.bf16.mxu0 0
  %2064 = vmatpush1.bf16.xpose.msra.mxu0 0
  %2065 = vmatprep.subr.bf16.mxu0 0
  %2066 = vmatpush1.bf16.xpose.msra.mxu0 0
  %2067 = vmatprep.subr.bf16.mxu0 0
  %2068 = vmatpush1.bf16.xpose.msra.mxu0 0
  %2069 = vmatprep.subr.bf16.mxu0 0
  %2070 = vmatpush1.bf16.xpose.msra.mxu0 0
  %2071 = vmatprep.subr.bf16.mxu0 0
  %2072 = vmatpush1.bf16.xpose.msra.mxu0 0
  %2073 = vmatprep.subr.bf16.mxu0 0
  %2074 = vmatpush1.bf16.xpose.msra.mxu0 %v2057
  %2075 = vmatprep.subr.bf16.mxu0 0
  %2076 = vmatpush2.bf16.xpose.msra.mxu0 0
  %2077 = vmatprep.subr.bf16.mxu0 0
  %2078 = vmatpush2.bf16.xpose.msra.mxu0 0
  %2079 = vmatprep.subr.bf16.mxu0 0
  %2080 = vmatpush2.bf16.xpose.msra.mxu0 0
  %2081 = vmatprep.subr.bf16.mxu0 0
  %2082 = vmatpush2.bf16.xpose.msra.mxu0 0
  %2083 = vmatprep.subr.bf16.mxu0 0
  %2084 = vmatpush2.bf16.xpose.msra.mxu0 0
  %2085 = vmatprep.subr.bf16.mxu0 0
  %2086 = vmatpush2.bf16.xpose.msra.mxu0 0
  %2087 = vmatprep.subr.bf16.mxu0 0
  %2088 = vmatpush2.bf16.xpose.msra.mxu0 0
  %2089 = vmatprep.subr.bf16.mxu0 0
  %2090 = vmatpush2.bf16.xpose.msra.mxu0 0
  %2091 = vmatprep.mubr.bf16.mxu0 0
  %2092 = vmatmul.mubr.bf16.gmra.mxu0 %v2054
  %v2093 = vpop.f32.mrf.mxu0
  %v2094 = vadd.f32 %v741, %v2093
  %v2095 = vpop.f32.mrf.mxu0
  %v2096 = vpop.f32.mrf.mxu0
  %v2097 = vadd.f32 %v742, %v2096
  %v2098 = vpop.f32.mrf.mxu0
  %2099 = vdwg.mxu0
  %v2100 = vsel %vm907, %v2094, -inf
  %2101 = vmax.xlane.f32.xlu0 %v2100
  %v2102 = vpop.xlane.xlu0 %2101
  %v2103 = vsel %vm907, %v2097, -inf
  %2104 = vmax.xlane.f32.xlu0 %v2103
  %v2105 = vpop.xlane.xlu0 %2104
  %v2106 = vsub.f32 %v2094, %v2102
  %v2107 = vsub.f32 %v2097, %v2105
  %v2108 = vmul.f32 %v2106, 1.442695
  %v2109 = vpow.pop %v2108
  %v2110 = vmul.f32 %v2107, 1.442695
  %v2111 = vpow.pop %v2110
  %v2112 = vsel %vm907, %v2109, 0.0
  %2113 = vadd.xlane.f32.xlu0 %v2112
  %v2114 = vpop.xlane.xlu0 %2113
  %v2115 = vsel %vm907, %v2111, 0.0
  %2116 = vadd.xlane.f32.xlu0 %v2115
  %v2117 = vpop.xlane.xlu0 %2116
  %v2118 = vrcp.pop %v2114
  %v2119 = vrcp.pop %v2117
  %v2120 = vmul.f32 %v2109, %v2118
  %v2121 = vmul.f32 %v2111, %v2119
  %v2122 = vpack.c.bf16 %v2121, %v2120
  %2123 = vrot.lane.b32.xlu0 %v1807, 48
  %v2124 = vpop.permute.xlu0 %2123
  %v2127 = vsel %vm907, %v2122, 0
  %2129 = vmatprep.subr.bf16.mxu0 0
  %2130 = vmatpush1.bf16.msra.mxu0 0
  %2131 = vmatprep.subr.bf16.mxu0 0
  %2132 = vmatpush1.bf16.msra.mxu0 0
  %2133 = vmatprep.subr.bf16.mxu0 0
  %2134 = vmatpush1.bf16.msra.mxu0 0
  %2135 = vmatprep.subr.bf16.mxu0 0
  %2136 = vmatpush1.bf16.msra.mxu0 0
  %2137 = vmatprep.subr.bf16.mxu0 0
  %2138 = vmatpush1.bf16.msra.mxu0 0
  %2139 = vmatprep.subr.bf16.mxu0 0
  %2140 = vmatpush1.bf16.msra.mxu0 0
  %2141 = vmatprep.subr.bf16.mxu0 0
  %2142 = vmatpush1.bf16.msra.mxu0 0
  %2143 = vmatprep.subr.bf16.mxu0 0
  %2144 = vmatpush1.bf16.msra.mxu0 %v2124
  %2145 = vmatprep.subr.bf16.mxu0 0
  %2146 = vmatpush2.bf16.msra.mxu0 0
  %2147 = vmatprep.subr.bf16.mxu0 0
  %2148 = vmatpush2.bf16.msra.mxu0 0
  %2149 = vmatprep.subr.bf16.mxu0 0
  %2150 = vmatpush2.bf16.msra.mxu0 0
  %2151 = vmatprep.subr.bf16.mxu0 0
  %2152 = vmatpush2.bf16.msra.mxu0 0
  %2153 = vmatprep.subr.bf16.mxu0 0
  %2154 = vmatpush2.bf16.msra.mxu0 0
  %2155 = vmatprep.subr.bf16.mxu0 0
  %2156 = vmatpush2.bf16.msra.mxu0 0
  %2157 = vmatprep.subr.bf16.mxu0 0
  %2158 = vmatpush2.bf16.msra.mxu0 0
  %2159 = vmatprep.subr.bf16.mxu0 0
  %2160 = vmatpush2.bf16.msra.mxu0 0
  %2161 = vmatprep.mubr.bf16.mxu0 0
  %2162 = vmatmul.mubr.bf16.gmra.mxu0 %v2127
  %v2163 = vpop.f32.mrf.mxu0
  %v2164 = vadd.f32 0.0, %v2163
  %v2165 = vpop.f32.mrf.mxu0
  %v2166 = vpop.f32.mrf.mxu0
  %v2167 = vadd.f32 0.0, %v2166
  %v2168 = vpop.f32.mrf.mxu0
  %2169 = vdwg.mxu0
  %2170 = vrot.lane.b32.xlu0 %v1807, 104
  %v2171 = vpop.permute.xlu0 %2170
  %2172 = vrot.lane.b32.xlu0 %v1807, 72
  %v2173 = vpop.permute.xlu0 %2172
  %v2175 = vsel %vm109, %v2171, 0
  %v2178 = vsel %vm109, %v2173, 0
  %2180 = vmatprep.subr.bf16.mxu0 0
  %2181 = vmatpush1.bf16.xpose.msra.mxu0 0
  %2182 = vmatprep.subr.bf16.mxu0 0
  %2183 = vmatpush1.bf16.xpose.msra.mxu0 0
  %2184 = vmatprep.subr.bf16.mxu0 0
  %2185 = vmatpush1.bf16.xpose.msra.mxu0 0
  %2186 = vmatprep.subr.bf16.mxu0 0
  %2187 = vmatpush1.bf16.xpose.msra.mxu0 0
  %2188 = vmatprep.subr.bf16.mxu0 0
  %2189 = vmatpush1.bf16.xpose.msra.mxu0 0
  %2190 = vmatprep.subr.bf16.mxu0 0
  %2191 = vmatpush1.bf16.xpose.msra.mxu0 0
  %2192 = vmatprep.subr.bf16.mxu0 0
  %2193 = vmatpush1.bf16.xpose.msra.mxu0 0
  %2194 = vmatprep.subr.bf16.mxu0 0
  %2195 = vmatpush1.bf16.xpose.msra.mxu0 %v2178
  %2196 = vmatprep.subr.bf16.mxu0 0
  %2197 = vmatpush2.bf16.xpose.msra.mxu0 0
  %2198 = vmatprep.subr.bf16.mxu0 0
  %2199 = vmatpush2.bf16.xpose.msra.mxu0 0
  %2200 = vmatprep.subr.bf16.mxu0 0
  %2201 = vmatpush2.bf16.xpose.msra.mxu0 0
  %2202 = vmatprep.subr.bf16.mxu0 0
  %2203 = vmatpush2.bf16.xpose.msra.mxu0 0
  %2204 = vmatprep.subr.bf16.mxu0 0
  %2205 = vmatpush2.bf16.xpose.msra.mxu0 0
  %2206 = vmatprep.subr.bf16.mxu0 0
  %2207 = vmatpush2.bf16.xpose.msra.mxu0 0
  %2208 = vmatprep.subr.bf16.mxu0 0
  %2209 = vmatpush2.bf16.xpose.msra.mxu0 0
  %2210 = vmatprep.subr.bf16.mxu0 0
  %2211 = vmatpush2.bf16.xpose.msra.mxu0 0
  %2212 = vmatprep.mubr.bf16.mxu0 0
  %2213 = vmatmul.mubr.bf16.gmra.mxu0 %v2175
  %v2214 = vpop.f32.mrf.mxu0
  %v2215 = vadd.f32 %v741, %v2214
  %v2216 = vpop.f32.mrf.mxu0
  %v2217 = vpop.f32.mrf.mxu0
  %v2218 = vadd.f32 %v742, %v2217
  %v2219 = vpop.f32.mrf.mxu0
  %2220 = vdwg.mxu0
  %v2221 = vsel %vm907, %v2215, -inf
  %2222 = vmax.xlane.f32.xlu0 %v2221
  %v2223 = vpop.xlane.xlu0 %2222
  %v2224 = vsel %vm907, %v2218, -inf
  %2225 = vmax.xlane.f32.xlu0 %v2224
  %v2226 = vpop.xlane.xlu0 %2225
  %v2227 = vsub.f32 %v2215, %v2223
  %v2228 = vsub.f32 %v2218, %v2226
  %v2229 = vmul.f32 %v2227, 1.442695
  %v2230 = vpow.pop %v2229
  %v2231 = vmul.f32 %v2228, 1.442695
  %v2232 = vpow.pop %v2231
  %v2233 = vsel %vm907, %v2230, 0.0
  %2234 = vadd.xlane.f32.xlu0 %v2233
  %v2235 = vpop.xlane.xlu0 %2234
  %v2236 = vsel %vm907, %v2232, 0.0
  %2237 = vadd.xlane.f32.xlu0 %v2236
  %v2238 = vpop.xlane.xlu0 %2237
  %v2239 = vrcp.pop %v2235
  %v2240 = vrcp.pop %v2238
  %v2241 = vmul.f32 %v2230, %v2239
  %v2242 = vmul.f32 %v2232, %v2240
  %v2243 = vpack.c.bf16 %v2242, %v2241
  %2244 = vrot.lane.b32.xlu0 %v1807, 40
  %v2245 = vpop.permute.xlu0 %2244
  %v2248 = vsel %vm907, %v2243, 0
  %2250 = vmatprep.subr.bf16.mxu0 0
  %2251 = vmatpush1.bf16.msra.mxu0 0
  %2252 = vmatprep.subr.bf16.mxu0 0
  %2253 = vmatpush1.bf16.msra.mxu0 0
  %2254 = vmatprep.subr.bf16.mxu0 0
  %2255 = vmatpush1.bf16.msra.mxu0 0
  %2256 = vmatprep.subr.bf16.mxu0 0
  %2257 = vmatpush1.bf16.msra.mxu0 0
  %2258 = vmatprep.subr.bf16.mxu0 0
  %2259 = vmatpush1.bf16.msra.mxu0 0
  %2260 = vmatprep.subr.bf16.mxu0 0
  %2261 = vmatpush1.bf16.msra.mxu0 0
  %2262 = vmatprep.subr.bf16.mxu0 0
  %2263 = vmatpush1.bf16.msra.mxu0 0
  %2264 = vmatprep.subr.bf16.mxu0 0
  %2265 = vmatpush1.bf16.msra.mxu0 %v2245
  %2266 = vmatprep.subr.bf16.mxu0 0
  %2267 = vmatpush2.bf16.msra.mxu0 0
  %2268 = vmatprep.subr.bf16.mxu0 0
  %2269 = vmatpush2.bf16.msra.mxu0 0
  %2270 = vmatprep.subr.bf16.mxu0 0
  %2271 = vmatpush2.bf16.msra.mxu0 0
  %2272 = vmatprep.subr.bf16.mxu0 0
  %2273 = vmatpush2.bf16.msra.mxu0 0
  %2274 = vmatprep.subr.bf16.mxu0 0
  %2275 = vmatpush2.bf16.msra.mxu0 0
  %2276 = vmatprep.subr.bf16.mxu0 0
  %2277 = vmatpush2.bf16.msra.mxu0 0
  %2278 = vmatprep.subr.bf16.mxu0 0
  %2279 = vmatpush2.bf16.msra.mxu0 0
  %2280 = vmatprep.subr.bf16.mxu0 0
  %2281 = vmatpush2.bf16.msra.mxu0 0
  %2282 = vmatprep.mubr.bf16.mxu0 0
  %2283 = vmatmul.mubr.bf16.gmra.mxu0 %v2248
  %v2284 = vpop.f32.mrf.mxu0
  %v2285 = vadd.f32 0.0, %v2284
  %v2286 = vpop.f32.mrf.mxu0
  %v2287 = vpop.f32.mrf.mxu0
  %v2288 = vadd.f32 0.0, %v2287
  %v2289 = vpop.f32.mrf.mxu0
  %2290 = vdwg.mxu0
  %2293 = vrot.lane.b32.xlu0 %v2043, 8
  %v2294 = vpop.permute.xlu0 %2293
  %2295 = vrot.lane.b32.xlu0 %v2046, 8
  %v2296 = vpop.permute.xlu0 %2295
  %2301 = vrot.lane.b32.xlu0 %v2164, 16
  %v2302 = vpop.permute.xlu0 %2301
  %2303 = vrot.lane.b32.xlu0 %v2167, 16
  %v2304 = vpop.permute.xlu0 %2303
  %2309 = vrot.lane.b32.xlu0 %v2285, 24
  %v2310 = vpop.permute.xlu0 %2309
  %2311 = vrot.lane.b32.xlu0 %v2288, 24
  %v2312 = vpop.permute.xlu0 %2311
  %v2315 = vsel %vm109, %v1922, %v2294
  %v2316 = vsel %vm109, %v1925, %v2296
  %v2317 = vsel %vm907, %v2315, %v2302
  %v2318 = vsel %vm907, %v2316, %v2304
  %v2319 = vsel %vm1369, %v2317, %v2310
  %v2320 = vsel %vm1369, %v2318, %v2312
  %s2321 = scalar_lea.vmem %s12, 16
  %v2322 = vld [vmem:[%s2321] sm:$0xf]
  %v2323 = vld [vmem:[%s2321 + $0x4] sm:$0xf]
  %v2324 = vld [vmem:[%s2321 + $0x8] sm:$0xf]
  %v2325 = vld [vmem:[%s2321 + $0xc] sm:$0xf]
  %v2326 = vpack.c.bf16 %v2320, %v2319
  %v2331 = vunpack.c.l.b16 %v2322
  %v2332 = vunpack.c.l.b16 %v2323
  %v2333 = vunpack.c.l.b16 %v2324
  %v2334 = vunpack.c.l.b16 %v2325
  %v2335 = vpack.c.b16 %v2332, %v2331
  %v2336 = vpack.c.b16 %v2334, %v2333
  %v2340 = vsel %vm373, %v2326, 0
  %2342 = vmatprep.subr.bf16.mxu0 0
  %2343 = vmatpush1.bf16.msra.mxu0 0
  %2344 = vmatprep.subr.bf16.mxu0 0
  %2345 = vmatpush1.bf16.msra.mxu0 0
  %2346 = vmatprep.subr.bf16.mxu0 0
  %2347 = vmatpush1.bf16.msra.mxu0 0
  %2348 = vmatprep.subr.bf16.mxu0 0
  %2349 = vmatpush1.bf16.msra.mxu0 0
  %2350 = vmatprep.subr.bf16.mxu0 0
  %2351 = vmatpush1.bf16.msra.mxu0 0
  %2352 = vmatprep.subr.bf16.mxu0 0
  %2353 = vmatpush1.bf16.msra.mxu0 0
  %2354 = vmatprep.subr.bf16.mxu0 0
  %2355 = vmatpush1.bf16.msra.mxu0 %v2336
  %2356 = vmatprep.subr.bf16.mxu0 0
  %2357 = vmatpush1.bf16.msra.mxu0 %v2335
  %2358 = vmatprep.subr.bf16.mxu0 0
  %2359 = vmatpush2.bf16.msra.mxu0 0
  %2360 = vmatprep.subr.bf16.mxu0 0
  %2361 = vmatpush2.bf16.msra.mxu0 0
  %2362 = vmatprep.subr.bf16.mxu0 0
  %2363 = vmatpush2.bf16.msra.mxu0 0
  %2364 = vmatprep.subr.bf16.mxu0 0
  %2365 = vmatpush2.bf16.msra.mxu0 0
  %2366 = vmatprep.subr.bf16.mxu0 0
  %2367 = vmatpush2.bf16.msra.mxu0 0
  %2368 = vmatprep.subr.bf16.mxu0 0
  %2369 = vmatpush2.bf16.msra.mxu0 0
  %2370 = vmatprep.subr.bf16.mxu0 0
  %2371 = vmatpush2.bf16.msra.mxu0 0
  %2372 = vmatprep.subr.bf16.mxu0 0
  %2373 = vmatpush2.bf16.msra.mxu0 0
  %2374 = vmatprep.mubr.bf16.mxu0 0
  %2375 = vmatmul.mubr.bf16.gmra.mxu0 %v2340
  %v2376 = vpop.f32.mrf.mxu0
  %v2377 = vadd.f32 0.0, %v2376
  %v2378 = vpop.f32.mrf.mxu0
  %v2379 = vpop.f32.mrf.mxu0
  %v2380 = vadd.f32 0.0, %v2379
  %v2381 = vpop.f32.mrf.mxu0
  %2382 = vdwg.mxu0
  %v2383 = vadd.f32 %v1689, %v2377
  %v2384 = vadd.f32 %v1690, %v2380
  %s2385 = scalar_lea.vmem %s13, 1
  %v2386 = vld [vmem:[%s2385] sm:$0x1]
  %v2388 = vlaneseq
  %v2389 = vshrl.u32 %v2388, 7
  %v2390 = vsub.s32 0, %v2389
  %v2391 = vrot.slane %v2386, %v2390
  %v2393 = vadd.f32 %v2383, %v2391
  %v2394 = vadd.f32 %v2384, %v2391
  %s2395 = scalar_lea.vmem %s14, 1
  %v2396 = vld [vmem:[%s2395] sm:$0x1]
  %s2397 = scalar_lea.vmem %s15, 1
  %v2398 = vld [vmem:[%s2397] sm:$0x1]
  %v2399 = vsel %vm373, %v2393, 0.0
  %2400 = vadd.xlane.f32.xlu0 %v2399
  %v2401 = vpop.xlane.xlu0 %2400
  %v2402 = vsel %vm373, %v2394, 0.0
  %2403 = vadd.xlane.f32.xlu0 %v2402
  %v2404 = vpop.xlane.xlu0 %2403
  %v2405 = vmul.f32 %v2401, %v751
  %v2406 = vmul.f32 %v2404, %v751
  %v2407 = vsub.f32 %v2393, %v2405
  %v2408 = vsub.f32 %v2394, %v2406
  %v2409 = vmul.f32 %v2407, %v2407
  %v2410 = vmul.f32 %v2408, %v2408
  %v2411 = vsel %vm373, %v2409, 0.0
  %2412 = vadd.xlane.f32.xlu0 %v2411
  %v2413 = vpop.xlane.xlu0 %2412
  %v2414 = vsel %vm373, %v2410, 0.0
  %2415 = vadd.xlane.f32.xlu0 %v2414
  %v2416 = vpop.xlane.xlu0 %2415
  %v2417 = vmul.f32 %v2413, %v751
  %v2418 = vmul.f32 %v2416, %v751
  %v2419 = vadd.f32 %v2417, 1e-05
  %v2420 = vadd.f32 %v2418, 1e-05
  %v2421 = vrsqrt.pop %v2419
  %v2422 = vrsqrt.pop %v2420
  %v2423 = vmul.f32 %v2407, %v2421
  %v2424 = vmul.f32 %v2408, %v2422
  %v2426 = vlaneseq
  %v2427 = vshrl.u32 %v2426, 7
  %v2428 = vsub.s32 0, %v2427
  %v2429 = vrot.slane %v2396, %v2428
  %v2431 = vmul.f32 %v2423, %v2429
  %v2432 = vmul.f32 %v2424, %v2429
  %v2434 = vlaneseq
  %v2435 = vshrl.u32 %v2434, 7
  %v2436 = vsub.s32 0, %v2435
  %v2437 = vrot.slane %v2398, %v2436
  %v2439 = vadd.f32 %v2431, %v2437
  %v2440 = vadd.f32 %v2432, %v2437
  %s2441 = scalar_lea.vmem %s16, 16
  %v2442 = vld [vmem:[%s2441] sm:$0xf]
  %v2443 = vld [vmem:[%s2441 + $0x4] sm:$0xf]
  %v2444 = vld [vmem:[%s2441 + $0x8] sm:$0xf]
  %v2445 = vld [vmem:[%s2441 + $0xc] sm:$0xf]
  %v2446 = vpack.c.bf16 %v2440, %v2439
  %s2447 = scalar_lea.vmem %s17, 1
  %v2448 = vld [vmem:[%s2447] sm:$0x1]
  %v2450 = vlaneseq
  %v2451 = vshrl.u32 %v2450, 7
  %v2452 = vsub.s32 0, %v2451
  %v2453 = vrot.slane %v2448, %v2452
  %v2459 = vunpack.c.l.b16 %v2442
  %v2460 = vunpack.c.l.b16 %v2443
  %v2461 = vunpack.c.l.b16 %v2444
  %v2462 = vunpack.c.l.b16 %v2445
  %v2463 = vpack.c.b16 %v2460, %v2459
  %v2464 = vpack.c.b16 %v2462, %v2461
  %v2468 = vsel %vm373, %v2446, 0
  %2470 = vmatprep.subr.bf16.mxu0 0
  %2471 = vmatpush1.bf16.msra.mxu0 0
  %2472 = vmatprep.subr.bf16.mxu0 0
  %2473 = vmatpush1.bf16.msra.mxu0 0
  %2474 = vmatprep.subr.bf16.mxu0 0
  %2475 = vmatpush1.bf16.msra.mxu0 0
  %2476 = vmatprep.subr.bf16.mxu0 0
  %2477 = vmatpush1.bf16.msra.mxu0 0
  %2478 = vmatprep.subr.bf16.mxu0 0
  %2479 = vmatpush1.bf16.msra.mxu0 0
  %2480 = vmatprep.subr.bf16.mxu0 0
  %2481 = vmatpush1.bf16.msra.mxu0 0
  %2482 = vmatprep.subr.bf16.mxu0 0
  %2483 = vmatpush1.bf16.msra.mxu0 %v2464
  %2484 = vmatprep.subr.bf16.mxu0 0
  %2485 = vmatpush1.bf16.msra.mxu0 %v2463
  %2486 = vmatprep.subr.bf16.mxu0 0
  %2487 = vmatpush2.bf16.msra.mxu0 0
  %2488 = vmatprep.subr.bf16.mxu0 0
  %2489 = vmatpush2.bf16.msra.mxu0 0
  %2490 = vmatprep.subr.bf16.mxu0 0
  %2491 = vmatpush2.bf16.msra.mxu0 0
  %2492 = vmatprep.subr.bf16.mxu0 0
  %2493 = vmatpush2.bf16.msra.mxu0 0
  %2494 = vmatprep.subr.bf16.mxu0 0
  %2495 = vmatpush2.bf16.msra.mxu0 0
  %2496 = vmatprep.subr.bf16.mxu0 0
  %2497 = vmatpush2.bf16.msra.mxu0 0
  %2498 = vmatprep.subr.bf16.mxu0 0
  %2499 = vmatpush2.bf16.msra.mxu0 0
  %2500 = vmatprep.subr.bf16.mxu0 0
  %2501 = vmatpush2.bf16.msra.mxu0 0
  %2502 = vmatprep.mubr.bf16.mxu0 0
  %2503 = vmatmul.mubr.bf16.gmra.mxu0 %v2468
  %v2504 = vpop.f32.mrf.mxu0
  %v2505 = vadd.f32 %v2453, %v2504
  %v2506 = vpop.f32.mrf.mxu0
  %v2507 = vpop.f32.mrf.mxu0
  %v2508 = vadd.f32 %v2453, %v2507
  %v2509 = vpop.f32.mrf.mxu0
  %2510 = vdwg.mxu0
  %v2511 = vmul.f32 %v2505, %v2505
  %v2512 = vmul.f32 %v2508, %v2508
  %v2513 = vmul.f32 %v2505, %v2511
  %v2514 = vmul.f32 %v2508, %v2512
  %v2515 = vmul.f32 %v2513, 0.044715
  %v2516 = vmul.f32 %v2514, 0.044715
  %v2517 = vadd.f32 %v2505, %v2515
  %v2518 = vadd.f32 %v2508, %v2516
  %v2519 = vmul.f32 %v2517, 0.7978846
  %v2520 = vmul.f32 %v2518, 0.7978846
  %v2521 = vtanh.pop %v2519
  %v2522 = vtanh.pop %v2520
  %v2523 = vadd.f32 %v2521, 1.0
  %v2524 = vadd.f32 %v2522, 1.0
  %v2525 = vmul.f32 %v2523, 0.5
  %v2526 = vmul.f32 %v2524, 0.5
  %v2527 = vmul.f32 %v2505, %v2525
  %v2528 = vmul.f32 %v2508, %v2526
  %s2529 = scalar_lea.vmem %s18, 64
  %v2530 = vld [vmem:[%s2529] sm:$0xf]
  %v2531 = vld [vmem:[%s2529 + $0x4] sm:$0xf]
  %v2532 = vld [vmem:[%s2529 + $0x8] sm:$0xf]
  %v2533 = vld [vmem:[%s2529 + $0xc] sm:$0xf]
  %v2534 = vld [vmem:[%s2529 + $0x10] sm:$0xf]
  %v2535 = vld [vmem:[%s2529 + $0x14] sm:$0xf]
  %v2536 = vld [vmem:[%s2529 + $0x18] sm:$0xf]
  %v2537 = vld [vmem:[%s2529 + $0x1c] sm:$0xf]
  %v2538 = vld [vmem:[%s2529 + $0x20] sm:$0xf]
  %v2539 = vld [vmem:[%s2529 + $0x24] sm:$0xf]
  %v2540 = vld [vmem:[%s2529 + $0x28] sm:$0xf]
  %v2541 = vld [vmem:[%s2529 + $0x2c] sm:$0xf]
  %v2542 = vld [vmem:[%s2529 + $0x30] sm:$0xf]
  %v2543 = vld [vmem:[%s2529 + $0x34] sm:$0xf]
  %v2544 = vld [vmem:[%s2529 + $0x38] sm:$0xf]
  %v2545 = vld [vmem:[%s2529 + $0x3c] sm:$0xf]
  %v2546 = vpack.c.bf16 %v2528, %v2527
  %v2563 = vunpack.c.l.b16 %v2530
  %v2564 = vunpack.c.l.b16 %v2531
  %v2565 = vunpack.c.l.b16 %v2532
  %v2566 = vunpack.c.l.b16 %v2533
  %v2567 = vunpack.c.l.b16 %v2534
  %v2568 = vunpack.c.l.b16 %v2535
  %v2569 = vunpack.c.l.b16 %v2536
  %v2570 = vunpack.c.l.b16 %v2537
  %v2571 = vunpack.c.l.b16 %v2538
  %v2572 = vunpack.c.l.b16 %v2539
  %v2573 = vunpack.c.l.b16 %v2540
  %v2574 = vunpack.c.l.b16 %v2541
  %v2575 = vunpack.c.l.b16 %v2542
  %v2576 = vunpack.c.l.b16 %v2543
  %v2577 = vunpack.c.l.b16 %v2544
  %v2578 = vunpack.c.l.b16 %v2545
  %v2579 = vpack.c.b16 %v2564, %v2563
  %v2580 = vpack.c.b16 %v2566, %v2565
  %v2581 = vpack.c.b16 %v2568, %v2567
  %v2582 = vpack.c.b16 %v2570, %v2569
  %v2583 = vpack.c.b16 %v2572, %v2571
  %v2584 = vpack.c.b16 %v2574, %v2573
  %v2585 = vpack.c.b16 %v2576, %v2575
  %v2586 = vpack.c.b16 %v2578, %v2577
  %2595 = vmatprep.subr.bf16.mxu0 0
  %2596 = vmatpush1.bf16.msra.mxu0 %v2586
  %2597 = vmatprep.subr.bf16.mxu0 0
  %2598 = vmatpush1.bf16.msra.mxu0 %v2585
  %2599 = vmatprep.subr.bf16.mxu0 0
  %2600 = vmatpush1.bf16.msra.mxu0 %v2584
  %2601 = vmatprep.subr.bf16.mxu0 0
  %2602 = vmatpush1.bf16.msra.mxu0 %v2583
  %2603 = vmatprep.subr.bf16.mxu0 0
  %2604 = vmatpush1.bf16.msra.mxu0 %v2582
  %2605 = vmatprep.subr.bf16.mxu0 0
  %2606 = vmatpush1.bf16.msra.mxu0 %v2581
  %2607 = vmatprep.subr.bf16.mxu0 0
  %2608 = vmatpush1.bf16.msra.mxu0 %v2580
  %2609 = vmatprep.subr.bf16.mxu0 0
  %2610 = vmatpush1.bf16.msra.mxu0 %v2579
  %2611 = vmatprep.subr.bf16.mxu0 0
  %2612 = vmatpush2.bf16.msra.mxu0 0
  %2613 = vmatprep.subr.bf16.mxu0 0
  %2614 = vmatpush2.bf16.msra.mxu0 0
  %2615 = vmatprep.subr.bf16.mxu0 0
  %2616 = vmatpush2.bf16.msra.mxu0 0
  %2617 = vmatprep.subr.bf16.mxu0 0
  %2618 = vmatpush2.bf16.msra.mxu0 0
  %2619 = vmatprep.subr.bf16.mxu0 0
  %2620 = vmatpush2.bf16.msra.mxu0 0
  %2621 = vmatprep.subr.bf16.mxu0 0
  %2622 = vmatpush2.bf16.msra.mxu0 0
  %2623 = vmatprep.subr.bf16.mxu0 0
  %2624 = vmatpush2.bf16.msra.mxu0 0
  %2625 = vmatprep.subr.bf16.mxu0 0
  %2626 = vmatpush2.bf16.msra.mxu0 0
  %2627 = vmatprep.mubr.bf16.mxu0 0
  %2628 = vmatmul.mubr.bf16.gmra.mxu0 %v2546
  %v2629 = vpop.f32.mrf.mxu0
  %v2630 = vadd.f32 0.0, %v2629
  %v2631 = vpop.f32.mrf.mxu0
  %v2632 = vpop.f32.mrf.mxu0
  %v2633 = vadd.f32 0.0, %v2632
  %v2634 = vpop.f32.mrf.mxu0
  %2635 = vdwg.mxu0
  %v2636 = vadd.f32 %v2393, %v2630
  %v2637 = vadd.f32 %v2394, %v2633
  %s2638 = scalar_lea.vmem %s19, 1
  %v2639 = vld [vmem:[%s2638] sm:$0x1]
  %v2641 = vlaneseq
  %v2642 = vshrl.u32 %v2641, 7
  %v2643 = vsub.s32 0, %v2642
  %v2644 = vrot.slane %v2639, %v2643
  %v2646 = vadd.f32 %v2636, %v2644
  %v2647 = vadd.f32 %v2637, %v2644
  %v2648 = vld [vmem:[%s20] sm:$0x1]
  %v2649 = vld [vmem:[%s21] sm:$0x1]
  %v2650 = vsel %vm373, %v2646, 0.0
  %2651 = vadd.xlane.f32.xlu0 %v2650
  %v2652 = vpop.xlane.xlu0 %2651
  %v2653 = vsel %vm373, %v2647, 0.0
  %2654 = vadd.xlane.f32.xlu0 %v2653
  %v2655 = vpop.xlane.xlu0 %2654
  %v2656 = vmul.f32 %v2652, %v751
  %v2657 = vmul.f32 %v2655, %v751
  %v2658 = vsub.f32 %v2646, %v2656
  %v2659 = vsub.f32 %v2647, %v2657
  %v2660 = vmul.f32 %v2658, %v2658
  %v2661 = vmul.f32 %v2659, %v2659
  %v2662 = vsel %vm373, %v2660, 0.0
  %2663 = vadd.xlane.f32.xlu0 %v2662
  %v2664 = vpop.xlane.xlu0 %2663
  %v2665 = vsel %vm373, %v2661, 0.0
  %2666 = vadd.xlane.f32.xlu0 %v2665
  %v2667 = vpop.xlane.xlu0 %2666
  %v2668 = vmul.f32 %v2664, %v751
  %v2669 = vmul.f32 %v2667, %v751
  %v2670 = vadd.f32 %v2668, 1e-05
  %v2671 = vadd.f32 %v2669, 1e-05
  %v2672 = vrsqrt.pop %v2670
  %v2673 = vrsqrt.pop %v2671
  %v2674 = vmul.f32 %v2658, %v2672
  %v2675 = vmul.f32 %v2659, %v2673
  %v2677 = vlaneseq
  %v2678 = vshrl.u32 %v2677, 7
  %v2679 = vsub.s32 0, %v2678
  %v2680 = vrot.slane %v2648, %v2679
  %v2682 = vmul.f32 %v2674, %v2680
  %v2683 = vmul.f32 %v2675, %v2680
  %v2685 = vlaneseq
  %v2686 = vshrl.u32 %v2685, 7
  %v2687 = vsub.s32 0, %v2686
  %v2688 = vrot.slane %v2649, %v2687
  %v2690 = vadd.f32 %v2682, %v2688
  %v2691 = vadd.f32 %v2683, %v2688
  %v2692 = vld [vmem:[%s22] sm:$0xf]
  %v2693 = vpack.c.bf16 %v2691, %v2690
  %v2695 = vsel %vm907, %v2692, 0
  %2697 = vmatprep.subr.bf16.mxu0 0
  %2698 = vmatpush1.bf16.msra.mxu0 0
  %2699 = vmatprep.subr.bf16.mxu0 0
  %2700 = vmatpush1.bf16.msra.mxu0 0
  %2701 = vmatprep.subr.bf16.mxu0 0
  %2702 = vmatpush1.bf16.msra.mxu0 0
  %2703 = vmatprep.subr.bf16.mxu0 0
  %2704 = vmatpush1.bf16.msra.mxu0 0
  %2705 = vmatprep.subr.bf16.mxu0 0
  %2706 = vmatpush1.bf16.msra.mxu0 0
  %2707 = vmatprep.subr.bf16.mxu0 0
  %2708 = vmatpush1.bf16.msra.mxu0 0
  %2709 = vmatprep.subr.bf16.mxu0 0
  %2710 = vmatpush1.bf16.msra.mxu0 0
  %2711 = vmatprep.subr.bf16.mxu0 0
  %2712 = vmatpush1.bf16.msra.mxu0 %v2693
  %2713 = vmatprep.subr.bf16.mxu0 0
  %2714 = vmatpush2.bf16.msra.mxu0 0
  %2715 = vmatprep.subr.bf16.mxu0 0
  %2716 = vmatpush2.bf16.msra.mxu0 0
  %2717 = vmatprep.subr.bf16.mxu0 0
  %2718 = vmatpush2.bf16.msra.mxu0 0
  %2719 = vmatprep.subr.bf16.mxu0 0
  %2720 = vmatpush2.bf16.msra.mxu0 0
  %2721 = vmatprep.subr.bf16.mxu0 0
  %2722 = vmatpush2.bf16.msra.mxu0 0
  %2723 = vmatprep.subr.bf16.mxu0 0
  %2724 = vmatpush2.bf16.msra.mxu0 0
  %2725 = vmatprep.subr.bf16.mxu0 0
  %2726 = vmatpush2.bf16.msra.mxu0 0
  %2727 = vmatprep.subr.bf16.mxu0 0
  %2728 = vmatpush2.bf16.msra.mxu0 0
  %2729 = vmatprep.mubr.bf16.mxu0 0
  %2730 = vmatmul.mubr.bf16.gmra.mxu0 %v2695
  %v2731 = vpop.f32.mrf.mxu0
  %v2732 = vadd.f32 0.0, %v2731
  %v2733 = vpop.f32.mrf.mxu0
  %v2734 = vpop.f32.mrf.mxu0
  %v2735 = vpop.f32.mrf.mxu0
  %2736 = vdwg.mxu0
  %v2737 = vld [vmem:[%s23] sm:$0xff]
  %v2738 = vld [vmem:[%s23 + $0x8] sm:$0xff]
  %v2739 = vld [vmem:[%s23 + $0x10] sm:$0xff]
  %v2740 = vld [vmem:[%s23 + $0x18] sm:$0xff]
  %v2741 = vpack.c.bf16 %v2732, %v2732
  %v2742 = vld [vmem:[%s24] sm:$0x3]
  %v2744 = vlaneseq
  %v2745 = vshrl.u32 %v2744, 7
  %v2746 = vsub.s32 0, %v2745
  %v2747 = vrot.slane %v2742, %v2746
  %v2748 = vlaneseq
  %v2749 = vshrl.u32 %v2748, 7
  %v2750 = vsub.s32 1, %v2749
  %v2751 = vrot.slane %v2742, %v2750
  %v2758 = vunpack.c.l.b16 %v2737
  %v2759 = vunpack.c.h.b16 %v2737
  %v2760 = vunpack.c.l.b16 %v2738
  %v2761 = vunpack.c.h.b16 %v2738
  %v2762 = vunpack.c.l.b16 %v2739
  %v2763 = vunpack.c.h.b16 %v2739
  %v2764 = vunpack.c.l.b16 %v2740
  %v2765 = vunpack.c.h.b16 %v2740
  %v2766 = vpack.c.b16 %v2760, %v2758
  %v2767 = vpack.c.b16 %v2761, %v2759
  %v2768 = vpack.c.b16 %v2764, %v2762
  %v2769 = vpack.c.b16 %v2765, %v2763
  %v2775 = vsel %vm373, %v2741, 0
  %2777 = vmatprep.subr.bf16.mxu0 0
  %2778 = vmatpush1.bf16.msra.mxu0 0
  %2779 = vmatprep.subr.bf16.mxu0 0
  %2780 = vmatpush1.bf16.msra.mxu0 0
  %2781 = vmatprep.subr.bf16.mxu0 0
  %2782 = vmatpush1.bf16.msra.mxu0 0
  %2783 = vmatprep.subr.bf16.mxu0 0
  %2784 = vmatpush1.bf16.msra.mxu0 0
  %2785 = vmatprep.subr.bf16.mxu0 0
  %2786 = vmatpush1.bf16.msra.mxu0 0
  %2787 = vmatprep.subr.bf16.mxu0 0
  %2788 = vmatpush1.bf16.msra.mxu0 0
  %2789 = vmatprep.subr.bf16.mxu0 %v2769
  %2790 = vmatpush1.bf16.msra.mxu0 %v2768
  %2791 = vmatprep.subr.bf16.mxu0 %v2767
  %2792 = vmatpush1.bf16.msra.mxu0 %v2766
  %2793 = vmatprep.subr.bf16.mxu0 0
  %2794 = vmatpush2.bf16.msra.mxu0 0
  %2795 = vmatprep.subr.bf16.mxu0 0
  %2796 = vmatpush2.bf16.msra.mxu0 0
  %2797 = vmatprep.subr.bf16.mxu0 0
  %2798 = vmatpush2.bf16.msra.mxu0 0
  %2799 = vmatprep.subr.bf16.mxu0 0
  %2800 = vmatpush2.bf16.msra.mxu0 0
  %2801 = vmatprep.subr.bf16.mxu0 0
  %2802 = vmatpush2.bf16.msra.mxu0 0
  %2803 = vmatprep.subr.bf16.mxu0 0
  %2804 = vmatpush2.bf16.msra.mxu0 0
  %2805 = vmatprep.subr.bf16.mxu0 0
  %2806 = vmatpush2.bf16.msra.mxu0 0
  %2807 = vmatprep.subr.bf16.mxu0 0
  %2808 = vmatpush2.bf16.msra.mxu0 0
  %2809 = vmatprep.mubr.bf16.mxu0 0
  %2810 = vmatmul.mubr.bf16.gmra.mxu0 %v2775
  %v2811 = vpop.f32.mrf.mxu0
  %v2812 = vadd.f32 %v2747, %v2811
  %v2813 = vpop.f32.mrf.mxu0
  %v2814 = vadd.f32 %v2751, %v2813
  %v2815 = vpop.f32.mrf.mxu0
  %v2816 = vpop.f32.mrf.mxu0
  %2817 = vdwg.mxu0
  %v2818 = vmax.f32 %v2812, 0.0
  %v2819 = vmax.f32 %v2814, 0.0
  %v2820 = vld [vmem:[%s25] sm:$0xf]
  %v2821 = vld [vmem:[%s25 + $0x4] sm:$0xf]
  %v2822 = vld [vmem:[%s25 + $0x8] sm:$0xf]
  %v2823 = vld [vmem:[%s25 + $0xc] sm:$0xf]
  %v2824 = vld [vmem:[%s25 + $0x10] sm:$0xf]
  %v2825 = vld [vmem:[%s25 + $0x14] sm:$0xf]
  %v2826 = vld [vmem:[%s25 + $0x18] sm:$0xf]
  %v2827 = vld [vmem:[%s25 + $0x1c] sm:$0xf]
  %v2828 = vld [vmem:[%s25 + $0x20] sm:$0xf]
  %v2829 = vld [vmem:[%s25 + $0x24] sm:$0xf]
  %v2830 = vld [vmem:[%s25 + $0x28] sm:$0xf]
  %v2831 = vld [vmem:[%s25 + $0x2c] sm:$0xf]
  %v2832 = vld [vmem:[%s25 + $0x30] sm:$0xf]
  %v2833 = vld [vmem:[%s25 + $0x34] sm:$0xf]
  %v2834 = vld [vmem:[%s25 + $0x38] sm:$0xf]
  %v2835 = vld [vmem:[%s25 + $0x3c] sm:$0xf]
  %v2836 = vld [vmem:[%s25 + $0x40] sm:$0xf]
  %v2837 = vld [vmem:[%s25 + $0x44] sm:$0xf]
  %v2838 = vld [vmem:[%s25 + $0x48] sm:$0xf]
  %v2839 = vld [vmem:[%s25 + $0x4c] sm:$0xf]
  %v2840 = vld [vmem:[%s25 + $0x50] sm:$0xf]
  %v2841 = vld [vmem:[%s25 + $0x54] sm:$0xf]
  %v2842 = vld [vmem:[%s25 + $0x58] sm:$0xf]
  %v2843 = vld [vmem:[%s25 + $0x5c] sm:$0xf]
  %v2844 = vld [vmem:[%s25 + $0x60] sm:$0xf]
  %v2845 = vld [vmem:[%s25 + $0x64] sm:$0xf]
  %v2846 = vld [vmem:[%s25 + $0x68] sm:$0xf]
  %v2847 = vld [vmem:[%s25 + $0x6c] sm:$0xf]
  %v2848 = vld [vmem:[%s25 + $0x70] sm:$0xf]
  %v2849 = vld [vmem:[%s25 + $0x74] sm:$0xf]
  %v2850 = vld [vmem:[%s25 + $0x78] sm:$0xf]
  %v2851 = vld [vmem:[%s25 + $0x7c] sm:$0xf]
  %v2852 = vpack.c.bf16 %v2818, %v2818
  %v2853 = vpack.c.bf16 %v2819, %v2819
  %v2854 = vld [vmem:[%s26] sm:$0x1]
  %v2856 = vlaneseq
  %v2857 = vshrl.u32 %v2856, 7
  %v2858 = vsub.s32 0, %v2857
  %v2859 = vrot.slane %v2854, %v2858
  %v2893 = vunpack.c.l.b16 %v2820
  %v2894 = vunpack.c.l.b16 %v2821
  %v2895 = vunpack.c.l.b16 %v2822
  %v2896 = vunpack.c.l.b16 %v2823
  %v2897 = vunpack.c.l.b16 %v2824
  %v2898 = vunpack.c.l.b16 %v2825
  %v2899 = vunpack.c.l.b16 %v2826
  %v2900 = vunpack.c.l.b16 %v2827
  %v2901 = vunpack.c.l.b16 %v2828
  %v2902 = vunpack.c.l.b16 %v2829
  %v2903 = vunpack.c.l.b16 %v2830
  %v2904 = vunpack.c.l.b16 %v2831
  %v2905 = vunpack.c.l.b16 %v2832
  %v2906 = vunpack.c.l.b16 %v2833
  %v2907 = vunpack.c.l.b16 %v2834
  %v2908 = vunpack.c.l.b16 %v2835
  %v2909 = vunpack.c.l.b16 %v2836
  %v2910 = vunpack.c.l.b16 %v2837
  %v2911 = vunpack.c.l.b16 %v2838
  %v2912 = vunpack.c.l.b16 %v2839
  %v2913 = vunpack.c.l.b16 %v2840
  %v2914 = vunpack.c.l.b16 %v2841
  %v2915 = vunpack.c.l.b16 %v2842
  %v2916 = vunpack.c.l.b16 %v2843
  %v2917 = vunpack.c.l.b16 %v2844
  %v2918 = vunpack.c.l.b16 %v2845
  %v2919 = vunpack.c.l.b16 %v2846
  %v2920 = vunpack.c.l.b16 %v2847
  %v2921 = vunpack.c.l.b16 %v2848
  %v2922 = vunpack.c.l.b16 %v2849
  %v2923 = vunpack.c.l.b16 %v2850
  %v2924 = vunpack.c.l.b16 %v2851
  %v2925 = vpack.c.b16 %v2894, %v2893
  %v2926 = vpack.c.b16 %v2896, %v2895
  %v2927 = vpack.c.b16 %v2898, %v2897
  %v2928 = vpack.c.b16 %v2900, %v2899
  %v2929 = vpack.c.b16 %v2902, %v2901
  %v2930 = vpack.c.b16 %v2904, %v2903
  %v2931 = vpack.c.b16 %v2906, %v2905
  %v2932 = vpack.c.b16 %v2908, %v2907
  %v2933 = vpack.c.b16 %v2910, %v2909
  %v2934 = vpack.c.b16 %v2912, %v2911
  %v2935 = vpack.c.b16 %v2914, %v2913
  %v2936 = vpack.c.b16 %v2916, %v2915
  %v2937 = vpack.c.b16 %v2918, %v2917
  %v2938 = vpack.c.b16 %v2920, %v2919
  %v2939 = vpack.c.b16 %v2922, %v2921
  %v2940 = vpack.c.b16 %v2924, %v2923
  %2957 = vmatprep.subr.bf16.mxu0 0
  %2958 = vmatpush1.bf16.msra.mxu0 %v2932
  %2959 = vmatprep.subr.bf16.mxu0 0
  %2960 = vmatpush1.bf16.msra.mxu0 %v2931
  %2961 = vmatprep.subr.bf16.mxu0 0
  %2962 = vmatpush1.bf16.msra.mxu0 %v2930
  %2963 = vmatprep.subr.bf16.mxu0 0
  %2964 = vmatpush1.bf16.msra.mxu0 %v2929
  %2965 = vmatprep.subr.bf16.mxu0 0
  %2966 = vmatpush1.bf16.msra.mxu0 %v2928
  %2967 = vmatprep.subr.bf16.mxu0 0
  %2968 = vmatpush1.bf16.msra.mxu0 %v2927
  %2969 = vmatprep.subr.bf16.mxu0 0
  %2970 = vmatpush1.bf16.msra.mxu0 %v2926
  %2971 = vmatprep.subr.bf16.mxu0 0
  %2972 = vmatpush1.bf16.msra.mxu0 %v2925
  %2973 = vmatprep.subr.bf16.mxu0 0
  %2974 = vmatpush2.bf16.msra.mxu0 %v2940
  %2975 = vmatprep.subr.bf16.mxu0 0
  %2976 = vmatpush2.bf16.msra.mxu0 %v2939
  %2977 = vmatprep.subr.bf16.mxu0 0
  %2978 = vmatpush2.bf16.msra.mxu0 %v2938
  %2979 = vmatprep.subr.bf16.mxu0 0
  %2980 = vmatpush2.bf16.msra.mxu0 %v2937
  %2981 = vmatprep.subr.bf16.mxu0 0
  %2982 = vmatpush2.bf16.msra.mxu0 %v2936
  %2983 = vmatprep.subr.bf16.mxu0 0
  %2984 = vmatpush2.bf16.msra.mxu0 %v2935
  %2985 = vmatprep.subr.bf16.mxu0 0
  %2986 = vmatpush2.bf16.msra.mxu0 %v2934
  %2987 = vmatprep.subr.bf16.mxu0 0
  %2988 = vmatpush2.bf16.msra.mxu0 %v2933
  %2989 = vmatprep.mubr.bf16.mxu0 %v2853
  %2990 = vmatmul.mubr.bf16.gmra.mxu0 %v2852
  %v2991 = vpop.f32.mrf.mxu0
  %v2992 = vadd.f32 %v2859, %v2991
  %v2993 = vpop.f32.mrf.mxu0
  %v2994 = vpop.f32.mrf.mxu0
  %v2995 = vpop.f32.mrf.mxu0
  %2996 = vdwg.mxu0
  %2997 = vst [vmem:[%s27] sm:$0xff] %v2992
  // Predicated region
  $region110: #{whisper_deepfake_classifier.1} parent=0 // pred_check
    _
  $region111: #{whisper_deepfake_classifier.1} parent=0 // pred_check_branch
    %2999 = sbr.rel (0) target = $region113
  $region112: #{whisper_deepfake_classifier.1} parent=0 // pred_region
    _
  $region113: #{whisper_deepfake_classifier.1} parent=0 // pred_fallthru
    _
  // Predicated region
  $region114: #{whisper_deepfake_classifier.1} parent=0 // pred_check
    _
  $region115: #{whisper_deepfake_classifier.1} parent=0 // pred_check_branch
    %3001 = sbr.rel (0) target = $region117
  $region116: #{whisper_deepfake_classifier.1} parent=0 // pred_region
    _
  $region117: #{whisper_deepfake_classifier.1} parent=0 // pred_fallthru
    _

</llo_original>
